<compile_context>
chip_gen: v6e
topology: v6e:2x2x1
jax: 0.10.0
libtpu: 0.0.40
codegen_flags: <defaults>
</compile_context>

<pallas_src>
import functools

import jax
import jax.numpy as jnp
from jax.experimental import pallas as pl
from jax.experimental.pallas import tpu as pltpu


def _sigmoid(x):
    # tanh-based sigmoid: a single EUP push per call (vs exp + divide), and no
    # overflow path for large-negative inputs.
    return 0.5 * (jnp.tanh(0.5 * x) + 1.0)


def lstm_attn_kernel(x_ref, wihf_ref, wihb_ref, biasf_ref, biasb_ref, whh_ref,
                     wout_ref, bout_ref, out_ref,
                     xpf_ref, xpb_ref, hs_ref, cc_ref, *, B, few, H):
    f32 = jnp.float32
    bf16 = jnp.bfloat16

    # ---- Input projection: all timesteps, one matmul per direction. ----
    # Two independent (few*B, in) @ (in, 4H) matmuls into separate slabs so the
    # scheduler can overlap their tails with the early recurrence steps.
    x = x_ref[...]
    xpf_ref[...] = (jnp.dot(x, wihf_ref[...], preferred_element_type=f32)
                    + biasf_ref[...])
    xpb_ref[...] = (jnp.dot(x, wihb_ref[...], preferred_element_type=f32)
                    + biasb_ref[...])

    # Hoisted recurrent weight (fwd gates | bwd gates), reused every step.
    whh = whh_ref[...]                                   # (H, 8H) bf16

    def cell(gates, c_prev):
        # PyTorch gate order: i, f, g, o
        i = _sigmoid(gates[:, 0 * H:1 * H])
        f = _sigmoid(gates[:, 1 * H:2 * H])
        g = jnp.tanh(gates[:, 2 * H:3 * H])
        o = _sigmoid(gates[:, 3 * H:4 * H])
        c = f * c_prev + i * g
        h = o * jnp.tanh(c)
        return h, c

    h_f = jnp.zeros((B, H), f32)
    c_f = jnp.zeros((B, H), f32)
    h_b = jnp.zeros((B, H), f32)
    c_b = jnp.zeros((B, H), f32)

    # ---- Unrolled bidirectional recurrence (few is small & static). ----
    for s in range(few):
        tf = s                                           # forward:  t = 0..few-1
        tb = few - 1 - s                                 # backward: t = few-1..0
        if s == 0:
            # h0 = 0: the hidden matmul contributes nothing on the first step.
            gf = xpf_ref[tf * B:(tf + 1) * B, :]
            gb = xpb_ref[tb * B:(tb + 1) * B, :]
        else:
            # Fused fwd+bwd hidden matmul: (2B, H) @ (H, 8H); half the MACs are
            # wasted but the MXU has huge slack at M=8 and we issue/drain once.
            hh = jnp.dot(jnp.concatenate([h_f, h_b], axis=0).astype(bf16), whh,
                         preferred_element_type=f32)
            gf = xpf_ref[tf * B:(tf + 1) * B, :] + hh[0:B, 0:4 * H]
            gb = xpb_ref[tb * B:(tb + 1) * B, :] + hh[B:2 * B, 4 * H:8 * H]
        h_f, c_f = cell(gf, c_f)
        h_b, c_b = cell(gb, c_b)
        # Stream lstm_output (time-major, [fwd | bwd] lanes) into VMEM so the
        # attention epilogue does not keep 16 h vregs live across the recurrence.
        hs_ref[tf * B:(tf + 1) * B, 0:H] = h_f
        hs_ref[tb * B:(tb + 1) * B, H:2 * H] = h_b

    # ---- attention_net ----
    # hidden = final_cell_state.view(B, 2H, layers) is a raw row-major
    # reinterpretation of the (2, B, H) cell states that interleaves rows of
    # DIFFERENT batch elements: hidden[b, :H] = stacked row 2b, hidden[b, H:] = 2b+1
    # where stacked = [c_fwd; c_bwd].  Reproduce with two strided sublane loads.
    cc_ref[0:B, :] = c_f
    cc_ref[B:2 * B, :] = c_b
    hid_f = cc_ref[pl.ds(0, B, stride=2), :]             # rows 0,2,...,2B-2
    hid_b = cc_ref[pl.ds(1, B, stride=2), :]             # rows 1,3,...,2B-1
    hid = jnp.concatenate([hid_f, hid_b], axis=1)        # (B, 2H)

    # attn_weight[b, t] = <lstm_output[b, t, :], hidden[b, :]>
    hs = [hs_ref[t * B:(t + 1) * B, :] for t in range(few)]          # few x (B, 2H)
    logits = [jnp.sum(hs[t] * hid, axis=-1, keepdims=True) for t in range(few)]

    # softmax over the `few` axis, numerically stable
    m = logits[0]
    for t in range(1, few):
        m = jnp.maximum(m, logits[t])
    exps = [jnp.exp(l - m) for l in logits]
    denom = exps[0]
    for t in range(1, few):
        denom = denom + exps[t]
    inv = pl.reciprocal(denom, approx=True)                           # (B, 1)

    # context = lstm_output^T @ softmax(attn)  -> (B, 2H)
    ctx = exps[0] * hs[0]
    for t in range(1, few):
        ctx = ctx + exps[t] * hs[t]
    ctx = ctx * inv

    # ---- Final Linear(2H -> out). ----
    out_ref[...] = (jnp.dot(ctx.astype(bf16), wout_ref[...],
                            preferred_element_type=f32)
                    + bout_ref[...])


def lstm_attn_forward(inputs, params):
    """inputs: (B, few, 2, embed_size) f32.  Returns (B, 1, 1, out_size) f32."""
    B, few, two, E = inputs.shape
    in_dim = two * E
    H = params["w_hh_f"].shape[0]
    out_size = params["w_out"].shape[1]

    # forward(): view(B, few, 2E) -> permute to (few, B, 2E); flatten rows time-major.
    x = inputs.reshape(B, few, in_dim).transpose(1, 0, 2).reshape(few * B, in_dim)

    # bf16 matmul operands (f32 accumulation in-kernel), f32 biases.
    x_bf = x.astype(jnp.bfloat16)
    wih = params["w_ih"]
    wih_f = wih[:, :4 * H].astype(jnp.bfloat16)               # (in, 4H) fwd gates
    wih_b = wih[:, 4 * H:].astype(jnp.bfloat16)               # (in, 4H) bwd gates
    whh = jnp.concatenate([params["w_hh_f"], params["w_hh_b"]],
                          axis=1).astype(jnp.bfloat16)        # (H, 8H) [fwd | bwd]
    bias_f = params["bias"][:, :4 * H]                        # (1, 4H) b_ih + b_hh
    bias_b = params["bias"][:, 4 * H:]                        # (1, 4H)
    wout = params["w_out"].astype(jnp.bfloat16)               # (2H, out)
    bout = params["b_out"]                                    # (1, out)

    kernel = functools.partial(lstm_attn_kernel, B=B, few=few, H=H)
    full = lambda a: pl.BlockSpec(a.shape, lambda i: (0,) * a.ndim)

    out2d = pl.pallas_call(
        kernel,
        out_shape=jax.ShapeDtypeStruct((B, out_size), jnp.float32),
        grid_spec=pltpu.PrefetchScalarGridSpec(
            num_scalar_prefetch=0,
            grid=(1,),
            in_specs=[full(x_bf), full(wih_f), full(wih_b), full(bias_f),
                      full(bias_b), full(whh), full(wout), full(bout)],
            out_specs=pl.BlockSpec((B, out_size), lambda i: (0, 0)),
            scratch_shapes=[
                pltpu.VMEM((few * B, 4 * H), jnp.float32),    # fwd input-proj slab
                pltpu.VMEM((few * B, 4 * H), jnp.float32),    # bwd input-proj slab
                pltpu.VMEM((few * B, 2 * H), jnp.float32),    # lstm_output slab
                pltpu.VMEM((2 * B, H), jnp.float32),          # stacked final cell states
            ],
        ),
        compiler_params=pltpu.CompilerParams(
            dimension_semantics=("arbitrary",)),
    )(x_bf, wih_f, wih_b, bias_f, bias_b, whh, wout, bout)

    return out2d.reshape(B, 1, 1, out_size)


def init_params(key, embed_size, n_hidden, out_size):
    """Kernel-friendly parameter layout, init mirroring nn.LSTM / nn.Linear."""
    H = n_hidden
    in_dim = 2 * embed_size
    k_lstm = 1.0 / (H ** 0.5)
    k_lin = 1.0 / ((2 * H) ** 0.5)
    ks = jax.random.split(key, 10)
    u = lambda kk, shape, b: jax.random.uniform(kk, shape, jnp.float32, -b, b)

    w_ih_f = u(ks[0], (in_dim, 4 * H), k_lstm)     # stored transposed: x @ W
    w_ih_b = u(ks[1], (in_dim, 4 * H), k_lstm)
    w_hh_f = u(ks[2], (H, 4 * H), k_lstm)
    w_hh_b = u(ks[3], (H, 4 * H), k_lstm)
    bias_f = u(ks[4], (4 * H,), k_lstm) + u(ks[5], (4 * H,), k_lstm)   # b_ih + b_hh
    bias_b = u(ks[6], (4 * H,), k_lstm) + u(ks[7], (4 * H,), k_lstm)
    return {
        "w_ih": jnp.concatenate([w_ih_f, w_ih_b], axis=1),             # (in, 8H)
        "w_hh_f": w_hh_f,
        "w_hh_b": w_hh_b,
        "bias": jnp.concatenate([bias_f, bias_b])[None, :],            # (1, 8H)
        "w_out": u(ks[8], (2 * H, out_size), k_lin),                   # (2H, out)
        "b_out": u(ks[9], (1, out_size), k_lin),
    }


def reference_forward(inputs, params):
    """Pure-JAX/XLA reference of the same forward (same bf16 operand casts, f32
    accumulation), structured independently of the kernel for a real check."""
    B, few, two, E = inputs.shape
    in_dim = two * E
    H = params["w_hh_f"].shape[0]
    f32, bf16 = jnp.float32, jnp.bfloat16

    x = inputs.reshape(B, few, in_dim).transpose(1, 0, 2).astype(bf16)   # (few, B, in)
    wih = params["w_ih"].astype(bf16)
    wih_d = {0: wih[:, :4 * H], 1: wih[:, 4 * H:]}
    whh_d = {0: params["w_hh_f"].astype(bf16), 1: params["w_hh_b"].astype(bf16)}
    bias_d = {0: params["bias"][:, :4 * H], 1: params["bias"][:, 4 * H:]}

    def sig(z):
        return 1.0 / (1.0 + jnp.exp(-z))

    def run_dir(d, order):
        h = jnp.zeros((B, H), f32)
        c = jnp.zeros((B, H), f32)
        hs = [None] * few
        for t in order:
            g = (jnp.dot(x[t], wih_d[d], preferred_element_type=f32) + bias_d[d]
                 + jnp.dot(h.astype(bf16), whh_d[d], preferred_element_type=f32))
            c = sig(g[:, H:2 * H]) * c + sig(g[:, :H]) * jnp.tanh(g[:, 2 * H:3 * H])
            h = sig(g[:, 3 * H:]) * jnp.tanh(c)
            hs[t] = h
        return hs, c

    hs_f, c_f = run_dir(0, range(few))
    hs_b, c_b = run_dir(1, range(few - 1, -1, -1))

    output = jnp.stack(
        [jnp.concatenate([hs_f[t], hs_b[t]], axis=-1) for t in range(few)], axis=1)  # (B, few, 2H)
    final_cell = jnp.stack([c_f, c_b], axis=0)                    # (2, B, H)
    hidden = final_cell.reshape(B, 2 * H, 1)                      # torch .view() quirk
    attn = jnp.einsum("bfd,bdo->bfo", output, hidden)[..., 0]     # (B, few)
    soft = jax.nn.softmax(attn, axis=1)
    context = jnp.einsum("bfd,bf->bd", output, soft)              # (B, 2H)
    out = (jnp.dot(context.astype(bf16), params["w_out"].astype(bf16),
                   preferred_element_type=f32) + params["b_out"])
    return out.reshape(B, 1, 1, -1)


if __name__ == "__main__":
    # Small, lane/sublane aligned shapes consistent with LSTM_attn.forward:
    # inputs (B, few, 2, embed_size) -> output (B, 1, 1, out_size)
    B, few, embed_size = 8, 8, 64          # LSTM input size = 2 * embed_size = 128
    n_hidden, out_size = 128, 128

    key = jax.random.PRNGKey(0)
    k_in, k_par = jax.random.split(key)
    inputs = jax.random.normal(k_in, (B, few, 2, embed_size), jnp.float32)
    params = init_params(k_par, embed_size, n_hidden, out_size)

    out = jax.block_until_ready(lstm_attn_forward(inputs, params))
    ref = jax.block_until_ready(reference_forward(inputs, params))

    assert out.shape == (B, 1, 1, out_size), out.shape
    assert bool(jnp.all(jnp.isfinite(out))), "non-finite output"
    max_err = float(jnp.max(jnp.abs(out - ref)))
    assert max_err < 5e-3, max_err
    print("KERNEL_OK")
</pallas_src>

<mosaic_0001>
module attributes {stable_mosaic.version = 11 : i64} {
  func.func @lstm_attn_kernel(%arg0: i32, %arg1: memref<64x128xbf16, #tpu.memory_space<vmem>>, %arg2: memref<128x512xbf16, #tpu.memory_space<vmem>>, %arg3: memref<128x512xbf16, #tpu.memory_space<vmem>>, %arg4: memref<1x512xf32, #tpu.memory_space<vmem>>, %arg5: memref<1x512xf32, #tpu.memory_space<vmem>>, %arg6: memref<128x1024xbf16, #tpu.memory_space<vmem>>, %arg7: memref<256x128xbf16, #tpu.memory_space<vmem>>, %arg8: memref<1x128xf32, #tpu.memory_space<vmem>>, %arg9: memref<8x128xf32, #tpu.memory_space<vmem>>, %arg10: memref<64x512xf32, #tpu.memory_space<vmem>>, %arg11: memref<64x512xf32, #tpu.memory_space<vmem>>, %arg12: memref<64x256xf32, #tpu.memory_space<vmem>>, %arg13: memref<16x128xf32, #tpu.memory_space<vmem>>) attributes {dimension_semantics = [#tpu.dimension_semantics<arbitrary>], iteration_bounds = array<i64: 1>, scalar_prefetch = 0 : i64, scratch_operands = 4 : i64, tpu.core_type = #tpu.core_type<tc>, window_params = [{pipeline_mode = #tpu.pipeline_mode<synchronous>, transform_indices = @transform_0, window_bounds = array<i64: 64, 128>}, {pipeline_mode = #tpu.pipeline_mode<synchronous>, transform_indices = @transform_1, window_bounds = array<i64: 128, 512>}, {pipeline_mode = #tpu.pipeline_mode<synchronous>, transform_indices = @transform_2, window_bounds = array<i64: 128, 512>}, {pipeline_mode = #tpu.pipeline_mode<synchronous>, transform_indices = @transform_3, window_bounds = array<i64: 1, 512>}, {pipeline_mode = #tpu.pipeline_mode<synchronous>, transform_indices = @transform_4, window_bounds = array<i64: 1, 512>}, {pipeline_mode = #tpu.pipeline_mode<synchronous>, transform_indices = @transform_5, window_bounds = array<i64: 128, 1024>}, {pipeline_mode = #tpu.pipeline_mode<synchronous>, transform_indices = @transform_6, window_bounds = array<i64: 256, 128>}, {pipeline_mode = #tpu.pipeline_mode<synchronous>, transform_indices = @transform_7, window_bounds = array<i64: 1, 128>}, {pipeline_mode = #tpu.pipeline_mode<synchronous>, transform_indices = @transform_8, window_bounds = array<i64: 8, 128>}]} {
    %c0 = arith.constant 0 : index
    %c0_0 = arith.constant 0 : index
    %0 = vector.load %arg1[%c0, %c0_0] : memref<64x128xbf16, #tpu.memory_space<vmem>>, vector<64x128xbf16>
    %c0_1 = arith.constant 0 : index
    %c0_2 = arith.constant 0 : index
    %1 = vector.load %arg2[%c0_1, %c0_2] : memref<128x512xbf16, #tpu.memory_space<vmem>>, vector<128x512xbf16>
    %cst = arith.constant dense<0.000000e+00> : vector<64x512xf32>
    %2 = tpu.matmul %0, %1, %cst {dimension_numbers = #tpu.dot_dimension_numbers<[1], [0], [0], [1], [0, 0, 1, 1], [], []>} : vector<64x128xbf16>, vector<128x512xbf16>, vector<64x512xf32> -> vector<64x512xf32>
    %c0_3 = arith.constant 0 : index
    %c0_4 = arith.constant 0 : index
    %3 = vector.load %arg4[%c0_3, %c0_4] : memref<1x512xf32, #tpu.memory_space<vmem>>, vector<1x512xf32>
    %4 = vector.broadcast %3 : vector<1x512xf32> to vector<64x512xf32>
    %5 = arith.addf %2, %4 : vector<64x512xf32>
    %c0_5 = arith.constant 0 : index
    %c0_6 = arith.constant 0 : index
    %6 = vector.load %arg10[%c0_5, %c0_6] : memref<64x512xf32, #tpu.memory_space<vmem>>, vector<64x512xf32>
    tpu.vector_store %arg10[%c0_5, %c0_6], %5 {strides = array<i32>} : memref<64x512xf32, #tpu.memory_space<vmem>>, vector<64x512xf32>,
    %c0_7 = arith.constant 0 : index
    %c0_8 = arith.constant 0 : index
    %7 = vector.load %arg3[%c0_7, %c0_8] : memref<128x512xbf16, #tpu.memory_space<vmem>>, vector<128x512xbf16>
    %cst_9 = arith.constant dense<0.000000e+00> : vector<64x512xf32>
    %8 = tpu.matmul %0, %7, %cst_9 {dimension_numbers = #tpu.dot_dimension_numbers<[1], [0], [0], [1], [0, 0, 1, 1], [], []>} : vector<64x128xbf16>, vector<128x512xbf16>, vector<64x512xf32> -> vector<64x512xf32>
    %c0_10 = arith.constant 0 : index
    %c0_11 = arith.constant 0 : index
    %9 = vector.load %arg5[%c0_10, %c0_11] : memref<1x512xf32, #tpu.memory_space<vmem>>, vector<1x512xf32>
    %10 = vector.broadcast %9 : vector<1x512xf32> to vector<64x512xf32>
    %11 = arith.addf %8, %10 : vector<64x512xf32>
    %c0_12 = arith.constant 0 : index
    %c0_13 = arith.constant 0 : index
    %12 = vector.load %arg11[%c0_12, %c0_13] : memref<64x512xf32, #tpu.memory_space<vmem>>, vector<64x512xf32>
    tpu.vector_store %arg11[%c0_12, %c0_13], %11 {strides = array<i32>} : memref<64x512xf32, #tpu.memory_space<vmem>>, vector<64x512xf32>,
    %c0_14 = arith.constant 0 : index
    %c0_15 = arith.constant 0 : index
    %13 = vector.load %arg6[%c0_14, %c0_15] : memref<128x1024xbf16, #tpu.memory_space<vmem>>, vector<128x1024xbf16>
    %cst_16 = arith.constant 0.000000e+00 : f32
    %14 = vector.broadcast %cst_16 : f32 to vector<8x128xf32>
    %cst_17 = arith.constant 0.000000e+00 : f32
    %15 = vector.broadcast %cst_17 : f32 to vector<8x128xf32>
    %c0_18 = arith.constant 0 : index
    %c0_19 = arith.constant 0 : index
    %16 = vector.load %arg10[%c0_18, %c0_19] : memref<64x512xf32, #tpu.memory_space<vmem>>, vector<8x512xf32>
    %c56 = arith.constant 56 : index
    %c0_20 = arith.constant 0 : index
    %17 = vector.load %arg11[%c56, %c0_20] : memref<64x512xf32, #tpu.memory_space<vmem>>, vector<8x512xf32>
    %18 = vector.extract_strided_slice %16 {offsets = [0, 0], sizes = [8, 128], strides = [1, 1]} : vector<8x512xf32> to vector<8x128xf32>
    %cst_21 = arith.constant 5.000000e-01 : f32
    %19 = vector.broadcast %cst_21 : f32 to vector<8x128xf32>
    %20 = arith.mulf %19, %18 : vector<8x128xf32>
    %21 = math.tanh %20 : vector<8x128xf32>
    %cst_22 = arith.constant 1.000000e+00 : f32
    %22 = vector.broadcast %cst_22 : f32 to vector<8x128xf32>
    %23 = arith.addf %21, %22 : vector<8x128xf32>
    %cst_23 = arith.constant 5.000000e-01 : f32
    %24 = vector.broadcast %cst_23 : f32 to vector<8x128xf32>
    %25 = arith.mulf %24, %23 : vector<8x128xf32>
    %26 = vector.extract_strided_slice %16 {offsets = [0, 128], sizes = [8, 128], strides = [1, 1]} : vector<8x512xf32> to vector<8x128xf32>
    %cst_24 = arith.constant 5.000000e-01 : f32
    %27 = vector.broadcast %cst_24 : f32 to vector<8x128xf32>
    %28 = arith.mulf %27, %26 : vector<8x128xf32>
    %29 = math.tanh %28 : vector<8x128xf32>
    %cst_25 = arith.constant 1.000000e+00 : f32
    %30 = vector.broadcast %cst_25 : f32 to vector<8x128xf32>
    %31 = arith.addf %29, %30 : vector<8x128xf32>
    %cst_26 = arith.constant 5.000000e-01 : f32
    %32 = vector.broadcast %cst_26 : f32 to vector<8x128xf32>
    %33 = arith.mulf %32, %31 : vector<8x128xf32>
    %34 = vector.extract_strided_slice %16 {offsets = [0, 256], sizes = [8, 128], strides = [1, 1]} : vector<8x512xf32> to vector<8x128xf32>
    %35 = math.tanh %34 : vector<8x128xf32>
    %36 = vector.extract_strided_slice %16 {offsets = [0, 384], sizes = [8, 128], strides = [1, 1]} : vector<8x512xf32> to vector<8x128xf32>
    %cst_27 = arith.constant 5.000000e-01 : f32
    %37 = vector.broadcast %cst_27 : f32 to vector<8x128xf32>
    %38 = arith.mulf %37, %36 : vector<8x128xf32>
    %39 = math.tanh %38 : vector<8x128xf32>
    %cst_28 = arith.constant 1.000000e+00 : f32
    %40 = vector.broadcast %cst_28 : f32 to vector<8x128xf32>
    %41 = arith.addf %39, %40 : vector<8x128xf32>
    %cst_29 = arith.constant 5.000000e-01 : f32
    %42 = vector.broadcast %cst_29 : f32 to vector<8x128xf32>
    %43 = arith.mulf %42, %41 : vector<8x128xf32>
    %44 = arith.mulf %33, %14 : vector<8x128xf32>
    %45 = arith.mulf %25, %35 : vector<8x128xf32>
    %46 = arith.addf %44, %45 : vector<8x128xf32>
    %47 = math.tanh %46 : vector<8x128xf32>
    %48 = arith.mulf %43, %47 : vector<8x128xf32>
    %49 = vector.extract_strided_slice %17 {offsets = [0, 0], sizes = [8, 128], strides = [1, 1]} : vector<8x512xf32> to vector<8x128xf32>
    %cst_30 = arith.constant 5.000000e-01 : f32
    %50 = vector.broadcast %cst_30 : f32 to vector<8x128xf32>
    %51 = arith.mulf %50, %49 : vector<8x128xf32>
    %52 = math.tanh %51 : vector<8x128xf32>
    %cst_31 = arith.constant 1.000000e+00 : f32
    %53 = vector.broadcast %cst_31 : f32 to vector<8x128xf32>
    %54 = arith.addf %52, %53 : vector<8x128xf32>
    %cst_32 = arith.constant 5.000000e-01 : f32
    %55 = vector.broadcast %cst_32 : f32 to vector<8x128xf32>
    %56 = arith.mulf %55, %54 : vector<8x128xf32>
    %57 = vector.extract_strided_slice %17 {offsets = [0, 128], sizes = [8, 128], strides = [1, 1]} : vector<8x512xf32> to vector<8x128xf32>
    %cst_33 = arith.constant 5.000000e-01 : f32
    %58 = vector.broadcast %cst_33 : f32 to vector<8x128xf32>
    %59 = arith.mulf %58, %57 : vector<8x128xf32>
    %60 = math.tanh %59 : vector<8x128xf32>
    %cst_34 = arith.constant 1.000000e+00 : f32
    %61 = vector.broadcast %cst_34 : f32 to vector<8x128xf32>
    %62 = arith.addf %60, %61 : vector<8x128xf32>
    %cst_35 = arith.constant 5.000000e-01 : f32
    %63 = vector.broadcast %cst_35 : f32 to vector<8x128xf32>
    %64 = arith.mulf %63, %62 : vector<8x128xf32>
    %65 = vector.extract_strided_slice %17 {offsets = [0, 256], sizes = [8, 128], strides = [1, 1]} : vector<8x512xf32> to vector<8x128xf32>
    %66 = math.tanh %65 : vector<8x128xf32>
    %67 = vector.extract_strided_slice %17 {offsets = [0, 384], sizes = [8, 128], strides = [1, 1]} : vector<8x512xf32> to vector<8x128xf32>
    %cst_36 = arith.constant 5.000000e-01 : f32
    %68 = vector.broadcast %cst_36 : f32 to vector<8x128xf32>
    %69 = arith.mulf %68, %67 : vector<8x128xf32>
    %70 = math.tanh %69 : vector<8x128xf32>
    %cst_37 = arith.constant 1.000000e+00 : f32
    %71 = vector.broadcast %cst_37 : f32 to vector<8x128xf32>
    %72 = arith.addf %70, %71 : vector<8x128xf32>
    %cst_38 = arith.constant 5.000000e-01 : f32
    %73 = vector.broadcast %cst_38 : f32 to vector<8x128xf32>
    %74 = arith.mulf %73, %72 : vector<8x128xf32>
    %75 = arith.mulf %64, %15 : vector<8x128xf32>
    %76 = arith.mulf %56, %66 : vector<8x128xf32>
    %77 = arith.addf %75, %76 : vector<8x128xf32>
    %78 = math.tanh %77 : vector<8x128xf32>
    %79 = arith.mulf %74, %78 : vector<8x128xf32>
    %c0_39 = arith.constant 0 : index
    %c0_40 = arith.constant 0 : index
    %80 = vector.load %arg12[%c0_39, %c0_40] : memref<64x256xf32, #tpu.memory_space<vmem>>, vector<8x128xf32>
    tpu.vector_store %arg12[%c0_39, %c0_40], %48 {strides = array<i32>} : memref<64x256xf32, #tpu.memory_space<vmem>>, vector<8x128xf32>,
    %c56_41 = arith.constant 56 : index
    %c128 = arith.constant 128 : index
    %81 = vector.load %arg12[%c56_41, %c128] : memref<64x256xf32, #tpu.memory_space<vmem>>, vector<8x128xf32>
    tpu.vector_store %arg12[%c56_41, %c128], %79 {strides = array<i32>} : memref<64x256xf32, #tpu.memory_space<vmem>>, vector<8x128xf32>,
    %82 = tpu.concatenate %48, %79 in 0 : vector<8x128xf32>, vector<8x128xf32> -> vector<16x128xf32>
    %83 = arith.truncf %82 : vector<16x128xf32> to vector<16x128xbf16>
    %cst_42 = arith.constant dense<0.000000e+00> : vector<16x1024xf32>
    %84 = tpu.matmul %83, %13, %cst_42 {dimension_numbers = #tpu.dot_dimension_numbers<[1], [0], [0], [1], [0, 0, 1, 1], [], []>} : vector<16x128xbf16>, vector<128x1024xbf16>, vector<16x1024xf32> -> vector<16x1024xf32>
    %c8 = arith.constant 8 : index
    %c0_43 = arith.constant 0 : index
    %85 = vector.load %arg10[%c8, %c0_43] : memref<64x512xf32, #tpu.memory_space<vmem>>, vector<8x512xf32>
    %86 = vector.extract_strided_slice %84 {offsets = [0, 0], sizes = [8, 512], strides = [1, 1]} : vector<16x1024xf32> to vector<8x512xf32>
    %87 = arith.addf %85, %86 : vector<8x512xf32>
    %c48 = arith.constant 48 : index
    %c0_44 = arith.constant 0 : index
    %88 = vector.load %arg11[%c48, %c0_44] : memref<64x512xf32, #tpu.memory_space<vmem>>, vector<8x512xf32>
    %89 = vector.extract_strided_slice %84 {offsets = [8, 512], sizes = [8, 512], strides = [1, 1]} : vector<16x1024xf32> to vector<8x512xf32>
    %90 = arith.addf %88, %89 : vector<8x512xf32>
    %91 = vector.extract_strided_slice %87 {offsets = [0, 0], sizes = [8, 128], strides = [1, 1]} : vector<8x512xf32> to vector<8x128xf32>
    %cst_45 = arith.constant 5.000000e-01 : f32
    %92 = vector.broadcast %cst_45 : f32 to vector<8x128xf32>
    %93 = arith.mulf %92, %91 : vector<8x128xf32>
    %94 = math.tanh %93 : vector<8x128xf32>
    %cst_46 = arith.constant 1.000000e+00 : f32
    %95 = vector.broadcast %cst_46 : f32 to vector<8x128xf32>
    %96 = arith.addf %94, %95 : vector<8x128xf32>
    %cst_47 = arith.constant 5.000000e-01 : f32
    %97 = vector.broadcast %cst_47 : f32 to vector<8x128xf32>
    %98 = arith.mulf %97, %96 : vector<8x128xf32>
    %99 = vector.extract_strided_slice %87 {offsets = [0, 128], sizes = [8, 128], strides = [1, 1]} : vector<8x512xf32> to vector<8x128xf32>
    %cst_48 = arith.constant 5.000000e-01 : f32
    %100 = vector.broadcast %cst_48 : f32 to vector<8x128xf32>
    %101 = arith.mulf %100, %99 : vector<8x128xf32>
    %102 = math.tanh %101 : vector<8x128xf32>
    %cst_49 = arith.constant 1.000000e+00 : f32
    %103 = vector.broadcast %cst_49 : f32 to vector<8x128xf32>
    %104 = arith.addf %102, %103 : vector<8x128xf32>
    %cst_50 = arith.constant 5.000000e-01 : f32
    %105 = vector.broadcast %cst_50 : f32 to vector<8x128xf32>
    %106 = arith.mulf %105, %104 : vector<8x128xf32>
    %107 = vector.extract_strided_slice %87 {offsets = [0, 256], sizes = [8, 128], strides = [1, 1]} : vector<8x512xf32> to vector<8x128xf32>
    %108 = math.tanh %107 : vector<8x128xf32>
    %109 = vector.extract_strided_slice %87 {offsets = [0, 384], sizes = [8, 128], strides = [1, 1]} : vector<8x512xf32> to vector<8x128xf32>
    %cst_51 = arith.constant 5.000000e-01 : f32
    %110 = vector.broadcast %cst_51 : f32 to vector<8x128xf32>
    %111 = arith.mulf %110, %109 : vector<8x128xf32>
    %112 = math.tanh %111 : vector<8x128xf32>
    %cst_52 = arith.constant 1.000000e+00 : f32
    %113 = vector.broadcast %cst_52 : f32 to vector<8x128xf32>
    %114 = arith.addf %112, %113 : vector<8x128xf32>
    %cst_53 = arith.constant 5.000000e-01 : f32
    %115 = vector.broadcast %cst_53 : f32 to vector<8x128xf32>
    %116 = arith.mulf %115, %114 : vector<8x128xf32>
    %117 = arith.mulf %106, %46 : vector<8x128xf32>
    %118 = arith.mulf %98, %108 : vector<8x128xf32>
    %119 = arith.addf %117, %118 : vector<8x128xf32>
    %120 = math.tanh %119 : vector<8x128xf32>
    %121 = arith.mulf %116, %120 : vector<8x128xf32>
    %122 = vector.extract_strided_slice %90 {offsets = [0, 0], sizes = [8, 128], strides = [1, 1]} : vector<8x512xf32> to vector<8x128xf32>
    %cst_54 = arith.constant 5.000000e-01 : f32
    %123 = vector.broadcast %cst_54 : f32 to vector<8x128xf32>
    %124 = arith.mulf %123, %122 : vector<8x128xf32>
    %125 = math.tanh %124 : vector<8x128xf32>
    %cst_55 = arith.constant 1.000000e+00 : f32
    %126 = vector.broadcast %cst_55 : f32 to vector<8x128xf32>
    %127 = arith.addf %125, %126 : vector<8x128xf32>
    %cst_56 = arith.constant 5.000000e-01 : f32
    %128 = vector.broadcast %cst_56 : f32 to vector<8x128xf32>
    %129 = arith.mulf %128, %127 : vector<8x128xf32>
    %130 = vector.extract_strided_slice %90 {offsets = [0, 128], sizes = [8, 128], strides = [1, 1]} : vector<8x512xf32> to vector<8x128xf32>
    %cst_57 = arith.constant 5.000000e-01 : f32
    %131 = vector.broadcast %cst_57 : f32 to vector<8x128xf32>
    %132 = arith.mulf %131, %130 : vector<8x128xf32>
    %133 = math.tanh %132 : vector<8x128xf32>
    %cst_58 = arith.constant 1.000000e+00 : f32
    %134 = vector.broadcast %cst_58 : f32 to vector<8x128xf32>
    %135 = arith.addf %133, %134 : vector<8x128xf32>
    %cst_59 = arith.constant 5.000000e-01 : f32
    %136 = vector.broadcast %cst_59 : f32 to vector<8x128xf32>
    %137 = arith.mulf %136, %135 : vector<8x128xf32>
    %138 = vector.extract_strided_slice %90 {offsets = [0, 256], sizes = [8, 128], strides = [1, 1]} : vector<8x512xf32> to vector<8x128xf32>
    %139 = math.tanh %138 : vector<8x128xf32>
    %140 = vector.extract_strided_slice %90 {offsets = [0, 384], sizes = [8, 128], strides = [1, 1]} : vector<8x512xf32> to vector<8x128xf32>
    %cst_60 = arith.constant 5.000000e-01 : f32
    %141 = vector.broadcast %cst_60 : f32 to vector<8x128xf32>
    %142 = arith.mulf %141, %140 : vector<8x128xf32>
    %143 = math.tanh %142 : vector<8x128xf32>
    %cst_61 = arith.constant 1.000000e+00 : f32
    %144 = vector.broadcast %cst_61 : f32 to vector<8x128xf32>
    %145 = arith.addf %143, %144 : vector<8x128xf32>
    %cst_62 = arith.constant 5.000000e-01 : f32
    %146 = vector.broadcast %cst_62 : f32 to vector<8x128xf32>
    %147 = arith.mulf %146, %145 : vector<8x128xf32>
    %148 = arith.mulf %137, %77 : vector<8x128xf32>
    %149 = arith.mulf %129, %139 : vector<8x128xf32>
    %150 = arith.addf %148, %149 : vector<8x128xf32>
    %151 = math.tanh %150 : vector<8x128xf32>
    %152 = arith.mulf %147, %151 : vector<8x128xf32>
    %c8_63 = arith.constant 8 : index
    %c0_64 = arith.constant 0 : index
    %153 = vector.load %arg12[%c8_63, %c0_64] : memref<64x256xf32, #tpu.memory_space<vmem>>, vector<8x128xf32>
    tpu.vector_store %arg12[%c8_63, %c0_64], %121 {strides = array<i32>} : memref<64x256xf32, #tpu.memory_space<vmem>>, vector<8x128xf32>,
    %c48_65 = arith.constant 48 : index
    %c128_66 = arith.constant 128 : index
    %154 = vector.load %arg12[%c48_65, %c128_66] : memref<64x256xf32, #tpu.memory_space<vmem>>, vector<8x128xf32>
    tpu.vector_store %arg12[%c48_65, %c128_66], %152 {strides = array<i32>} : memref<64x256xf32, #tpu.memory_space<vmem>>, vector<8x128xf32>,
    %155 = tpu.concatenate %121, %152 in 0 : vector<8x128xf32>, vector<8x128xf32> -> vector<16x128xf32>
    %156 = arith.truncf %155 : vector<16x128xf32> to vector<16x128xbf16>
    %cst_67 = arith.constant dense<0.000000e+00> : vector<16x1024xf32>
    %157 = tpu.matmul %156, %13, %cst_67 {dimension_numbers = #tpu.dot_dimension_numbers<[1], [0], [0], [1], [0, 0, 1, 1], [], []>} : vector<16x128xbf16>, vector<128x1024xbf16>, vector<16x1024xf32> -> vector<16x1024xf32>
    %c16 = arith.constant 16 : index
    %c0_68 = arith.constant 0 : index
    %158 = vector.load %arg10[%c16, %c0_68] : memref<64x512xf32, #tpu.memory_space<vmem>>, vector<8x512xf32>
    %159 = vector.extract_strided_slice %157 {offsets = [0, 0], sizes = [8, 512], strides = [1, 1]} : vector<16x1024xf32> to vector<8x512xf32>
    %160 = arith.addf %158, %159 : vector<8x512xf32>
    %c40 = arith.constant 40 : index
    %c0_69 = arith.constant 0 : index
    %161 = vector.load %arg11[%c40, %c0_69] : memref<64x512xf32, #tpu.memory_space<vmem>>, vector<8x512xf32>
    %162 = vector.extract_strided_slice %157 {offsets = [8, 512], sizes = [8, 512], strides = [1, 1]} : vector<16x1024xf32> to vector<8x512xf32>
    %163 = arith.addf %161, %162 : vector<8x512xf32>
    %164 = vector.extract_strided_slice %160 {offsets = [0, 0], sizes = [8, 128], strides = [1, 1]} : vector<8x512xf32> to vector<8x128xf32>
    %cst_70 = arith.constant 5.000000e-01 : f32
    %165 = vector.broadcast %cst_70 : f32 to vector<8x128xf32>
    %166 = arith.mulf %165, %164 : vector<8x128xf32>
    %167 = math.tanh %166 : vector<8x128xf32>
    %cst_71 = arith.constant 1.000000e+00 : f32
    %168 = vector.broadcast %cst_71 : f32 to vector<8x128xf32>
    %169 = arith.addf %167, %168 : vector<8x128xf32>
    %cst_72 = arith.constant 5.000000e-01 : f32
    %170 = vector.broadcast %cst_72 : f32 to vector<8x128xf32>
    %171 = arith.mulf %170, %169 : vector<8x128xf32>
    %172 = vector.extract_strided_slice %160 {offsets = [0, 128], sizes = [8, 128], strides = [1, 1]} : vector<8x512xf32> to vector<8x128xf32>
    %cst_73 = arith.constant 5.000000e-01 : f32
    %173 = vector.broadcast %cst_73 : f32 to vector<8x128xf32>
    %174 = arith.mulf %173, %172 : vector<8x128xf32>
    %175 = math.tanh %174 : vector<8x128xf32>
    %cst_74 = arith.constant 1.000000e+00 : f32
    %176 = vector.broadcast %cst_74 : f32 to vector<8x128xf32>
    %177 = arith.addf %175, %176 : vector<8x128xf32>
    %cst_75 = arith.constant 5.000000e-01 : f32
    %178 = vector.broadcast %cst_75 : f32 to vector<8x128xf32>
    %179 = arith.mulf %178, %177 : vector<8x128xf32>
    %180 = vector.extract_strided_slice %160 {offsets = [0, 256], sizes = [8, 128], strides = [1, 1]} : vector<8x512xf32> to vector<8x128xf32>
    %181 = math.tanh %180 : vector<8x128xf32>
    %182 = vector.extract_strided_slice %160 {offsets = [0, 384], sizes = [8, 128], strides = [1, 1]} : vector<8x512xf32> to vector<8x128xf32>
    %cst_76 = arith.constant 5.000000e-01 : f32
    %183 = vector.broadcast %cst_76 : f32 to vector<8x128xf32>
    %184 = arith.mulf %183, %182 : vector<8x128xf32>
    %185 = math.tanh %184 : vector<8x128xf32>
    %cst_77 = arith.constant 1.000000e+00 : f32
    %186 = vector.broadcast %cst_77 : f32 to vector<8x128xf32>
    %187 = arith.addf %185, %186 : vector<8x128xf32>
    %cst_78 = arith.constant 5.000000e-01 : f32
    %188 = vector.broadcast %cst_78 : f32 to vector<8x128xf32>
    %189 = arith.mulf %188, %187 : vector<8x128xf32>
    %190 = arith.mulf %179, %119 : vector<8x128xf32>
    %191 = arith.mulf %171, %181 : vector<8x128xf32>
    %192 = arith.addf %190, %191 : vector<8x128xf32>
    %193 = math.tanh %192 : vector<8x128xf32>
    %194 = arith.mulf %189, %193 : vector<8x128xf32>
    %195 = vector.extract_strided_slice %163 {offsets = [0, 0], sizes = [8, 128], strides = [1, 1]} : vector<8x512xf32> to vector<8x128xf32>
    %cst_79 = arith.constant 5.000000e-01 : f32
    %196 = vector.broadcast %cst_79 : f32 to vector<8x128xf32>
    %197 = arith.mulf %196, %195 : vector<8x128xf32>
    %198 = math.tanh %197 : vector<8x128xf32>
    %cst_80 = arith.constant 1.000000e+00 : f32
    %199 = vector.broadcast %cst_80 : f32 to vector<8x128xf32>
    %200 = arith.addf %198, %199 : vector<8x128xf32>
    %cst_81 = arith.constant 5.000000e-01 : f32
    %201 = vector.broadcast %cst_81 : f32 to vector<8x128xf32>
    %202 = arith.mulf %201, %200 : vector<8x128xf32>
    %203 = vector.extract_strided_slice %163 {offsets = [0, 128], sizes = [8, 128], strides = [1, 1]} : vector<8x512xf32> to vector<8x128xf32>
    %cst_82 = arith.constant 5.000000e-01 : f32
    %204 = vector.broadcast %cst_82 : f32 to vector<8x128xf32>
    %205 = arith.mulf %204, %203 : vector<8x128xf32>
    %206 = math.tanh %205 : vector<8x128xf32>
    %cst_83 = arith.constant 1.000000e+00 : f32
    %207 = vector.broadcast %cst_83 : f32 to vector<8x128xf32>
    %208 = arith.addf %206, %207 : vector<8x128xf32>
    %cst_84 = arith.constant 5.000000e-01 : f32
    %209 = vector.broadcast %cst_84 : f32 to vector<8x128xf32>
    %210 = arith.mulf %209, %208 : vector<8x128xf32>
    %211 = vector.extract_strided_slice %163 {offsets = [0, 256], sizes = [8, 128], strides = [1, 1]} : vector<8x512xf32> to vector<8x128xf32>
    %212 = math.tanh %211 : vector<8x128xf32>
    %213 = vector.extract_strided_slice %163 {offsets = [0, 384], sizes = [8, 128], strides = [1, 1]} : vector<8x512xf32> to vector<8x128xf32>
    %cst_85 = arith.constant 5.000000e-01 : f32
    %214 = vector.broadcast %cst_85 : f32 to vector<8x128xf32>
    %215 = arith.mulf %214, %213 : vector<8x128xf32>
    %216 = math.tanh %215 : vector<8x128xf32>
    %cst_86 = arith.constant 1.000000e+00 : f32
    %217 = vector.broadcast %cst_86 : f32 to vector<8x128xf32>
    %218 = arith.addf %216, %217 : vector<8x128xf32>
    %cst_87 = arith.constant 5.000000e-01 : f32
    %219 = vector.broadcast %cst_87 : f32 to vector<8x128xf32>
    %220 = arith.mulf %219, %218 : vector<8x128xf32>
    %221 = arith.mulf %210, %150 : vector<8x128xf32>
    %222 = arith.mulf %202, %212 : vector<8x128xf32>
    %223 = arith.addf %221, %222 : vector<8x128xf32>
    %224 = math.tanh %223 : vector<8x128xf32>
    %225 = arith.mulf %220, %224 : vector<8x128xf32>
    %c16_88 = arith.constant 16 : index
    %c0_89 = arith.constant 0 : index
    %226 = vector.load %arg12[%c16_88, %c0_89] : memref<64x256xf32, #tpu.memory_space<vmem>>, vector<8x128xf32>
    tpu.vector_store %arg12[%c16_88, %c0_89], %194 {strides = array<i32>} : memref<64x256xf32, #tpu.memory_space<vmem>>, vector<8x128xf32>,
    %c40_90 = arith.constant 40 : index
    %c128_91 = arith.constant 128 : index
    %227 = vector.load %arg12[%c40_90, %c128_91] : memref<64x256xf32, #tpu.memory_space<vmem>>, vector<8x128xf32>
    tpu.vector_store %arg12[%c40_90, %c128_91], %225 {strides = array<i32>} : memref<64x256xf32, #tpu.memory_space<vmem>>, vector<8x128xf32>,
    %228 = tpu.concatenate %194, %225 in 0 : vector<8x128xf32>, vector<8x128xf32> -> vector<16x128xf32>
    %229 = arith.truncf %228 : vector<16x128xf32> to vector<16x128xbf16>
    %cst_92 = arith.constant dense<0.000000e+00> : vector<16x1024xf32>
    %230 = tpu.matmul %229, %13, %cst_92 {dimension_numbers = #tpu.dot_dimension_numbers<[1], [0], [0], [1], [0, 0, 1, 1], [], []>} : vector<16x128xbf16>, vector<128x1024xbf16>, vector<16x1024xf32> -> vector<16x1024xf32>
    %c24 = arith.constant 24 : index
    %c0_93 = arith.constant 0 : index
    %231 = vector.load %arg10[%c24, %c0_93] : memref<64x512xf32, #tpu.memory_space<vmem>>, vector<8x512xf32>
    %232 = vector.extract_strided_slice %230 {offsets = [0, 0], sizes = [8, 512], strides = [1, 1]} : vector<16x1024xf32> to vector<8x512xf32>
    %233 = arith.addf %231, %232 : vector<8x512xf32>
    %c32 = arith.constant 32 : index
    %c0_94 = arith.constant 0 : index
    %234 = vector.load %arg11[%c32, %c0_94] : memref<64x512xf32, #tpu.memory_space<vmem>>, vector<8x512xf32>
    %235 = vector.extract_strided_slice %230 {offsets = [8, 512], sizes = [8, 512], strides = [1, 1]} : vector<16x1024xf32> to vector<8x512xf32>
    %236 = arith.addf %234, %235 : vector<8x512xf32>
    %237 = vector.extract_strided_slice %233 {offsets = [0, 0], sizes = [8, 128], strides = [1, 1]} : vector<8x512xf32> to vector<8x128xf32>
    %cst_95 = arith.constant 5.000000e-01 : f32
    %238 = vector.broadcast %cst_95 : f32 to vector<8x128xf32>
    %239 = arith.mulf %238, %237 : vector<8x128xf32>
    %240 = math.tanh %239 : vector<8x128xf32>
    %cst_96 = arith.constant 1.000000e+00 : f32
    %241 = vector.broadcast %cst_96 : f32 to vector<8x128xf32>
    %242 = arith.addf %240, %241 : vector<8x128xf32>
    %cst_97 = arith.constant 5.000000e-01 : f32
    %243 = vector.broadcast %cst_97 : f32 to vector<8x128xf32>
    %244 = arith.mulf %243, %242 : vector<8x128xf32>
    %245 = vector.extract_strided_slice %233 {offsets = [0, 128], sizes = [8, 128], strides = [1, 1]} : vector<8x512xf32> to vector<8x128xf32>
    %cst_98 = arith.constant 5.000000e-01 : f32
    %246 = vector.broadcast %cst_98 : f32 to vector<8x128xf32>
    %247 = arith.mulf %246, %245 : vector<8x128xf32>
    %248 = math.tanh %247 : vector<8x128xf32>
    %cst_99 = arith.constant 1.000000e+00 : f32
    %249 = vector.broadcast %cst_99 : f32 to vector<8x128xf32>
    %250 = arith.addf %248, %249 : vector<8x128xf32>
    %cst_100 = arith.constant 5.000000e-01 : f32
    %251 = vector.broadcast %cst_100 : f32 to vector<8x128xf32>
    %252 = arith.mulf %251, %250 : vector<8x128xf32>
    %253 = vector.extract_strided_slice %233 {offsets = [0, 256], sizes = [8, 128], strides = [1, 1]} : vector<8x512xf32> to vector<8x128xf32>
    %254 = math.tanh %253 : vector<8x128xf32>
    %255 = vector.extract_strided_slice %233 {offsets = [0, 384], sizes = [8, 128], strides = [1, 1]} : vector<8x512xf32> to vector<8x128xf32>
    %cst_101 = arith.constant 5.000000e-01 : f32
    %256 = vector.broadcast %cst_101 : f32 to vector<8x128xf32>
    %257 = arith.mulf %256, %255 : vector<8x128xf32>
    %258 = math.tanh %257 : vector<8x128xf32>
    %cst_102 = arith.constant 1.000000e+00 : f32
    %259 = vector.broadcast %cst_102 : f32 to vector<8x128xf32>
    %260 = arith.addf %258, %259 : vector<8x128xf32>
    %cst_103 = arith.constant 5.000000e-01 : f32
    %261 = vector.broadcast %cst_103 : f32 to vector<8x128xf32>
    %262 = arith.mulf %261, %260 : vector<8x128xf32>
    %263 = arith.mulf %252, %192 : vector<8x128xf32>
    %264 = arith.mulf %244, %254 : vector<8x128xf32>
    %265 = arith.addf %263, %264 : vector<8x128xf32>
    %266 = math.tanh %265 : vector<8x128xf32>
    %267 = arith.mulf %262, %266 : vector<8x128xf32>
    %268 = vector.extract_strided_slice %236 {offsets = [0, 0], sizes = [8, 128], strides = [1, 1]} : vector<8x512xf32> to vector<8x128xf32>
    %cst_104 = arith.constant 5.000000e-01 : f32
    %269 = vector.broadcast %cst_104 : f32 to vector<8x128xf32>
    %270 = arith.mulf %269, %268 : vector<8x128xf32>
    %271 = math.tanh %270 : vector<8x128xf32>
    %cst_105 = arith.constant 1.000000e+00 : f32
    %272 = vector.broadcast %cst_105 : f32 to vector<8x128xf32>
    %273 = arith.addf %271, %272 : vector<8x128xf32>
    %cst_106 = arith.constant 5.000000e-01 : f32
    %274 = vector.broadcast %cst_106 : f32 to vector<8x128xf32>
    %275 = arith.mulf %274, %273 : vector<8x128xf32>
    %276 = vector.extract_strided_slice %236 {offsets = [0, 128], sizes = [8, 128], strides = [1, 1]} : vector<8x512xf32> to vector<8x128xf32>
    %cst_107 = arith.constant 5.000000e-01 : f32
    %277 = vector.broadcast %cst_107 : f32 to vector<8x128xf32>
    %278 = arith.mulf %277, %276 : vector<8x128xf32>
    %279 = math.tanh %278 : vector<8x128xf32>
    %cst_108 = arith.constant 1.000000e+00 : f32
    %280 = vector.broadcast %cst_108 : f32 to vector<8x128xf32>
    %281 = arith.addf %279, %280 : vector<8x128xf32>
    %cst_109 = arith.constant 5.000000e-01 : f32
    %282 = vector.broadcast %cst_109 : f32 to vector<8x128xf32>
    %283 = arith.mulf %282, %281 : vector<8x128xf32>
    %284 = vector.extract_strided_slice %236 {offsets = [0, 256], sizes = [8, 128], strides = [1, 1]} : vector<8x512xf32> to vector<8x128xf32>
    %285 = math.tanh %284 : vector<8x128xf32>
    %286 = vector.extract_strided_slice %236 {offsets = [0, 384], sizes = [8, 128], strides = [1, 1]} : vector<8x512xf32> to vector<8x128xf32>
    %cst_110 = arith.constant 5.000000e-01 : f32
    %287 = vector.broadcast %cst_110 : f32 to vector<8x128xf32>
    %288 = arith.mulf %287, %286 : vector<8x128xf32>
    %289 = math.tanh %288 : vector<8x128xf32>
    %cst_111 = arith.constant 1.000000e+00 : f32
    %290 = vector.broadcast %cst_111 : f32 to vector<8x128xf32>
    %291 = arith.addf %289, %290 : vector<8x128xf32>
    %cst_112 = arith.constant 5.000000e-01 : f32
    %292 = vector.broadcast %cst_112 : f32 to vector<8x128xf32>
    %293 = arith.mulf %292, %291 : vector<8x128xf32>
    %294 = arith.mulf %283, %223 : vector<8x128xf32>
    %295 = arith.mulf %275, %285 : vector<8x128xf32>
    %296 = arith.addf %294, %295 : vector<8x128xf32>
    %297 = math.tanh %296 : vector<8x128xf32>
    %298 = arith.mulf %293, %297 : vector<8x128xf32>
    %c24_113 = arith.constant 24 : index
    %c0_114 = arith.constant 0 : index
    %299 = vector.load %arg12[%c24_113, %c0_114] : memref<64x256xf32, #tpu.memory_space<vmem>>, vector<8x128xf32>
    tpu.vector_store %arg12[%c24_113, %c0_114], %267 {strides = array<i32>} : memref<64x256xf32, #tpu.memory_space<vmem>>, vector<8x128xf32>,
    %c32_115 = arith.constant 32 : index
    %c128_116 = arith.constant 128 : index
    %300 = vector.load %arg12[%c32_115, %c128_116] : memref<64x256xf32, #tpu.memory_space<vmem>>, vector<8x128xf32>
    tpu.vector_store %arg12[%c32_115, %c128_116], %298 {strides = array<i32>} : memref<64x256xf32, #tpu.memory_space<vmem>>, vector<8x128xf32>,
    %301 = tpu.concatenate %267, %298 in 0 : vector<8x128xf32>, vector<8x128xf32> -> vector<16x128xf32>
    %302 = arith.truncf %301 : vector<16x128xf32> to vector<16x128xbf16>
    %cst_117 = arith.constant dense<0.000000e+00> : vector<16x1024xf32>
    %303 = tpu.matmul %302, %13, %cst_117 {dimension_numbers = #tpu.dot_dimension_numbers<[1], [0], [0], [1], [0, 0, 1, 1], [], []>} : vector<16x128xbf16>, vector<128x1024xbf16>, vector<16x1024xf32> -> vector<16x1024xf32>
    %c32_118 = arith.constant 32 : index
    %c0_119 = arith.constant 0 : index
    %304 = vector.load %arg10[%c32_118, %c0_119] : memref<64x512xf32, #tpu.memory_space<vmem>>, vector<8x512xf32>
    %305 = vector.extract_strided_slice %303 {offsets = [0, 0], sizes = [8, 512], strides = [1, 1]} : vector<16x1024xf32> to vector<8x512xf32>
    %306 = arith.addf %304, %305 : vector<8x512xf32>
    %c24_120 = arith.constant 24 : index
    %c0_121 = arith.constant 0 : index
    %307 = vector.load %arg11[%c24_120, %c0_121] : memref<64x512xf32, #tpu.memory_space<vmem>>, vector<8x512xf32>
    %308 = vector.extract_strided_slice %303 {offsets = [8, 512], sizes = [8, 512], strides = [1, 1]} : vector<16x1024xf32> to vector<8x512xf32>
    %309 = arith.addf %307, %308 : vector<8x512xf32>
    %310 = vector.extract_strided_slice %306 {offsets = [0, 0], sizes = [8, 128], strides = [1, 1]} : vector<8x512xf32> to vector<8x128xf32>
    %cst_122 = arith.constant 5.000000e-01 : f32
    %311 = vector.broadcast %cst_122 : f32 to vector<8x128xf32>
    %312 = arith.mulf %311, %310 : vector<8x128xf32>
    %313 = math.tanh %312 : vector<8x128xf32>
    %cst_123 = arith.constant 1.000000e+00 : f32
    %314 = vector.broadcast %cst_123 : f32 to vector<8x128xf32>
    %315 = arith.addf %313, %314 : vector<8x128xf32>
    %cst_124 = arith.constant 5.000000e-01 : f32
    %316 = vector.broadcast %cst_124 : f32 to vector<8x128xf32>
    %317 = arith.mulf %316, %315 : vector<8x128xf32>
    %318 = vector.extract_strided_slice %306 {offsets = [0, 128], sizes = [8, 128], strides = [1, 1]} : vector<8x512xf32> to vector<8x128xf32>
    %cst_125 = arith.constant 5.000000e-01 : f32
    %319 = vector.broadcast %cst_125 : f32 to vector<8x128xf32>
    %320 = arith.mulf %319, %318 : vector<8x128xf32>
    %321 = math.tanh %320 : vector<8x128xf32>
    %cst_126 = arith.constant 1.000000e+00 : f32
    %322 = vector.broadcast %cst_126 : f32 to vector<8x128xf32>
    %323 = arith.addf %321, %322 : vector<8x128xf32>
    %cst_127 = arith.constant 5.000000e-01 : f32
    %324 = vector.broadcast %cst_127 : f32 to vector<8x128xf32>
    %325 = arith.mulf %324, %323 : vector<8x128xf32>
    %326 = vector.extract_strided_slice %306 {offsets = [0, 256], sizes = [8, 128], strides = [1, 1]} : vector<8x512xf32> to vector<8x128xf32>
    %327 = math.tanh %326 : vector<8x128xf32>
    %328 = vector.extract_strided_slice %306 {offsets = [0, 384], sizes = [8, 128], strides = [1, 1]} : vector<8x512xf32> to vector<8x128xf32>
    %cst_128 = arith.constant 5.000000e-01 : f32
    %329 = vector.broadcast %cst_128 : f32 to vector<8x128xf32>
    %330 = arith.mulf %329, %328 : vector<8x128xf32>
    %331 = math.tanh %330 : vector<8x128xf32>
    %cst_129 = arith.constant 1.000000e+00 : f32
    %332 = vector.broadcast %cst_129 : f32 to vector<8x128xf32>
    %333 = arith.addf %331, %332 : vector<8x128xf32>
    %cst_130 = arith.constant 5.000000e-01 : f32
    %334 = vector.broadcast %cst_130 : f32 to vector<8x128xf32>
    %335 = arith.mulf %334, %333 : vector<8x128xf32>
    %336 = arith.mulf %325, %265 : vector<8x128xf32>
    %337 = arith.mulf %317, %327 : vector<8x128xf32>
    %338 = arith.addf %336, %337 : vector<8x128xf32>
    %339 = math.tanh %338 : vector<8x128xf32>
    %340 = arith.mulf %335, %339 : vector<8x128xf32>
    %341 = vector.extract_strided_slice %309 {offsets = [0, 0], sizes = [8, 128], strides = [1, 1]} : vector<8x512xf32> to vector<8x128xf32>
    %cst_131 = arith.constant 5.000000e-01 : f32
    %342 = vector.broadcast %cst_131 : f32 to vector<8x128xf32>
    %343 = arith.mulf %342, %341 : vector<8x128xf32>
    %344 = math.tanh %343 : vector<8x128xf32>
    %cst_132 = arith.constant 1.000000e+00 : f32
    %345 = vector.broadcast %cst_132 : f32 to vector<8x128xf32>
    %346 = arith.addf %344, %345 : vector<8x128xf32>
    %cst_133 = arith.constant 5.000000e-01 : f32
    %347 = vector.broadcast %cst_133 : f32 to vector<8x128xf32>
    %348 = arith.mulf %347, %346 : vector<8x128xf32>
    %349 = vector.extract_strided_slice %309 {offsets = [0, 128], sizes = [8, 128], strides = [1, 1]} : vector<8x512xf32> to vector<8x128xf32>
    %cst_134 = arith.constant 5.000000e-01 : f32
    %350 = vector.broadcast %cst_134 : f32 to vector<8x128xf32>
    %351 = arith.mulf %350, %349 : vector<8x128xf32>
    %352 = math.tanh %351 : vector<8x128xf32>
    %cst_135 = arith.constant 1.000000e+00 : f32
    %353 = vector.broadcast %cst_135 : f32 to vector<8x128xf32>
    %354 = arith.addf %352, %353 : vector<8x128xf32>
    %cst_136 = arith.constant 5.000000e-01 : f32
    %355 = vector.broadcast %cst_136 : f32 to vector<8x128xf32>
    %356 = arith.mulf %355, %354 : vector<8x128xf32>
    %357 = vector.extract_strided_slice %309 {offsets = [0, 256], sizes = [8, 128], strides = [1, 1]} : vector<8x512xf32> to vector<8x128xf32>
    %358 = math.tanh %357 : vector<8x128xf32>
    %359 = vector.extract_strided_slice %309 {offsets = [0, 384], sizes = [8, 128], strides = [1, 1]} : vector<8x512xf32> to vector<8x128xf32>
    %cst_137 = arith.constant 5.000000e-01 : f32
    %360 = vector.broadcast %cst_137 : f32 to vector<8x128xf32>
    %361 = arith.mulf %360, %359 : vector<8x128xf32>
    %362 = math.tanh %361 : vector<8x128xf32>
    %cst_138 = arith.constant 1.000000e+00 : f32
    %363 = vector.broadcast %cst_138 : f32 to vector<8x128xf32>
    %364 = arith.addf %362, %363 : vector<8x128xf32>
    %cst_139 = arith.constant 5.000000e-01 : f32
    %365 = vector.broadcast %cst_139 : f32 to vector<8x128xf32>
    %366 = arith.mulf %365, %364 : vector<8x128xf32>
    %367 = arith.mulf %356, %296 : vector<8x128xf32>
    %368 = arith.mulf %348, %358 : vector<8x128xf32>
    %369 = arith.addf %367, %368 : vector<8x128xf32>
    %370 = math.tanh %369 : vector<8x128xf32>
    %371 = arith.mulf %366, %370 : vector<8x128xf32>
    %c32_140 = arith.constant 32 : index
    %c0_141 = arith.constant 0 : index
    %372 = vector.load %arg12[%c32_140, %c0_141] : memref<64x256xf32, #tpu.memory_space<vmem>>, vector<8x128xf32>
    tpu.vector_store %arg12[%c32_140, %c0_141], %340 {strides = array<i32>} : memref<64x256xf32, #tpu.memory_space<vmem>>, vector<8x128xf32>,
    %c24_142 = arith.constant 24 : index
    %c128_143 = arith.constant 128 : index
    %373 = vector.load %arg12[%c24_142, %c128_143] : memref<64x256xf32, #tpu.memory_space<vmem>>, vector<8x128xf32>
    tpu.vector_store %arg12[%c24_142, %c128_143], %371 {strides = array<i32>} : memref<64x256xf32, #tpu.memory_space<vmem>>, vector<8x128xf32>,
    %374 = tpu.concatenate %340, %371 in 0 : vector<8x128xf32>, vector<8x128xf32> -> vector<16x128xf32>
    %375 = arith.truncf %374 : vector<16x128xf32> to vector<16x128xbf16>
    %cst_144 = arith.constant dense<0.000000e+00> : vector<16x1024xf32>
    %376 = tpu.matmul %375, %13, %cst_144 {dimension_numbers = #tpu.dot_dimension_numbers<[1], [0], [0], [1], [0, 0, 1, 1], [], []>} : vector<16x128xbf16>, vector<128x1024xbf16>, vector<16x1024xf32> -> vector<16x1024xf32>
    %c40_145 = arith.constant 40 : index
    %c0_146 = arith.constant 0 : index
    %377 = vector.load %arg10[%c40_145, %c0_146] : memref<64x512xf32, #tpu.memory_space<vmem>>, vector<8x512xf32>
    %378 = vector.extract_strided_slice %376 {offsets = [0, 0], sizes = [8, 512], strides = [1, 1]} : vector<16x1024xf32> to vector<8x512xf32>
    %379 = arith.addf %377, %378 : vector<8x512xf32>
    %c16_147 = arith.constant 16 : index
    %c0_148 = arith.constant 0 : index
    %380 = vector.load %arg11[%c16_147, %c0_148] : memref<64x512xf32, #tpu.memory_space<vmem>>, vector<8x512xf32>
    %381 = vector.extract_strided_slice %376 {offsets = [8, 512], sizes = [8, 512], strides = [1, 1]} : vector<16x1024xf32> to vector<8x512xf32>
    %382 = arith.addf %380, %381 : vector<8x512xf32>
    %383 = vector.extract_strided_slice %379 {offsets = [0, 0], sizes = [8, 128], strides = [1, 1]} : vector<8x512xf32> to vector<8x128xf32>
    %cst_149 = arith.constant 5.000000e-01 : f32
    %384 = vector.broadcast %cst_149 : f32 to vector<8x128xf32>
    %385 = arith.mulf %384, %383 : vector<8x128xf32>
    %386 = math.tanh %385 : vector<8x128xf32>
    %cst_150 = arith.constant 1.000000e+00 : f32
    %387 = vector.broadcast %cst_150 : f32 to vector<8x128xf32>
    %388 = arith.addf %386, %387 : vector<8x128xf32>
    %cst_151 = arith.constant 5.000000e-01 : f32
    %389 = vector.broadcast %cst_151 : f32 to vector<8x128xf32>
    %390 = arith.mulf %389, %388 : vector<8x128xf32>
    %391 = vector.extract_strided_slice %379 {offsets = [0, 128], sizes = [8, 128], strides = [1, 1]} : vector<8x512xf32> to vector<8x128xf32>
    %cst_152 = arith.constant 5.000000e-01 : f32
    %392 = vector.broadcast %cst_152 : f32 to vector<8x128xf32>
    %393 = arith.mulf %392, %391 : vector<8x128xf32>
    %394 = math.tanh %393 : vector<8x128xf32>
    %cst_153 = arith.constant 1.000000e+00 : f32
    %395 = vector.broadcast %cst_153 : f32 to vector<8x128xf32>
    %396 = arith.addf %394, %395 : vector<8x128xf32>
    %cst_154 = arith.constant 5.000000e-01 : f32
    %397 = vector.broadcast %cst_154 : f32 to vector<8x128xf32>
    %398 = arith.mulf %397, %396 : vector<8x128xf32>
    %399 = vector.extract_strided_slice %379 {offsets = [0, 256], sizes = [8, 128], strides = [1, 1]} : vector<8x512xf32> to vector<8x128xf32>
    %400 = math.tanh %399 : vector<8x128xf32>
    %401 = vector.extract_strided_slice %379 {offsets = [0, 384], sizes = [8, 128], strides = [1, 1]} : vector<8x512xf32> to vector<8x128xf32>
    %cst_155 = arith.constant 5.000000e-01 : f32
    %402 = vector.broadcast %cst_155 : f32 to vector<8x128xf32>
    %403 = arith.mulf %402, %401 : vector<8x128xf32>
    %404 = math.tanh %403 : vector<8x128xf32>
    %cst_156 = arith.constant 1.000000e+00 : f32
    %405 = vector.broadcast %cst_156 : f32 to vector<8x128xf32>
    %406 = arith.addf %404, %405 : vector<8x128xf32>
    %cst_157 = arith.constant 5.000000e-01 : f32
    %407 = vector.broadcast %cst_157 : f32 to vector<8x128xf32>
    %408 = arith.mulf %407, %406 : vector<8x128xf32>
    %409 = arith.mulf %398, %338 : vector<8x128xf32>
    %410 = arith.mulf %390, %400 : vector<8x128xf32>
    %411 = arith.addf %409, %410 : vector<8x128xf32>
    %412 = math.tanh %411 : vector<8x128xf32>
    %413 = arith.mulf %408, %412 : vector<8x128xf32>
    %414 = vector.extract_strided_slice %382 {offsets = [0, 0], sizes = [8, 128], strides = [1, 1]} : vector<8x512xf32> to vector<8x128xf32>
    %cst_158 = arith.constant 5.000000e-01 : f32
    %415 = vector.broadcast %cst_158 : f32 to vector<8x128xf32>
    %416 = arith.mulf %415, %414 : vector<8x128xf32>
    %417 = math.tanh %416 : vector<8x128xf32>
    %cst_159 = arith.constant 1.000000e+00 : f32
    %418 = vector.broadcast %cst_159 : f32 to vector<8x128xf32>
    %419 = arith.addf %417, %418 : vector<8x128xf32>
    %cst_160 = arith.constant 5.000000e-01 : f32
    %420 = vector.broadcast %cst_160 : f32 to vector<8x128xf32>
    %421 = arith.mulf %420, %419 : vector<8x128xf32>
    %422 = vector.extract_strided_slice %382 {offsets = [0, 128], sizes = [8, 128], strides = [1, 1]} : vector<8x512xf32> to vector<8x128xf32>
    %cst_161 = arith.constant 5.000000e-01 : f32
    %423 = vector.broadcast %cst_161 : f32 to vector<8x128xf32>
    %424 = arith.mulf %423, %422 : vector<8x128xf32>
    %425 = math.tanh %424 : vector<8x128xf32>
    %cst_162 = arith.constant 1.000000e+00 : f32
    %426 = vector.broadcast %cst_162 : f32 to vector<8x128xf32>
    %427 = arith.addf %425, %426 : vector<8x128xf32>
    %cst_163 = arith.constant 5.000000e-01 : f32
    %428 = vector.broadcast %cst_163 : f32 to vector<8x128xf32>
    %429 = arith.mulf %428, %427 : vector<8x128xf32>
    %430 = vector.extract_strided_slice %382 {offsets = [0, 256], sizes = [8, 128], strides = [1, 1]} : vector<8x512xf32> to vector<8x128xf32>
    %431 = math.tanh %430 : vector<8x128xf32>
    %432 = vector.extract_strided_slice %382 {offsets = [0, 384], sizes = [8, 128], strides = [1, 1]} : vector<8x512xf32> to vector<8x128xf32>
    %cst_164 = arith.constant 5.000000e-01 : f32
    %433 = vector.broadcast %cst_164 : f32 to vector<8x128xf32>
    %434 = arith.mulf %433, %432 : vector<8x128xf32>
    %435 = math.tanh %434 : vector<8x128xf32>
    %cst_165 = arith.constant 1.000000e+00 : f32
    %436 = vector.broadcast %cst_165 : f32 to vector<8x128xf32>
    %437 = arith.addf %435, %436 : vector<8x128xf32>
    %cst_166 = arith.constant 5.000000e-01 : f32
    %438 = vector.broadcast %cst_166 : f32 to vector<8x128xf32>
    %439 = arith.mulf %438, %437 : vector<8x128xf32>
    %440 = arith.mulf %429, %369 : vector<8x128xf32>
    %441 = arith.mulf %421, %431 : vector<8x128xf32>
    %442 = arith.addf %440, %441 : vector<8x128xf32>
    %443 = math.tanh %442 : vector<8x128xf32>
    %444 = arith.mulf %439, %443 : vector<8x128xf32>
    %c40_167 = arith.constant 40 : index
    %c0_168 = arith.constant 0 : index
    %445 = vector.load %arg12[%c40_167, %c0_168] : memref<64x256xf32, #tpu.memory_space<vmem>>, vector<8x128xf32>
    tpu.vector_store %arg12[%c40_167, %c0_168], %413 {strides = array<i32>} : memref<64x256xf32, #tpu.memory_space<vmem>>, vector<8x128xf32>,
    %c16_169 = arith.constant 16 : index
    %c128_170 = arith.constant 128 : index
    %446 = vector.load %arg12[%c16_169, %c128_170] : memref<64x256xf32, #tpu.memory_space<vmem>>, vector<8x128xf32>
    tpu.vector_store %arg12[%c16_169, %c128_170], %444 {strides = array<i32>} : memref<64x256xf32, #tpu.memory_space<vmem>>, vector<8x128xf32>,
    %447 = tpu.concatenate %413, %444 in 0 : vector<8x128xf32>, vector<8x128xf32> -> vector<16x128xf32>
    %448 = arith.truncf %447 : vector<16x128xf32> to vector<16x128xbf16>
    %cst_171 = arith.constant dense<0.000000e+00> : vector<16x1024xf32>
    %449 = tpu.matmul %448, %13, %cst_171 {dimension_numbers = #tpu.dot_dimension_numbers<[1], [0], [0], [1], [0, 0, 1, 1], [], []>} : vector<16x128xbf16>, vector<128x1024xbf16>, vector<16x1024xf32> -> vector<16x1024xf32>
    %c48_172 = arith.constant 48 : index
    %c0_173 = arith.constant 0 : index
    %450 = vector.load %arg10[%c48_172, %c0_173] : memref<64x512xf32, #tpu.memory_space<vmem>>, vector<8x512xf32>
    %451 = vector.extract_strided_slice %449 {offsets = [0, 0], sizes = [8, 512], strides = [1, 1]} : vector<16x1024xf32> to vector<8x512xf32>
    %452 = arith.addf %450, %451 : vector<8x512xf32>
    %c8_174 = arith.constant 8 : index
    %c0_175 = arith.constant 0 : index
    %453 = vector.load %arg11[%c8_174, %c0_175] : memref<64x512xf32, #tpu.memory_space<vmem>>, vector<8x512xf32>
    %454 = vector.extract_strided_slice %449 {offsets = [8, 512], sizes = [8, 512], strides = [1, 1]} : vector<16x1024xf32> to vector<8x512xf32>
    %455 = arith.addf %453, %454 : vector<8x512xf32>
    %456 = vector.extract_strided_slice %452 {offsets = [0, 0], sizes = [8, 128], strides = [1, 1]} : vector<8x512xf32> to vector<8x128xf32>
    %cst_176 = arith.constant 5.000000e-01 : f32
    %457 = vector.broadcast %cst_176 : f32 to vector<8x128xf32>
    %458 = arith.mulf %457, %456 : vector<8x128xf32>
    %459 = math.tanh %458 : vector<8x128xf32>
    %cst_177 = arith.constant 1.000000e+00 : f32
    %460 = vector.broadcast %cst_177 : f32 to vector<8x128xf32>
    %461 = arith.addf %459, %460 : vector<8x128xf32>
    %cst_178 = arith.constant 5.000000e-01 : f32
    %462 = vector.broadcast %cst_178 : f32 to vector<8x128xf32>
    %463 = arith.mulf %462, %461 : vector<8x128xf32>
    %464 = vector.extract_strided_slice %452 {offsets = [0, 128], sizes = [8, 128], strides = [1, 1]} : vector<8x512xf32> to vector<8x128xf32>
    %cst_179 = arith.constant 5.000000e-01 : f32
    %465 = vector.broadcast %cst_179 : f32 to vector<8x128xf32>
    %466 = arith.mulf %465, %464 : vector<8x128xf32>
    %467 = math.tanh %466 : vector<8x128xf32>
    %cst_180 = arith.constant 1.000000e+00 : f32
    %468 = vector.broadcast %cst_180 : f32 to vector<8x128xf32>
    %469 = arith.addf %467, %468 : vector<8x128xf32>
    %cst_181 = arith.constant 5.000000e-01 : f32
    %470 = vector.broadcast %cst_181 : f32 to vector<8x128xf32>
    %471 = arith.mulf %470, %469 : vector<8x128xf32>
    %472 = vector.extract_strided_slice %452 {offsets = [0, 256], sizes = [8, 128], strides = [1, 1]} : vector<8x512xf32> to vector<8x128xf32>
    %473 = math.tanh %472 : vector<8x128xf32>
    %474 = vector.extract_strided_slice %452 {offsets = [0, 384], sizes = [8, 128], strides = [1, 1]} : vector<8x512xf32> to vector<8x128xf32>
    %cst_182 = arith.constant 5.000000e-01 : f32
    %475 = vector.broadcast %cst_182 : f32 to vector<8x128xf32>
    %476 = arith.mulf %475, %474 : vector<8x128xf32>
    %477 = math.tanh %476 : vector<8x128xf32>
    %cst_183 = arith.constant 1.000000e+00 : f32
    %478 = vector.broadcast %cst_183 : f32 to vector<8x128xf32>
    %479 = arith.addf %477, %478 : vector<8x128xf32>
    %cst_184 = arith.constant 5.000000e-01 : f32
    %480 = vector.broadcast %cst_184 : f32 to vector<8x128xf32>
    %481 = arith.mulf %480, %479 : vector<8x128xf32>
    %482 = arith.mulf %471, %411 : vector<8x128xf32>
    %483 = arith.mulf %463, %473 : vector<8x128xf32>
    %484 = arith.addf %482, %483 : vector<8x128xf32>
    %485 = math.tanh %484 : vector<8x128xf32>
    %486 = arith.mulf %481, %485 : vector<8x128xf32>
    %487 = vector.extract_strided_slice %455 {offsets = [0, 0], sizes = [8, 128], strides = [1, 1]} : vector<8x512xf32> to vector<8x128xf32>
    %cst_185 = arith.constant 5.000000e-01 : f32
    %488 = vector.broadcast %cst_185 : f32 to vector<8x128xf32>
    %489 = arith.mulf %488, %487 : vector<8x128xf32>
    %490 = math.tanh %489 : vector<8x128xf32>
    %cst_186 = arith.constant 1.000000e+00 : f32
    %491 = vector.broadcast %cst_186 : f32 to vector<8x128xf32>
    %492 = arith.addf %490, %491 : vector<8x128xf32>
    %cst_187 = arith.constant 5.000000e-01 : f32
    %493 = vector.broadcast %cst_187 : f32 to vector<8x128xf32>
    %494 = arith.mulf %493, %492 : vector<8x128xf32>
    %495 = vector.extract_strided_slice %455 {offsets = [0, 128], sizes = [8, 128], strides = [1, 1]} : vector<8x512xf32> to vector<8x128xf32>
    %cst_188 = arith.constant 5.000000e-01 : f32
    %496 = vector.broadcast %cst_188 : f32 to vector<8x128xf32>
    %497 = arith.mulf %496, %495 : vector<8x128xf32>
    %498 = math.tanh %497 : vector<8x128xf32>
    %cst_189 = arith.constant 1.000000e+00 : f32
    %499 = vector.broadcast %cst_189 : f32 to vector<8x128xf32>
    %500 = arith.addf %498, %499 : vector<8x128xf32>
    %cst_190 = arith.constant 5.000000e-01 : f32
    %501 = vector.broadcast %cst_190 : f32 to vector<8x128xf32>
    %502 = arith.mulf %501, %500 : vector<8x128xf32>
    %503 = vector.extract_strided_slice %455 {offsets = [0, 256], sizes = [8, 128], strides = [1, 1]} : vector<8x512xf32> to vector<8x128xf32>
    %504 = math.tanh %503 : vector<8x128xf32>
    %505 = vector.extract_strided_slice %455 {offsets = [0, 384], sizes = [8, 128], strides = [1, 1]} : vector<8x512xf32> to vector<8x128xf32>
    %cst_191 = arith.constant 5.000000e-01 : f32
    %506 = vector.broadcast %cst_191 : f32 to vector<8x128xf32>
    %507 = arith.mulf %506, %505 : vector<8x128xf32>
    %508 = math.tanh %507 : vector<8x128xf32>
    %cst_192 = arith.constant 1.000000e+00 : f32
    %509 = vector.broadcast %cst_192 : f32 to vector<8x128xf32>
    %510 = arith.addf %508, %509 : vector<8x128xf32>
    %cst_193 = arith.constant 5.000000e-01 : f32
    %511 = vector.broadcast %cst_193 : f32 to vector<8x128xf32>
    %512 = arith.mulf %511, %510 : vector<8x128xf32>
    %513 = arith.mulf %502, %442 : vector<8x128xf32>
    %514 = arith.mulf %494, %504 : vector<8x128xf32>
    %515 = arith.addf %513, %514 : vector<8x128xf32>
    %516 = math.tanh %515 : vector<8x128xf32>
    %517 = arith.mulf %512, %516 : vector<8x128xf32>
    %c48_194 = arith.constant 48 : index
    %c0_195 = arith.constant 0 : index
    %518 = vector.load %arg12[%c48_194, %c0_195] : memref<64x256xf32, #tpu.memory_space<vmem>>, vector<8x128xf32>
    tpu.vector_store %arg12[%c48_194, %c0_195], %486 {strides = array<i32>} : memref<64x256xf32, #tpu.memory_space<vmem>>, vector<8x128xf32>,
    %c8_196 = arith.constant 8 : index
    %c128_197 = arith.constant 128 : index
    %519 = vector.load %arg12[%c8_196, %c128_197] : memref<64x256xf32, #tpu.memory_space<vmem>>, vector<8x128xf32>
    tpu.vector_store %arg12[%c8_196, %c128_197], %517 {strides = array<i32>} : memref<64x256xf32, #tpu.memory_space<vmem>>, vector<8x128xf32>,
    %520 = tpu.concatenate %486, %517 in 0 : vector<8x128xf32>, vector<8x128xf32> -> vector<16x128xf32>
    %521 = arith.truncf %520 : vector<16x128xf32> to vector<16x128xbf16>
    %cst_198 = arith.constant dense<0.000000e+00> : vector<16x1024xf32>
    %522 = tpu.matmul %521, %13, %cst_198 {dimension_numbers = #tpu.dot_dimension_numbers<[1], [0], [0], [1], [0, 0, 1, 1], [], []>} : vector<16x128xbf16>, vector<128x1024xbf16>, vector<16x1024xf32> -> vector<16x1024xf32>
    %c56_199 = arith.constant 56 : index
    %c0_200 = arith.constant 0 : index
    %523 = vector.load %arg10[%c56_199, %c0_200] : memref<64x512xf32, #tpu.memory_space<vmem>>, vector<8x512xf32>
    %524 = vector.extract_strided_slice %522 {offsets = [0, 0], sizes = [8, 512], strides = [1, 1]} : vector<16x1024xf32> to vector<8x512xf32>
    %525 = arith.addf %523, %524 : vector<8x512xf32>
    %c0_201 = arith.constant 0 : index
    %c0_202 = arith.constant 0 : index
    %526 = vector.load %arg11[%c0_201, %c0_202] : memref<64x512xf32, #tpu.memory_space<vmem>>, vector<8x512xf32>
    %527 = vector.extract_strided_slice %522 {offsets = [8, 512], sizes = [8, 512], strides = [1, 1]} : vector<16x1024xf32> to vector<8x512xf32>
    %528 = arith.addf %526, %527 : vector<8x512xf32>
    %529 = vector.extract_strided_slice %525 {offsets = [0, 0], sizes = [8, 128], strides = [1, 1]} : vector<8x512xf32> to vector<8x128xf32>
    %cst_203 = arith.constant 5.000000e-01 : f32
    %530 = vector.broadcast %cst_203 : f32 to vector<8x128xf32>
    %531 = arith.mulf %530, %529 : vector<8x128xf32>
    %532 = math.tanh %531 : vector<8x128xf32>
    %cst_204 = arith.constant 1.000000e+00 : f32
    %533 = vector.broadcast %cst_204 : f32 to vector<8x128xf32>
    %534 = arith.addf %532, %533 : vector<8x128xf32>
    %cst_205 = arith.constant 5.000000e-01 : f32
    %535 = vector.broadcast %cst_205 : f32 to vector<8x128xf32>
    %536 = arith.mulf %535, %534 : vector<8x128xf32>
    %537 = vector.extract_strided_slice %525 {offsets = [0, 128], sizes = [8, 128], strides = [1, 1]} : vector<8x512xf32> to vector<8x128xf32>
    %cst_206 = arith.constant 5.000000e-01 : f32
    %538 = vector.broadcast %cst_206 : f32 to vector<8x128xf32>
    %539 = arith.mulf %538, %537 : vector<8x128xf32>
    %540 = math.tanh %539 : vector<8x128xf32>
    %cst_207 = arith.constant 1.000000e+00 : f32
    %541 = vector.broadcast %cst_207 : f32 to vector<8x128xf32>
    %542 = arith.addf %540, %541 : vector<8x128xf32>
    %cst_208 = arith.constant 5.000000e-01 : f32
    %543 = vector.broadcast %cst_208 : f32 to vector<8x128xf32>
    %544 = arith.mulf %543, %542 : vector<8x128xf32>
    %545 = vector.extract_strided_slice %525 {offsets = [0, 256], sizes = [8, 128], strides = [1, 1]} : vector<8x512xf32> to vector<8x128xf32>
    %546 = math.tanh %545 : vector<8x128xf32>
    %547 = vector.extract_strided_slice %525 {offsets = [0, 384], sizes = [8, 128], strides = [1, 1]} : vector<8x512xf32> to vector<8x128xf32>
    %cst_209 = arith.constant 5.000000e-01 : f32
    %548 = vector.broadcast %cst_209 : f32 to vector<8x128xf32>
    %549 = arith.mulf %548, %547 : vector<8x128xf32>
    %550 = math.tanh %549 : vector<8x128xf32>
    %cst_210 = arith.constant 1.000000e+00 : f32
    %551 = vector.broadcast %cst_210 : f32 to vector<8x128xf32>
    %552 = arith.addf %550, %551 : vector<8x128xf32>
    %cst_211 = arith.constant 5.000000e-01 : f32
    %553 = vector.broadcast %cst_211 : f32 to vector<8x128xf32>
    %554 = arith.mulf %553, %552 : vector<8x128xf32>
    %555 = arith.mulf %544, %484 : vector<8x128xf32>
    %556 = arith.mulf %536, %546 : vector<8x128xf32>
    %557 = arith.addf %555, %556 : vector<8x128xf32>
    %558 = math.tanh %557 : vector<8x128xf32>
    %559 = arith.mulf %554, %558 : vector<8x128xf32>
    %560 = vector.extract_strided_slice %528 {offsets = [0, 0], sizes = [8, 128], strides = [1, 1]} : vector<8x512xf32> to vector<8x128xf32>
    %cst_212 = arith.constant 5.000000e-01 : f32
    %561 = vector.broadcast %cst_212 : f32 to vector<8x128xf32>
    %562 = arith.mulf %561, %560 : vector<8x128xf32>
    %563 = math.tanh %562 : vector<8x128xf32>
    %cst_213 = arith.constant 1.000000e+00 : f32
    %564 = vector.broadcast %cst_213 : f32 to vector<8x128xf32>
    %565 = arith.addf %563, %564 : vector<8x128xf32>
    %cst_214 = arith.constant 5.000000e-01 : f32
    %566 = vector.broadcast %cst_214 : f32 to vector<8x128xf32>
    %567 = arith.mulf %566, %565 : vector<8x128xf32>
    %568 = vector.extract_strided_slice %528 {offsets = [0, 128], sizes = [8, 128], strides = [1, 1]} : vector<8x512xf32> to vector<8x128xf32>
    %cst_215 = arith.constant 5.000000e-01 : f32
    %569 = vector.broadcast %cst_215 : f32 to vector<8x128xf32>
    %570 = arith.mulf %569, %568 : vector<8x128xf32>
    %571 = math.tanh %570 : vector<8x128xf32>
    %cst_216 = arith.constant 1.000000e+00 : f32
    %572 = vector.broadcast %cst_216 : f32 to vector<8x128xf32>
    %573 = arith.addf %571, %572 : vector<8x128xf32>
    %cst_217 = arith.constant 5.000000e-01 : f32
    %574 = vector.broadcast %cst_217 : f32 to vector<8x128xf32>
    %575 = arith.mulf %574, %573 : vector<8x128xf32>
    %576 = vector.extract_strided_slice %528 {offsets = [0, 256], sizes = [8, 128], strides = [1, 1]} : vector<8x512xf32> to vector<8x128xf32>
    %577 = math.tanh %576 : vector<8x128xf32>
    %578 = vector.extract_strided_slice %528 {offsets = [0, 384], sizes = [8, 128], strides = [1, 1]} : vector<8x512xf32> to vector<8x128xf32>
    %cst_218 = arith.constant 5.000000e-01 : f32
    %579 = vector.broadcast %cst_218 : f32 to vector<8x128xf32>
    %580 = arith.mulf %579, %578 : vector<8x128xf32>
    %581 = math.tanh %580 : vector<8x128xf32>
    %cst_219 = arith.constant 1.000000e+00 : f32
    %582 = vector.broadcast %cst_219 : f32 to vector<8x128xf32>
    %583 = arith.addf %581, %582 : vector<8x128xf32>
    %cst_220 = arith.constant 5.000000e-01 : f32
    %584 = vector.broadcast %cst_220 : f32 to vector<8x128xf32>
    %585 = arith.mulf %584, %583 : vector<8x128xf32>
    %586 = arith.mulf %575, %515 : vector<8x128xf32>
    %587 = arith.mulf %567, %577 : vector<8x128xf32>
    %588 = arith.addf %586, %587 : vector<8x128xf32>
    %589 = math.tanh %588 : vector<8x128xf32>
    %590 = arith.mulf %585, %589 : vector<8x128xf32>
    %c56_221 = arith.constant 56 : index
    %c0_222 = arith.constant 0 : index
    %591 = vector.load %arg12[%c56_221, %c0_222] : memref<64x256xf32, #tpu.memory_space<vmem>>, vector<8x128xf32>
    tpu.vector_store %arg12[%c56_221, %c0_222], %559 {strides = array<i32>} : memref<64x256xf32, #tpu.memory_space<vmem>>, vector<8x128xf32>,
    %c0_223 = arith.constant 0 : index
    %c128_224 = arith.constant 128 : index
    %592 = vector.load %arg12[%c0_223, %c128_224] : memref<64x256xf32, #tpu.memory_space<vmem>>, vector<8x128xf32>
    tpu.vector_store %arg12[%c0_223, %c128_224], %590 {strides = array<i32>} : memref<64x256xf32, #tpu.memory_space<vmem>>, vector<8x128xf32>,
    %c0_225 = arith.constant 0 : index
    %c0_226 = arith.constant 0 : index
    %593 = vector.load %arg13[%c0_225, %c0_226] : memref<16x128xf32, #tpu.memory_space<vmem>>, vector<8x128xf32>
    tpu.vector_store %arg13[%c0_225, %c0_226], %557 {strides = array<i32>} : memref<16x128xf32, #tpu.memory_space<vmem>>, vector<8x128xf32>,
    %c8_227 = arith.constant 8 : index
    %c0_228 = arith.constant 0 : index
    %594 = vector.load %arg13[%c8_227, %c0_228] : memref<16x128xf32, #tpu.memory_space<vmem>>, vector<8x128xf32>
    tpu.vector_store %arg13[%c8_227, %c0_228], %588 {strides = array<i32>} : memref<16x128xf32, #tpu.memory_space<vmem>>, vector<8x128xf32>,
    %c0_229 = arith.constant 0 : index
    %c0_230 = arith.constant 0 : index
    %595 = tpu.strided_load %arg13[%c0_229, %c0_230] {strides = array<i32: 2, 1>} : memref<16x128xf32, #tpu.memory_space<vmem>>, vector<8x128xf32>
    %c1 = arith.constant 1 : index
    %c0_231 = arith.constant 0 : index
    %596 = tpu.strided_load %arg13[%c1, %c0_231] {strides = array<i32: 2, 1>} : memref<16x128xf32, #tpu.memory_space<vmem>>, vector<8x128xf32>
    %597 = tpu.concatenate %595, %596 in 1 : vector<8x128xf32>, vector<8x128xf32> -> vector<8x256xf32>
    %c0_232 = arith.constant 0 : index
    %c0_233 = arith.constant 0 : index
    %598 = vector.load %arg12[%c0_232, %c0_233] : memref<64x256xf32, #tpu.memory_space<vmem>>, vector<8x256xf32>
    %c8_234 = arith.constant 8 : index
    %c0_235 = arith.constant 0 : index
    %599 = vector.load %arg12[%c8_234, %c0_235] : memref<64x256xf32, #tpu.memory_space<vmem>>, vector<8x256xf32>
    %c16_236 = arith.constant 16 : index
    %c0_237 = arith.constant 0 : index
    %600 = vector.load %arg12[%c16_236, %c0_237] : memref<64x256xf32, #tpu.memory_space<vmem>>, vector<8x256xf32>
    %c24_238 = arith.constant 24 : index
    %c0_239 = arith.constant 0 : index
    %601 = vector.load %arg12[%c24_238, %c0_239] : memref<64x256xf32, #tpu.memory_space<vmem>>, vector<8x256xf32>
    %c32_240 = arith.constant 32 : index
    %c0_241 = arith.constant 0 : index
    %602 = vector.load %arg12[%c32_240, %c0_241] : memref<64x256xf32, #tpu.memory_space<vmem>>, vector<8x256xf32>
    %c40_242 = arith.constant 40 : index
    %c0_243 = arith.constant 0 : index
    %603 = vector.load %arg12[%c40_242, %c0_243] : memref<64x256xf32, #tpu.memory_space<vmem>>, vector<8x256xf32>
    %c48_244 = arith.constant 48 : index
    %c0_245 = arith.constant 0 : index
    %604 = vector.load %arg12[%c48_244, %c0_245] : memref<64x256xf32, #tpu.memory_space<vmem>>, vector<8x256xf32>
    %c56_246 = arith.constant 56 : index
    %c0_247 = arith.constant 0 : index
    %605 = vector.load %arg12[%c56_246, %c0_247] : memref<64x256xf32, #tpu.memory_space<vmem>>, vector<8x256xf32>
    %606 = arith.mulf %598, %597 : vector<8x256xf32>
    %cst_248 = arith.constant dense<0.000000e+00> : vector<8xf32>
    %607 = vector.multi_reduction <add>, %606, %cst_248 [1] : vector<8x256xf32> to vector<8xf32>
    %608 = vector.shape_cast %607 : vector<8xf32> to vector<8x1xf32>
    %609 = arith.mulf %599, %597 : vector<8x256xf32>
    %cst_249 = arith.constant dense<0.000000e+00> : vector<8xf32>
    %610 = vector.multi_reduction <add>, %609, %cst_249 [1] : vector<8x256xf32> to vector<8xf32>
    %611 = vector.shape_cast %610 : vector<8xf32> to vector<8x1xf32>
    %612 = arith.mulf %600, %597 : vector<8x256xf32>
    %cst_250 = arith.constant dense<0.000000e+00> : vector<8xf32>
    %613 = vector.multi_reduction <add>, %612, %cst_250 [1] : vector<8x256xf32> to vector<8xf32>
    %614 = vector.shape_cast %613 : vector<8xf32> to vector<8x1xf32>
    %615 = arith.mulf %601, %597 : vector<8x256xf32>
    %cst_251 = arith.constant dense<0.000000e+00> : vector<8xf32>
    %616 = vector.multi_reduction <add>, %615, %cst_251 [1] : vector<8x256xf32> to vector<8xf32>
    %617 = vector.shape_cast %616 : vector<8xf32> to vector<8x1xf32>
    %618 = arith.mulf %602, %597 : vector<8x256xf32>
    %cst_252 = arith.constant dense<0.000000e+00> : vector<8xf32>
    %619 = vector.multi_reduction <add>, %618, %cst_252 [1] : vector<8x256xf32> to vector<8xf32>
    %620 = vector.shape_cast %619 : vector<8xf32> to vector<8x1xf32>
    %621 = arith.mulf %603, %597 : vector<8x256xf32>
    %cst_253 = arith.constant dense<0.000000e+00> : vector<8xf32>
    %622 = vector.multi_reduction <add>, %621, %cst_253 [1] : vector<8x256xf32> to vector<8xf32>
    %623 = vector.shape_cast %622 : vector<8xf32> to vector<8x1xf32>
    %624 = arith.mulf %604, %597 : vector<8x256xf32>
    %cst_254 = arith.constant dense<0.000000e+00> : vector<8xf32>
    %625 = vector.multi_reduction <add>, %624, %cst_254 [1] : vector<8x256xf32> to vector<8xf32>
    %626 = vector.shape_cast %625 : vector<8xf32> to vector<8x1xf32>
    %627 = arith.mulf %605, %597 : vector<8x256xf32>
    %cst_255 = arith.constant dense<0.000000e+00> : vector<8xf32>
    %628 = vector.multi_reduction <add>, %627, %cst_255 [1] : vector<8x256xf32> to vector<8xf32>
    %629 = vector.shape_cast %628 : vector<8xf32> to vector<8x1xf32>
    %630 = arith.maximumf %608, %611 : vector<8x1xf32>
    %631 = arith.maximumf %630, %614 : vector<8x1xf32>
    %632 = arith.maximumf %631, %617 : vector<8x1xf32>
    %633 = arith.maximumf %632, %620 : vector<8x1xf32>
    %634 = arith.maximumf %633, %623 : vector<8x1xf32>
    %635 = arith.maximumf %634, %626 : vector<8x1xf32>
    %636 = arith.maximumf %635, %629 : vector<8x1xf32>
    %637 = arith.subf %608, %636 : vector<8x1xf32>
    %638 = math.exp %637 : vector<8x1xf32>
    %639 = arith.subf %611, %636 : vector<8x1xf32>
    %640 = math.exp %639 : vector<8x1xf32>
    %641 = arith.subf %614, %636 : vector<8x1xf32>
    %642 = math.exp %641 : vector<8x1xf32>
    %643 = arith.subf %617, %636 : vector<8x1xf32>
    %644 = math.exp %643 : vector<8x1xf32>
    %645 = arith.subf %620, %636 : vector<8x1xf32>
    %646 = math.exp %645 : vector<8x1xf32>
    %647 = arith.subf %623, %636 : vector<8x1xf32>
    %648 = math.exp %647 : vector<8x1xf32>
    %649 = arith.subf %626, %636 : vector<8x1xf32>
    %650 = math.exp %649 : vector<8x1xf32>
    %651 = arith.subf %629, %636 : vector<8x1xf32>
    %652 = math.exp %651 : vector<8x1xf32>
    %653 = arith.addf %638, %640 : vector<8x1xf32>
    %654 = arith.addf %653, %642 : vector<8x1xf32>
    %655 = arith.addf %654, %644 : vector<8x1xf32>
    %656 = arith.addf %655, %646 : vector<8x1xf32>
    %657 = arith.addf %656, %648 : vector<8x1xf32>
    %658 = arith.addf %657, %650 : vector<8x1xf32>
    %659 = arith.addf %658, %652 : vector<8x1xf32>
    %660 = tpu.reciprocal %659 {approx = true} : vector<8x1xf32> -> vector<8x1xf32>
    %661 = vector.broadcast %638 : vector<8x1xf32> to vector<8x256xf32>
    %662 = arith.mulf %661, %598 : vector<8x256xf32>
    %663 = vector.broadcast %640 : vector<8x1xf32> to vector<8x256xf32>
    %664 = arith.mulf %663, %599 : vector<8x256xf32>
    %665 = arith.addf %662, %664 : vector<8x256xf32>
    %666 = vector.broadcast %642 : vector<8x1xf32> to vector<8x256xf32>
    %667 = arith.mulf %666, %600 : vector<8x256xf32>
    %668 = arith.addf %665, %667 : vector<8x256xf32>
    %669 = vector.broadcast %644 : vector<8x1xf32> to vector<8x256xf32>
    %670 = arith.mulf %669, %601 : vector<8x256xf32>
    %671 = arith.addf %668, %670 : vector<8x256xf32>
    %672 = vector.broadcast %646 : vector<8x1xf32> to vector<8x256xf32>
    %673 = arith.mulf %672, %602 : vector<8x256xf32>
    %674 = arith.addf %671, %673 : vector<8x256xf32>
    %675 = vector.broadcast %648 : vector<8x1xf32> to vector<8x256xf32>
    %676 = arith.mulf %675, %603 : vector<8x256xf32>
    %677 = arith.addf %674, %676 : vector<8x256xf32>
    %678 = vector.broadcast %650 : vector<8x1xf32> to vector<8x256xf32>
    %679 = arith.mulf %678, %604 : vector<8x256xf32>
    %680 = arith.addf %677, %679 : vector<8x256xf32>
    %681 = vector.broadcast %652 : vector<8x1xf32> to vector<8x256xf32>
    %682 = arith.mulf %681, %605 : vector<8x256xf32>
    %683 = arith.addf %680, %682 : vector<8x256xf32>
    %684 = vector.broadcast %660 : vector<8x1xf32> to vector<8x256xf32>
    %685 = arith.mulf %683, %684 : vector<8x256xf32>
    %686 = arith.truncf %685 : vector<8x256xf32> to vector<8x256xbf16>
    %c0_256 = arith.constant 0 : index
    %c0_257 = arith.constant 0 : index
    %687 = vector.load %arg7[%c0_256, %c0_257] : memref<256x128xbf16, #tpu.memory_space<vmem>>, vector<256x128xbf16>
    %cst_258 = arith.constant dense<0.000000e+00> : vector<8x128xf32>
    %688 = tpu.matmul %686, %687, %cst_258 {dimension_numbers = #tpu.dot_dimension_numbers<[1], [0], [0], [1], [0, 0, 1, 1], [], []>} : vector<8x256xbf16>, vector<256x128xbf16>, vector<8x128xf32> -> vector<8x128xf32>
    %c0_259 = arith.constant 0 : index
    %c0_260 = arith.constant 0 : index
    %689 = vector.load %arg8[%c0_259, %c0_260] : memref<1x128xf32, #tpu.memory_space<vmem>>, vector<1x128xf32>
    %690 = vector.broadcast %689 : vector<1x128xf32> to vector<8x128xf32>
    %691 = arith.addf %688, %690 : vector<8x128xf32>
    %c0_261 = arith.constant 0 : index
    %c0_262 = arith.constant 0 : index
    %692 = vector.load %arg9[%c0_261, %c0_262] : memref<8x128xf32, #tpu.memory_space<vmem>>, vector<8x128xf32>
    tpu.vector_store %arg9[%c0_261, %c0_262], %691 {strides = array<i32>} : memref<8x128xf32, #tpu.memory_space<vmem>>, vector<8x128xf32>,
    return
  }
  func.func @transform_0(%arg0: i32) -> (i32, i32) {
    %c0_i32 = arith.constant 0 : i32
    %c0_i32_0 = arith.constant 0 : i32
    %c0_i32_1 = arith.constant 0 : i32
    return %c0_i32, %c0_i32_0 : i32, i32
  }
  func.func @transform_1(%arg0: i32) -> (i32, i32) {
    %c0_i32 = arith.constant 0 : i32
    %c0_i32_0 = arith.constant 0 : i32
    %c0_i32_1 = arith.constant 0 : i32
    return %c0_i32, %c0_i32_0 : i32, i32
  }
  func.func @transform_2(%arg0: i32) -> (i32, i32) {
    %c0_i32 = arith.constant 0 : i32
    %c0_i32_0 = arith.constant 0 : i32
    %c0_i32_1 = arith.constant 0 : i32
    return %c0_i32, %c0_i32_0 : i32, i32
  }
  func.func @transform_3(%arg0: i32) -> (i32, i32) {
    %c0_i32 = arith.constant 0 : i32
    %c0_i32_0 = arith.constant 0 : i32
    %c0_i32_1 = arith.constant 0 : i32
    return %c0_i32, %c0_i32_0 : i32, i32
  }
  func.func @transform_4(%arg0: i32) -> (i32, i32) {
    %c0_i32 = arith.constant 0 : i32
    %c0_i32_0 = arith.constant 0 : i32
    %c0_i32_1 = arith.constant 0 : i32
    return %c0_i32, %c0_i32_0 : i32, i32
  }
  func.func @transform_5(%arg0: i32) -> (i32, i32) {
    %c0_i32 = arith.constant 0 : i32
    %c0_i32_0 = arith.constant 0 : i32
    %c0_i32_1 = arith.constant 0 : i32
    return %c0_i32, %c0_i32_0 : i32, i32
  }
  func.func @transform_6(%arg0: i32) -> (i32, i32) {
    %c0_i32 = arith.constant 0 : i32
    %c0_i32_0 = arith.constant 0 : i32
    %c0_i32_1 = arith.constant 0 : i32
    return %c0_i32, %c0_i32_0 : i32, i32
  }
  func.func @transform_7(%arg0: i32) -> (i32, i32) {
    %c0_i32 = arith.constant 0 : i32
    %c0_i32_0 = arith.constant 0 : i32
    %c0_i32_1 = arith.constant 0 : i32
    return %c0_i32, %c0_i32_0 : i32, i32
  }
  func.func @transform_8(%arg0: i32) -> (i32, i32) {
    %c0_i32 = arith.constant 0 : i32
    %c0_i32_0 = arith.constant 0 : i32
    %c0_i32_1 = arith.constant 0 : i32
    return %c0_i32, %c0_i32_0 : i32, i32
  }
}

</mosaic_0001>

<llo_original>
// kernel: tpu_custom_call.1
$region0: #{tpu_custom_call.1}
  #allocation0 [shape = 'u32[]', space=smem, size = 0x4, offset = 0x4, fixed_abs, tag = 'smem constant byte address 0x4 - core index']
  #allocation1 [shape = 'u32[144,128]{1,0:T(1,128)}', space=vmem, size = 0x12000, scoped, tag = 'internal scratch']
  #allocation2 [shape = 'f32[64,512]{1,0:T(8,128)}', space=vmem, size = 0x20000, scoped, tag = 'scratch operand']
  #allocation3 [shape = 'f32[64,512]{1,0:T(8,128)}', space=vmem, size = 0x20000, scoped, tag = 'scratch operand']
  #allocation4 [shape = 'f32[64,256]{1,0:T(8,128)}', space=vmem, size = 0x10000, scoped, tag = 'scratch operand']
  #allocation5 [shape = 'f32[16,128]{1,0:T(8,128)}', space=vmem, size = 0x2000, scoped, tag = 'scratch operand']
  %s0 = inlined_call_operand.hbm [shape: bf16[64,128], index: 0, kind: input, shape index: {}]
  %s1 = inlined_call_operand.hbm [shape: bf16[128,512], index: 1, kind: input, shape index: {}]
  %s2 = inlined_call_operand.hbm [shape: bf16[128,512], index: 2, kind: input, shape index: {}]
  %s3 = inlined_call_operand.vmem [shape: f32[1,512], index: 3, kind: input, shape index: {}]
  %s4 = inlined_call_operand.hbm [shape: f32[1,512], index: 4, kind: input, shape index: {}]
  %s5 = inlined_call_operand.hbm [shape: bf16[128,1024], index: 5, kind: input, shape index: {}]
  %s6 = inlined_call_operand.hbm [shape: bf16[256,128], index: 6, kind: input, shape index: {}]
  %s7 = inlined_call_operand.vmem [shape: f32[1,128], index: 7, kind: input, shape index: {}]
  %s8 = inlined_call_operand.hbm [shape: f32[8,128], index: 8, kind: output, shape index: {}]
  %s9 = sld [smem:[#allocation0]]
  $region66: #{tpu_custom_call.1} parent=0
    _
  %s11 = ssub.s32 1, %s9
  %s12 = scalar_select 0, %s11, %s9
  $region1: #{tpu_custom_call.1} parent=0
    #allocation6 [shape = 'u8[16384]{0}', space=vmem, size = 0x4000, scoped, tag = 'input window, operand 0, single buffered']
    #allocation7 [shape = 's32[1]{0}', space=sflag, size = 0x4, scoped, tag = 'scoped memory for tpu_custom_call.1']
    #allocation8 [shape = 's32[1]{0}', space=sflag, size = 0x4, scoped, tag = 'scoped memory for tpu_custom_call.1']
    #allocation9 [shape = 'u8[131072]{0}', space=vmem, size = 0x20000, scoped, tag = 'input window, operand 1, single buffered']
    #allocation10 [shape = 's32[1]{0}', space=sflag, size = 0x4, scoped, tag = 'scoped memory for tpu_custom_call.1']
    #allocation11 [shape = 'u8[131072]{0}', space=vmem, size = 0x20000, scoped, tag = 'input window, operand 2, single buffered']
    #allocation12 [shape = 'u8[2048]{0}', space=vmem, size = 0x800, scoped, tag = 'input window, operand 4, single buffered']
    #allocation13 [shape = 's32[1]{0}', space=sflag, size = 0x4, scoped, tag = 'scoped memory for tpu_custom_call.1']
    #allocation14 [shape = 'u8[262144]{0}', space=vmem, size = 0x40000, scoped, tag = 'input window, operand 5, single buffered']
    #allocation15 [shape = 'u8[65536]{0}', space=vmem, size = 0x10000, scoped, tag = 'input window, operand 6, single buffered']
    #allocation16 [shape = 's32[1]{0}', space=sflag, size = 0x4, scoped, tag = 'scoped memory for tpu_custom_call.1']
    #allocation17 [shape = 'u8[4096]{0}', space=vmem, size = 0x1000, scoped, tag = 'output window, operand 0, single buffered']
    %13 = vsyncpa [#allocation7], 0
    %14 = vsyncpa [#allocation10], 0
    %15 = vsyncpa [#allocation13], 0
    %16 = vsyncpa [#allocation16], 0
    %17 = vsyncpa [#allocation8], 0
    // Predicated region
    $region2: #{tpu_custom_call.1} parent=1 // pred_check
      _
    $region3: #{tpu_custom_call.1} parent=1 // pred_check_branch
      %19 = sbr.rel (0) target = $region5
    $region4: #{tpu_custom_call.1} parent=1 // pred_region
      %s21 = ssub.s32 512, 512
      %22 = vsyncadd [#allocation7], %s21
      %s23 = sshll.u32 [#allocation6], 4
      %s24 = int_to_ptr.vmem [resolvable:$true] %s23
      %29 = dma.hbm_to_vmem [thread:$0]  %s0, 512, %s24, [#allocation7], 64, 64, 4
    $region5: #{tpu_custom_call.1} parent=1 // pred_fallthru
      _
    // Predicated region
    $region6: #{tpu_custom_call.1} parent=1 // pred_check
      _
    $region7: #{tpu_custom_call.1} parent=1 // pred_check_branch
      %31 = sbr.rel (0) target = $region9
    $region8: #{tpu_custom_call.1} parent=1 // pred_region
      %s33 = ssub.s32 4096, 4096
      %34 = vsyncadd [#allocation10], %s33
      %s35 = sshll.u32 [#allocation9], 4
      %s36 = int_to_ptr.vmem [resolvable:$true] %s35
      %41 = dma.hbm_to_vmem [thread:$0]  %s1, 4096, %s36, [#allocation10], 256, 256, 16
    $region9: #{tpu_custom_call.1} parent=1 // pred_fallthru
      _
    // Predicated region
    $region10: #{tpu_custom_call.1} parent=1 // pred_check
      _
    $region11: #{tpu_custom_call.1} parent=1 // pred_check_branch
      %43 = sbr.rel (0) target = $region13
    $region12: #{tpu_custom_call.1} parent=1 // pred_region
      %s45 = ssub.s32 4096, 4096
      %46 = vsyncadd [#allocation10], %s45
      %s47 = sshll.u32 [#allocation11], 4
      %s48 = int_to_ptr.vmem [resolvable:$true] %s47
      %53 = dma.hbm_to_vmem [thread:$0]  %s2, 4096, %s48, [#allocation10], 256, 256, 16
    $region13: #{tpu_custom_call.1} parent=1 // pred_fallthru
      _
    // Predicated region
    $region14: #{tpu_custom_call.1} parent=1 // pred_check
      _
    $region15: #{tpu_custom_call.1} parent=1 // pred_check_branch
      %55 = sbr.rel (0) target = $region17
    $region16: #{tpu_custom_call.1} parent=1 // pred_region
      _
    $region17: #{tpu_custom_call.1} parent=1 // pred_fallthru
      _
    // Predicated region
    $region18: #{tpu_custom_call.1} parent=1 // pred_check
      _
    $region19: #{tpu_custom_call.1} parent=1 // pred_check_branch
      %57 = sbr.rel (0) target = $region21
    $region20: #{tpu_custom_call.1} parent=1 // pred_region
      %s59 = ssub.s32 64, 64
      %60 = vsyncadd [#allocation13], %s59
      %s62 = sshll.u32 [#allocation12], 4
      %s63 = int_to_ptr.vmem [resolvable:$true] %s62
      %65 = dma.hbm_to_vmem [thread:$0]  %s4, 64, %s63, [#allocation13]
    $region21: #{tpu_custom_call.1} parent=1 // pred_fallthru
      _
    // Predicated region
    $region22: #{tpu_custom_call.1} parent=1 // pred_check
      _
    $region23: #{tpu_custom_call.1} parent=1 // pred_check_branch
      %67 = sbr.rel (0) target = $region25
    $region24: #{tpu_custom_call.1} parent=1 // pred_region
      %s69 = ssub.s32 8192, 8192
      %70 = vsyncadd [#allocation13], %s69
      %s71 = sshll.u32 [#allocation14], 4
      %s72 = int_to_ptr.vmem [resolvable:$true] %s71
      %77 = dma.hbm_to_vmem [thread:$0]  %s5, 8192, %s72, [#allocation13], 512, 512, 32
    $region25: #{tpu_custom_call.1} parent=1 // pred_fallthru
      _
    // Predicated region
    $region26: #{tpu_custom_call.1} parent=1 // pred_check
      _
    $region27: #{tpu_custom_call.1} parent=1 // pred_check_branch
      %79 = sbr.rel (0) target = $region29
    $region28: #{tpu_custom_call.1} parent=1 // pred_region
      %s81 = ssub.s32 2048, 2048
      %82 = vsyncadd [#allocation16], %s81
      %s83 = sshll.u32 [#allocation15], 4
      %s84 = int_to_ptr.vmem [resolvable:$true] %s83
      %89 = dma.hbm_to_vmem [thread:$0]  %s6, 2048, %s84, [#allocation16], 64, 64, 4
    $region29: #{tpu_custom_call.1} parent=1 // pred_fallthru
      _
    // Predicated region
    $region30: #{tpu_custom_call.1} parent=1 // pred_check
      _
    $region31: #{tpu_custom_call.1} parent=1 // pred_check_branch
      %91 = sbr.rel (0) target = $region33
    $region32: #{tpu_custom_call.1} parent=1 // pred_region
      _
    $region33: #{tpu_custom_call.1} parent=1 // pred_fallthru
      _
    // Predicated region
    $region34: #{tpu_custom_call.1} parent=1 // pred_check
      _
    $region35: #{tpu_custom_call.1} parent=1 // pred_check_branch
      %93 = sbr.rel (0) target = $region37
    $region36: #{tpu_custom_call.1} parent=1 // pred_region
      %94 = dma.done [#allocation7], 512
    $region37: #{tpu_custom_call.1} parent=1 // pred_fallthru
      _
    // Predicated region
    $region38: #{tpu_custom_call.1} parent=1 // pred_check
      _
    $region39: #{tpu_custom_call.1} parent=1 // pred_check_branch
      %96 = sbr.rel (0) target = $region41
    $region40: #{tpu_custom_call.1} parent=1 // pred_region
      %97 = dma.done [#allocation10], 4096
    $region41: #{tpu_custom_call.1} parent=1 // pred_fallthru
      _
    // Predicated region
    $region42: #{tpu_custom_call.1} parent=1 // pred_check
      _
    $region43: #{tpu_custom_call.1} parent=1 // pred_check_branch
      %99 = sbr.rel (0) target = $region45
    $region44: #{tpu_custom_call.1} parent=1 // pred_region
      %100 = dma.done [#allocation10], 4096
    $region45: #{tpu_custom_call.1} parent=1 // pred_fallthru
      _
    // Predicated region
    $region46: #{tpu_custom_call.1} parent=1 // pred_check
      _
    $region47: #{tpu_custom_call.1} parent=1 // pred_check_branch
      %102 = sbr.rel (0) target = $region49
    $region48: #{tpu_custom_call.1} parent=1 // pred_region
      %103 = dma.done [#allocation13], 64
    $region49: #{tpu_custom_call.1} parent=1 // pred_fallthru
      _
    // Predicated region
    $region50: #{tpu_custom_call.1} parent=1 // pred_check
      _
    $region51: #{tpu_custom_call.1} parent=1 // pred_check_branch
      %105 = sbr.rel (0) target = $region53
    $region52: #{tpu_custom_call.1} parent=1 // pred_region
      %106 = dma.done [#allocation13], 8192
    $region53: #{tpu_custom_call.1} parent=1 // pred_fallthru
      _
    // Predicated region
    $region54: #{tpu_custom_call.1} parent=1 // pred_check
      _
    $region55: #{tpu_custom_call.1} parent=1 // pred_check_branch
      %108 = sbr.rel (0) target = $region57
    $region56: #{tpu_custom_call.1} parent=1 // pred_region
      %109 = dma.done [#allocation16], 2048
    $region57: #{tpu_custom_call.1} parent=1 // pred_fallthru
      _
    %v111 = vld [vmem:[#allocation6] sm:$0xf]
    %v112 = vld [vmem:[#allocation6 + $0x4] sm:$0xf]
    %v113 = vld [vmem:[#allocation6 + $0x8] sm:$0xf]
    %v114 = vld [vmem:[#allocation6 + $0xc] sm:$0xf]
    %v115 = vld [vmem:[#allocation6 + $0x10] sm:$0xf]
    %v116 = vld [vmem:[#allocation6 + $0x14] sm:$0xf]
    %v117 = vld [vmem:[#allocation6 + $0x18] sm:$0xf]
    %v118 = vld [vmem:[#allocation6 + $0x1c] sm:$0xf]
    %v119 = vld [vmem:[#allocation9] sm:$0xff]
    %v120 = vld [vmem:[#allocation9 + $0x8] sm:$0xff]
    %v121 = vld [vmem:[#allocation9 + $0x10] sm:$0xff]
    %v122 = vld [vmem:[#allocation9 + $0x18] sm:$0xff]
    %v123 = vld [vmem:[#allocation9 + $0x20] sm:$0xff]
    %v124 = vld [vmem:[#allocation9 + $0x28] sm:$0xff]
    %v125 = vld [vmem:[#allocation9 + $0x30] sm:$0xff]
    %v126 = vld [vmem:[#allocation9 + $0x38] sm:$0xff]
    %v127 = vld [vmem:[#allocation9 + $0x40] sm:$0xff]
    %v128 = vld [vmem:[#allocation9 + $0x48] sm:$0xff]
    %v129 = vld [vmem:[#allocation9 + $0x50] sm:$0xff]
    %v130 = vld [vmem:[#allocation9 + $0x58] sm:$0xff]
    %v131 = vld [vmem:[#allocation9 + $0x60] sm:$0xff]
    %v132 = vld [vmem:[#allocation9 + $0x68] sm:$0xff]
    %v133 = vld [vmem:[#allocation9 + $0x70] sm:$0xff]
    %v134 = vld [vmem:[#allocation9 + $0x78] sm:$0xff]
    %v135 = vld [vmem:[#allocation9 + $0x80] sm:$0xff]
    %v136 = vld [vmem:[#allocation9 + $0x88] sm:$0xff]
    %v137 = vld [vmem:[#allocation9 + $0x90] sm:$0xff]
    %v138 = vld [vmem:[#allocation9 + $0x98] sm:$0xff]
    %v139 = vld [vmem:[#allocation9 + $0xa0] sm:$0xff]
    %v140 = vld [vmem:[#allocation9 + $0xa8] sm:$0xff]
    %v141 = vld [vmem:[#allocation9 + $0xb0] sm:$0xff]
    %v142 = vld [vmem:[#allocation9 + $0xb8] sm:$0xff]
    %v143 = vld [vmem:[#allocation9 + $0xc0] sm:$0xff]
    %v144 = vld [vmem:[#allocation9 + $0xc8] sm:$0xff]
    %v145 = vld [vmem:[#allocation9 + $0xd0] sm:$0xff]
    %v146 = vld [vmem:[#allocation9 + $0xd8] sm:$0xff]
    %v147 = vld [vmem:[#allocation9 + $0xe0] sm:$0xff]
    %v148 = vld [vmem:[#allocation9 + $0xe8] sm:$0xff]
    %v149 = vld [vmem:[#allocation9 + $0xf0] sm:$0xff]
    %v150 = vld [vmem:[#allocation9 + $0xf8] sm:$0xff]
    %v151 = vld [vmem:[%s3] sm:$0xf]
    %v153 = vlaneseq
    %v154 = vshrl.u32 %v153, 7
    %v155 = vsub.s32 0, %v154
    %v156 = vrot.slane %v151, %v155
    %v157 = vlaneseq
    %v158 = vshrl.u32 %v157, 7
    %v159 = vsub.s32 1, %v158
    %v160 = vrot.slane %v151, %v159
    %v161 = vlaneseq
    %v162 = vshrl.u32 %v161, 7
    %v163 = vsub.s32 2, %v162
    %v164 = vrot.slane %v151, %v163
    %v165 = vlaneseq
    %v166 = vshrl.u32 %v165, 7
    %v167 = vsub.s32 3, %v166
    %v168 = vrot.slane %v151, %v167
    %v181 = vunpack.c.l.b16 %v111
    %v182 = vunpack.c.l.b16 %v112
    %v183 = vunpack.c.l.b16 %v113
    %v184 = vunpack.c.l.b16 %v114
    %v185 = vunpack.c.l.b16 %v115
    %v186 = vunpack.c.l.b16 %v116
    %v187 = vunpack.c.l.b16 %v117
    %v188 = vunpack.c.l.b16 %v118
    %v189 = vpack.c.b16 %v182, %v181
    %v190 = vpack.c.b16 %v184, %v183
    %v191 = vpack.c.b16 %v186, %v185
    %v192 = vpack.c.b16 %v188, %v187
    %v229 = vunpack.c.l.b16 %v119
    %v230 = vunpack.c.h.b16 %v119
    %v231 = vunpack.c.l.b16 %v120
    %v232 = vunpack.c.h.b16 %v120
    %v233 = vunpack.c.l.b16 %v121
    %v234 = vunpack.c.h.b16 %v121
    %v235 = vunpack.c.l.b16 %v122
    %v236 = vunpack.c.h.b16 %v122
    %v237 = vunpack.c.l.b16 %v123
    %v238 = vunpack.c.h.b16 %v123
    %v239 = vunpack.c.l.b16 %v124
    %v240 = vunpack.c.h.b16 %v124
    %v241 = vunpack.c.l.b16 %v125
    %v242 = vunpack.c.h.b16 %v125
    %v243 = vunpack.c.l.b16 %v126
    %v244 = vunpack.c.h.b16 %v126
    %v245 = vunpack.c.l.b16 %v127
    %v246 = vunpack.c.h.b16 %v127
    %v247 = vunpack.c.l.b16 %v128
    %v248 = vunpack.c.h.b16 %v128
    %v249 = vunpack.c.l.b16 %v129
    %v250 = vunpack.c.h.b16 %v129
    %v251 = vunpack.c.l.b16 %v130
    %v252 = vunpack.c.h.b16 %v130
    %v253 = vunpack.c.l.b16 %v131
    %v254 = vunpack.c.h.b16 %v131
    %v255 = vunpack.c.l.b16 %v132
    %v256 = vunpack.c.h.b16 %v132
    %v257 = vunpack.c.l.b16 %v133
    %v258 = vunpack.c.h.b16 %v133
    %v259 = vunpack.c.l.b16 %v134
    %v260 = vunpack.c.h.b16 %v134
    %v261 = vunpack.c.l.b16 %v135
    %v262 = vunpack.c.h.b16 %v135
    %v263 = vunpack.c.l.b16 %v136
    %v264 = vunpack.c.h.b16 %v136
    %v265 = vunpack.c.l.b16 %v137
    %v266 = vunpack.c.h.b16 %v137
    %v267 = vunpack.c.l.b16 %v138
    %v268 = vunpack.c.h.b16 %v138
    %v269 = vunpack.c.l.b16 %v139
    %v270 = vunpack.c.h.b16 %v139
    %v271 = vunpack.c.l.b16 %v140
    %v272 = vunpack.c.h.b16 %v140
    %v273 = vunpack.c.l.b16 %v141
    %v274 = vunpack.c.h.b16 %v141
    %v275 = vunpack.c.l.b16 %v142
    %v276 = vunpack.c.h.b16 %v142
    %v277 = vunpack.c.l.b16 %v143
    %v278 = vunpack.c.h.b16 %v143
    %v279 = vunpack.c.l.b16 %v144
    %v280 = vunpack.c.h.b16 %v144
    %v281 = vunpack.c.l.b16 %v145
    %v282 = vunpack.c.h.b16 %v145
    %v283 = vunpack.c.l.b16 %v146
    %v284 = vunpack.c.h.b16 %v146
    %v285 = vunpack.c.l.b16 %v147
    %v286 = vunpack.c.h.b16 %v147
    %v287 = vunpack.c.l.b16 %v148
    %v288 = vunpack.c.h.b16 %v148
    %v289 = vunpack.c.l.b16 %v149
    %v290 = vunpack.c.h.b16 %v149
    %v291 = vunpack.c.l.b16 %v150
    %v292 = vunpack.c.h.b16 %v150
    %v293 = vpack.c.b16 %v233, %v229
    %v294 = vpack.c.b16 %v234, %v230
    %v295 = vpack.c.b16 %v235, %v231
    %v296 = vpack.c.b16 %v236, %v232
    %v297 = vpack.c.b16 %v241, %v237
    %v298 = vpack.c.b16 %v242, %v238
    %v299 = vpack.c.b16 %v243, %v239
    %v300 = vpack.c.b16 %v244, %v240
    %v301 = vpack.c.b16 %v249, %v245
    %v302 = vpack.c.b16 %v250, %v246
    %v303 = vpack.c.b16 %v251, %v247
    %v304 = vpack.c.b16 %v252, %v248
    %v305 = vpack.c.b16 %v257, %v253
    %v306 = vpack.c.b16 %v258, %v254
    %v307 = vpack.c.b16 %v259, %v255
    %v308 = vpack.c.b16 %v260, %v256
    %v309 = vpack.c.b16 %v265, %v261
    %v310 = vpack.c.b16 %v266, %v262
    %v311 = vpack.c.b16 %v267, %v263
    %v312 = vpack.c.b16 %v268, %v264
    %v313 = vpack.c.b16 %v273, %v269
    %v314 = vpack.c.b16 %v274, %v270
    %v315 = vpack.c.b16 %v275, %v271
    %v316 = vpack.c.b16 %v276, %v272
    %v317 = vpack.c.b16 %v281, %v277
    %v318 = vpack.c.b16 %v282, %v278
    %v319 = vpack.c.b16 %v283, %v279
    %v320 = vpack.c.b16 %v284, %v280
    %v321 = vpack.c.b16 %v289, %v285
    %v322 = vpack.c.b16 %v290, %v286
    %v323 = vpack.c.b16 %v291, %v287
    %v324 = vpack.c.b16 %v292, %v288
    %357 = vmatprep.subr.bf16.mxu0 %v322
    %358 = vmatpush1.bf16.msra.mxu0 %v321
    %359 = vmatprep.subr.bf16.mxu0 %v318
    %360 = vmatpush1.bf16.msra.mxu0 %v317
    %361 = vmatprep.subr.bf16.mxu0 %v314
    %362 = vmatpush1.bf16.msra.mxu0 %v313
    %363 = vmatprep.subr.bf16.mxu0 %v310
    %364 = vmatpush1.bf16.msra.mxu0 %v309
    %365 = vmatprep.subr.bf16.mxu0 %v306
    %366 = vmatpush1.bf16.msra.mxu0 %v305
    %367 = vmatprep.subr.bf16.mxu0 %v302
    %368 = vmatpush1.bf16.msra.mxu0 %v301
    %369 = vmatprep.subr.bf16.mxu0 %v298
    %370 = vmatpush1.bf16.msra.mxu0 %v297
    %371 = vmatprep.subr.bf16.mxu0 %v294
    %372 = vmatpush1.bf16.msra.mxu0 %v293
    %373 = vmatprep.subr.bf16.mxu0 0
    %374 = vmatpush2.bf16.msra.mxu0 0
    %375 = vmatprep.subr.bf16.mxu0 0
    %376 = vmatpush2.bf16.msra.mxu0 0
    %377 = vmatprep.subr.bf16.mxu0 0
    %378 = vmatpush2.bf16.msra.mxu0 0
    %379 = vmatprep.subr.bf16.mxu0 0
    %380 = vmatpush2.bf16.msra.mxu0 0
    %381 = vmatprep.subr.bf16.mxu0 0
    %382 = vmatpush2.bf16.msra.mxu0 0
    %383 = vmatprep.subr.bf16.mxu0 0
    %384 = vmatpush2.bf16.msra.mxu0 0
    %385 = vmatprep.subr.bf16.mxu0 0
    %386 = vmatpush2.bf16.msra.mxu0 0
    %387 = vmatprep.subr.bf16.mxu0 0
    %388 = vmatpush2.bf16.msra.mxu0 0
    %389 = vmatprep.mubr.bf16.mxu0 0
    %390 = vmatmul.mubr.bf16.gmra.mxu0 %v189
    %v391 = vpop.f32.mrf.mxu0
    %v392 = vadd.f32 %v156, %v391
    %v393 = vpop.f32.mrf.mxu0
    %v394 = vadd.f32 %v160, %v393
    %v395 = vpop.f32.mrf.mxu0
    %v396 = vadd.f32 %v156, %v395
    %v397 = vpop.f32.mrf.mxu0
    %v398 = vadd.f32 %v160, %v397
    %399 = vmatprep.mubr.bf16.mxu0 0
    %400 = vmatmul.mubr.bf16.gmra.mxu0 %v190
    %v401 = vpop.f32.mrf.mxu0
    %v402 = vadd.f32 %v156, %v401
    %v403 = vpop.f32.mrf.mxu0
    %v404 = vadd.f32 %v160, %v403
    %v405 = vpop.f32.mrf.mxu0
    %v406 = vadd.f32 %v156, %v405
    %v407 = vpop.f32.mrf.mxu0
    %v408 = vadd.f32 %v160, %v407
    %409 = vmatprep.mubr.bf16.mxu0 0
    %410 = vmatmul.mubr.bf16.gmra.mxu0 %v191
    %v411 = vpop.f32.mrf.mxu0
    %v412 = vadd.f32 %v156, %v411
    %v413 = vpop.f32.mrf.mxu0
    %v414 = vadd.f32 %v160, %v413
    %v415 = vpop.f32.mrf.mxu0
    %v416 = vadd.f32 %v156, %v415
    %v417 = vpop.f32.mrf.mxu0
    %v418 = vadd.f32 %v160, %v417
    %419 = vmatprep.mubr.bf16.mxu0 0
    %420 = vmatmul.mubr.bf16.gmra.mxu0 %v192
    %v421 = vpop.f32.mrf.mxu0
    %v422 = vadd.f32 %v156, %v421
    %v423 = vpop.f32.mrf.mxu0
    %v424 = vadd.f32 %v160, %v423
    %v425 = vpop.f32.mrf.mxu0
    %v426 = vadd.f32 %v156, %v425
    %v427 = vpop.f32.mrf.mxu0
    %v428 = vadd.f32 %v160, %v427
    %429 = vdwg.mxu0
    %430 = vmatprep.subr.bf16.mxu0 %v324
    %431 = vmatpush1.bf16.msra.mxu0 %v323
    %432 = vmatprep.subr.bf16.mxu0 %v320
    %433 = vmatpush1.bf16.msra.mxu0 %v319
    %434 = vmatprep.subr.bf16.mxu0 %v316
    %435 = vmatpush1.bf16.msra.mxu0 %v315
    %436 = vmatprep.subr.bf16.mxu0 %v312
    %437 = vmatpush1.bf16.msra.mxu0 %v311
    %438 = vmatprep.subr.bf16.mxu0 %v308
    %439 = vmatpush1.bf16.msra.mxu0 %v307
    %440 = vmatprep.subr.bf16.mxu0 %v304
    %441 = vmatpush1.bf16.msra.mxu0 %v303
    %442 = vmatprep.subr.bf16.mxu0 %v300
    %443 = vmatpush1.bf16.msra.mxu0 %v299
    %444 = vmatprep.subr.bf16.mxu0 %v296
    %445 = vmatpush1.bf16.msra.mxu0 %v295
    %446 = vmatprep.subr.bf16.mxu0 0
    %447 = vmatpush2.bf16.msra.mxu0 0
    %448 = vmatprep.subr.bf16.mxu0 0
    %449 = vmatpush2.bf16.msra.mxu0 0
    %450 = vmatprep.subr.bf16.mxu0 0
    %451 = vmatpush2.bf16.msra.mxu0 0
    %452 = vmatprep.subr.bf16.mxu0 0
    %453 = vmatpush2.bf16.msra.mxu0 0
    %454 = vmatprep.subr.bf16.mxu0 0
    %455 = vmatpush2.bf16.msra.mxu0 0
    %456 = vmatprep.subr.bf16.mxu0 0
    %457 = vmatpush2.bf16.msra.mxu0 0
    %458 = vmatprep.subr.bf16.mxu0 0
    %459 = vmatpush2.bf16.msra.mxu0 0
    %460 = vmatprep.subr.bf16.mxu0 0
    %461 = vmatpush2.bf16.msra.mxu0 0
    %462 = vmatprep.mubr.bf16.mxu0 0
    %463 = vmatmul.mubr.bf16.gmra.mxu0 %v189
    %v464 = vpop.f32.mrf.mxu0
    %v465 = vadd.f32 %v164, %v464
    %v466 = vpop.f32.mrf.mxu0
    %v467 = vadd.f32 %v168, %v466
    %v468 = vpop.f32.mrf.mxu0
    %v469 = vadd.f32 %v164, %v468
    %v470 = vpop.f32.mrf.mxu0
    %v471 = vadd.f32 %v168, %v470
    %472 = vmatprep.mubr.bf16.mxu0 0
    %473 = vmatmul.mubr.bf16.gmra.mxu0 %v190
    %v474 = vpop.f32.mrf.mxu0
    %v475 = vadd.f32 %v164, %v474
    %v476 = vpop.f32.mrf.mxu0
    %v477 = vadd.f32 %v168, %v476
    %v478 = vpop.f32.mrf.mxu0
    %v479 = vadd.f32 %v164, %v478
    %v480 = vpop.f32.mrf.mxu0
    %v481 = vadd.f32 %v168, %v480
    %482 = vmatprep.mubr.bf16.mxu0 0
    %483 = vmatmul.mubr.bf16.gmra.mxu0 %v191
    %v484 = vpop.f32.mrf.mxu0
    %v485 = vadd.f32 %v164, %v484
    %v486 = vpop.f32.mrf.mxu0
    %v487 = vadd.f32 %v168, %v486
    %v488 = vpop.f32.mrf.mxu0
    %v489 = vadd.f32 %v164, %v488
    %v490 = vpop.f32.mrf.mxu0
    %v491 = vadd.f32 %v168, %v490
    %492 = vmatprep.mubr.bf16.mxu0 0
    %493 = vmatmul.mubr.bf16.gmra.mxu0 %v192
    %v494 = vpop.f32.mrf.mxu0
    %v495 = vadd.f32 %v164, %v494
    %v496 = vpop.f32.mrf.mxu0
    %v497 = vadd.f32 %v168, %v496
    %v498 = vpop.f32.mrf.mxu0
    %v499 = vadd.f32 %v164, %v498
    %v500 = vpop.f32.mrf.mxu0
    %v501 = vadd.f32 %v168, %v500
    %502 = vdwg.mxu0
    %503 = vst [vmem:[#allocation2] sm:$0xff] %v392
    %504 = vst [vmem:[#allocation2 + $0x8] sm:$0xff] %v394
    %505 = vst [vmem:[#allocation2 + $0x10] sm:$0xff] %v465
    %506 = vst [vmem:[#allocation2 + $0x18] sm:$0xff] %v467
    %507 = vst [vmem:[#allocation2 + $0x20] sm:$0xff] %v396
    %508 = vst [vmem:[#allocation2 + $0x28] sm:$0xff] %v398
    %509 = vst [vmem:[#allocation2 + $0x30] sm:$0xff] %v469
    %510 = vst [vmem:[#allocation2 + $0x38] sm:$0xff] %v471
    %511 = vst [vmem:[#allocation2 + $0x40] sm:$0xff] %v402
    %512 = vst [vmem:[#allocation2 + $0x48] sm:$0xff] %v404
    %513 = vst [vmem:[#allocation2 + $0x50] sm:$0xff] %v475
    %514 = vst [vmem:[#allocation2 + $0x58] sm:$0xff] %v477
    %515 = vst [vmem:[#allocation2 + $0x60] sm:$0xff] %v406
    %516 = vst [vmem:[#allocation2 + $0x68] sm:$0xff] %v408
    %517 = vst [vmem:[#allocation2 + $0x70] sm:$0xff] %v479
    %518 = vst [vmem:[#allocation2 + $0x78] sm:$0xff] %v481
    %519 = vst [vmem:[#allocation2 + $0x80] sm:$0xff] %v412
    %520 = vst [vmem:[#allocation2 + $0x88] sm:$0xff] %v414
    %521 = vst [vmem:[#allocation2 + $0x90] sm:$0xff] %v485
    %522 = vst [vmem:[#allocation2 + $0x98] sm:$0xff] %v487
    %523 = vst [vmem:[#allocation2 + $0xa0] sm:$0xff] %v416
    %524 = vst [vmem:[#allocation2 + $0xa8] sm:$0xff] %v418
    %525 = vst [vmem:[#allocation2 + $0xb0] sm:$0xff] %v489
    %526 = vst [vmem:[#allocation2 + $0xb8] sm:$0xff] %v491
    %527 = vst [vmem:[#allocation2 + $0xc0] sm:$0xff] %v422
    %528 = vst [vmem:[#allocation2 + $0xc8] sm:$0xff] %v424
    %529 = vst [vmem:[#allocation2 + $0xd0] sm:$0xff] %v495
    %530 = vst [vmem:[#allocation2 + $0xd8] sm:$0xff] %v497
    %531 = vst [vmem:[#allocation2 + $0xe0] sm:$0xff] %v426
    %532 = vst [vmem:[#allocation2 + $0xe8] sm:$0xff] %v428
    %533 = vst [vmem:[#allocation2 + $0xf0] sm:$0xff] %v499
    %534 = vst [vmem:[#allocation2 + $0xf8] sm:$0xff] %v501
    %v535 = vld [vmem:[#allocation11] sm:$0xff]
    %v536 = vld [vmem:[#allocation11 + $0x8] sm:$0xff]
    %v537 = vld [vmem:[#allocation11 + $0x10] sm:$0xff]
    %v538 = vld [vmem:[#allocation11 + $0x18] sm:$0xff]
    %v539 = vld [vmem:[#allocation11 + $0x20] sm:$0xff]
    %v540 = vld [vmem:[#allocation11 + $0x28] sm:$0xff]
    %v541 = vld [vmem:[#allocation11 + $0x30] sm:$0xff]
    %v542 = vld [vmem:[#allocation11 + $0x38] sm:$0xff]
    %v543 = vld [vmem:[#allocation11 + $0x40] sm:$0xff]
    %v544 = vld [vmem:[#allocation11 + $0x48] sm:$0xff]
    %v545 = vld [vmem:[#allocation11 + $0x50] sm:$0xff]
    %v546 = vld [vmem:[#allocation11 + $0x58] sm:$0xff]
    %v547 = vld [vmem:[#allocation11 + $0x60] sm:$0xff]
    %v548 = vld [vmem:[#allocation11 + $0x68] sm:$0xff]
    %v549 = vld [vmem:[#allocation11 + $0x70] sm:$0xff]
    %v550 = vld [vmem:[#allocation11 + $0x78] sm:$0xff]
    %v551 = vld [vmem:[#allocation11 + $0x80] sm:$0xff]
    %v552 = vld [vmem:[#allocation11 + $0x88] sm:$0xff]
    %v553 = vld [vmem:[#allocation11 + $0x90] sm:$0xff]
    %v554 = vld [vmem:[#allocation11 + $0x98] sm:$0xff]
    %v555 = vld [vmem:[#allocation11 + $0xa0] sm:$0xff]
    %v556 = vld [vmem:[#allocation11 + $0xa8] sm:$0xff]
    %v557 = vld [vmem:[#allocation11 + $0xb0] sm:$0xff]
    %v558 = vld [vmem:[#allocation11 + $0xb8] sm:$0xff]
    %v559 = vld [vmem:[#allocation11 + $0xc0] sm:$0xff]
    %v560 = vld [vmem:[#allocation11 + $0xc8] sm:$0xff]
    %v561 = vld [vmem:[#allocation11 + $0xd0] sm:$0xff]
    %v562 = vld [vmem:[#allocation11 + $0xd8] sm:$0xff]
    %v563 = vld [vmem:[#allocation11 + $0xe0] sm:$0xff]
    %v564 = vld [vmem:[#allocation11 + $0xe8] sm:$0xff]
    %v565 = vld [vmem:[#allocation11 + $0xf0] sm:$0xff]
    %v566 = vld [vmem:[#allocation11 + $0xf8] sm:$0xff]
    %v567 = vld [vmem:[#allocation12] sm:$0xf]
    %v569 = vlaneseq
    %v570 = vshrl.u32 %v569, 7
    %v571 = vsub.s32 0, %v570
    %v572 = vrot.slane %v567, %v571
    %v573 = vlaneseq
    %v574 = vshrl.u32 %v573, 7
    %v575 = vsub.s32 1, %v574
    %v576 = vrot.slane %v567, %v575
    %v577 = vlaneseq
    %v578 = vshrl.u32 %v577, 7
    %v579 = vsub.s32 2, %v578
    %v580 = vrot.slane %v567, %v579
    %v581 = vlaneseq
    %v582 = vshrl.u32 %v581, 7
    %v583 = vsub.s32 3, %v582
    %v584 = vrot.slane %v567, %v583
    %v621 = vunpack.c.l.b16 %v535
    %v622 = vunpack.c.h.b16 %v535
    %v623 = vunpack.c.l.b16 %v536
    %v624 = vunpack.c.h.b16 %v536
    %v625 = vunpack.c.l.b16 %v537
    %v626 = vunpack.c.h.b16 %v537
    %v627 = vunpack.c.l.b16 %v538
    %v628 = vunpack.c.h.b16 %v538
    %v629 = vunpack.c.l.b16 %v539
    %v630 = vunpack.c.h.b16 %v539
    %v631 = vunpack.c.l.b16 %v540
    %v632 = vunpack.c.h.b16 %v540
    %v633 = vunpack.c.l.b16 %v541
    %v634 = vunpack.c.h.b16 %v541
    %v635 = vunpack.c.l.b16 %v542
    %v636 = vunpack.c.h.b16 %v542
    %v637 = vunpack.c.l.b16 %v543
    %v638 = vunpack.c.h.b16 %v543
    %v639 = vunpack.c.l.b16 %v544
    %v640 = vunpack.c.h.b16 %v544
    %v641 = vunpack.c.l.b16 %v545
    %v642 = vunpack.c.h.b16 %v545
    %v643 = vunpack.c.l.b16 %v546
    %v644 = vunpack.c.h.b16 %v546
    %v645 = vunpack.c.l.b16 %v547
    %v646 = vunpack.c.h.b16 %v547
    %v647 = vunpack.c.l.b16 %v548
    %v648 = vunpack.c.h.b16 %v548
    %v649 = vunpack.c.l.b16 %v549
    %v650 = vunpack.c.h.b16 %v549
    %v651 = vunpack.c.l.b16 %v550
    %v652 = vunpack.c.h.b16 %v550
    %v653 = vunpack.c.l.b16 %v551
    %v654 = vunpack.c.h.b16 %v551
    %v655 = vunpack.c.l.b16 %v552
    %v656 = vunpack.c.h.b16 %v552
    %v657 = vunpack.c.l.b16 %v553
    %v658 = vunpack.c.h.b16 %v553
    %v659 = vunpack.c.l.b16 %v554
    %v660 = vunpack.c.h.b16 %v554
    %v661 = vunpack.c.l.b16 %v555
    %v662 = vunpack.c.h.b16 %v555
    %v663 = vunpack.c.l.b16 %v556
    %v664 = vunpack.c.h.b16 %v556
    %v665 = vunpack.c.l.b16 %v557
    %v666 = vunpack.c.h.b16 %v557
    %v667 = vunpack.c.l.b16 %v558
    %v668 = vunpack.c.h.b16 %v558
    %v669 = vunpack.c.l.b16 %v559
    %v670 = vunpack.c.h.b16 %v559
    %v671 = vunpack.c.l.b16 %v560
    %v672 = vunpack.c.h.b16 %v560
    %v673 = vunpack.c.l.b16 %v561
    %v674 = vunpack.c.h.b16 %v561
    %v675 = vunpack.c.l.b16 %v562
    %v676 = vunpack.c.h.b16 %v562
    %v677 = vunpack.c.l.b16 %v563
    %v678 = vunpack.c.h.b16 %v563
    %v679 = vunpack.c.l.b16 %v564
    %v680 = vunpack.c.h.b16 %v564
    %v681 = vunpack.c.l.b16 %v565
    %v682 = vunpack.c.h.b16 %v565
    %v683 = vunpack.c.l.b16 %v566
    %v684 = vunpack.c.h.b16 %v566
    %v685 = vpack.c.b16 %v625, %v621
    %v686 = vpack.c.b16 %v626, %v622
    %v687 = vpack.c.b16 %v627, %v623
    %v688 = vpack.c.b16 %v628, %v624
    %v689 = vpack.c.b16 %v633, %v629
    %v690 = vpack.c.b16 %v634, %v630
    %v691 = vpack.c.b16 %v635, %v631
    %v692 = vpack.c.b16 %v636, %v632
    %v693 = vpack.c.b16 %v641, %v637
    %v694 = vpack.c.b16 %v642, %v638
    %v695 = vpack.c.b16 %v643, %v639
    %v696 = vpack.c.b16 %v644, %v640
    %v697 = vpack.c.b16 %v649, %v645
    %v698 = vpack.c.b16 %v650, %v646
    %v699 = vpack.c.b16 %v651, %v647
    %v700 = vpack.c.b16 %v652, %v648
    %v701 = vpack.c.b16 %v657, %v653
    %v702 = vpack.c.b16 %v658, %v654
    %v703 = vpack.c.b16 %v659, %v655
    %v704 = vpack.c.b16 %v660, %v656
    %v705 = vpack.c.b16 %v665, %v661
    %v706 = vpack.c.b16 %v666, %v662
    %v707 = vpack.c.b16 %v667, %v663
    %v708 = vpack.c.b16 %v668, %v664
    %v709 = vpack.c.b16 %v673, %v669
    %v710 = vpack.c.b16 %v674, %v670
    %v711 = vpack.c.b16 %v675, %v671
    %v712 = vpack.c.b16 %v676, %v672
    %v713 = vpack.c.b16 %v681, %v677
    %v714 = vpack.c.b16 %v682, %v678
    %v715 = vpack.c.b16 %v683, %v679
    %v716 = vpack.c.b16 %v684, %v680
    %749 = vmatprep.subr.bf16.mxu0 %v714
    %750 = vmatpush1.bf16.msra.mxu0 %v713
    %751 = vmatprep.subr.bf16.mxu0 %v710
    %752 = vmatpush1.bf16.msra.mxu0 %v709
    %753 = vmatprep.subr.bf16.mxu0 %v706
    %754 = vmatpush1.bf16.msra.mxu0 %v705
    %755 = vmatprep.subr.bf16.mxu0 %v702
    %756 = vmatpush1.bf16.msra.mxu0 %v701
    %757 = vmatprep.subr.bf16.mxu0 %v698
    %758 = vmatpush1.bf16.msra.mxu0 %v697
    %759 = vmatprep.subr.bf16.mxu0 %v694
    %760 = vmatpush1.bf16.msra.mxu0 %v693
    %761 = vmatprep.subr.bf16.mxu0 %v690
    %762 = vmatpush1.bf16.msra.mxu0 %v689
    %763 = vmatprep.subr.bf16.mxu0 %v686
    %764 = vmatpush1.bf16.msra.mxu0 %v685
    %765 = vmatprep.subr.bf16.mxu0 0
    %766 = vmatpush2.bf16.msra.mxu0 0
    %767 = vmatprep.subr.bf16.mxu0 0
    %768 = vmatpush2.bf16.msra.mxu0 0
    %769 = vmatprep.subr.bf16.mxu0 0
    %770 = vmatpush2.bf16.msra.mxu0 0
    %771 = vmatprep.subr.bf16.mxu0 0
    %772 = vmatpush2.bf16.msra.mxu0 0
    %773 = vmatprep.subr.bf16.mxu0 0
    %774 = vmatpush2.bf16.msra.mxu0 0
    %775 = vmatprep.subr.bf16.mxu0 0
    %776 = vmatpush2.bf16.msra.mxu0 0
    %777 = vmatprep.subr.bf16.mxu0 0
    %778 = vmatpush2.bf16.msra.mxu0 0
    %779 = vmatprep.subr.bf16.mxu0 0
    %780 = vmatpush2.bf16.msra.mxu0 0
    %781 = vmatprep.mubr.bf16.mxu0 0
    %782 = vmatmul.mubr.bf16.gmra.mxu0 %v189
    %v783 = vpop.f32.mrf.mxu0
    %v784 = vadd.f32 %v572, %v783
    %v785 = vpop.f32.mrf.mxu0
    %v786 = vadd.f32 %v576, %v785
    %v787 = vpop.f32.mrf.mxu0
    %v788 = vadd.f32 %v572, %v787
    %v789 = vpop.f32.mrf.mxu0
    %v790 = vadd.f32 %v576, %v789
    %791 = vmatprep.mubr.bf16.mxu0 0
    %792 = vmatmul.mubr.bf16.gmra.mxu0 %v190
    %v793 = vpop.f32.mrf.mxu0
    %v794 = vadd.f32 %v572, %v793
    %v795 = vpop.f32.mrf.mxu0
    %v796 = vadd.f32 %v576, %v795
    %v797 = vpop.f32.mrf.mxu0
    %v798 = vadd.f32 %v572, %v797
    %v799 = vpop.f32.mrf.mxu0
    %v800 = vadd.f32 %v576, %v799
    %801 = vmatprep.mubr.bf16.mxu0 0
    %802 = vmatmul.mubr.bf16.gmra.mxu0 %v191
    %v803 = vpop.f32.mrf.mxu0
    %v804 = vadd.f32 %v572, %v803
    %v805 = vpop.f32.mrf.mxu0
    %v806 = vadd.f32 %v576, %v805
    %v807 = vpop.f32.mrf.mxu0
    %v808 = vadd.f32 %v572, %v807
    %v809 = vpop.f32.mrf.mxu0
    %v810 = vadd.f32 %v576, %v809
    %811 = vmatprep.mubr.bf16.mxu0 0
    %812 = vmatmul.mubr.bf16.gmra.mxu0 %v192
    %v813 = vpop.f32.mrf.mxu0
    %v814 = vadd.f32 %v572, %v813
    %v815 = vpop.f32.mrf.mxu0
    %v816 = vadd.f32 %v576, %v815
    %v817 = vpop.f32.mrf.mxu0
    %v818 = vadd.f32 %v572, %v817
    %v819 = vpop.f32.mrf.mxu0
    %v820 = vadd.f32 %v576, %v819
    %821 = vdwg.mxu0
    %822 = vmatprep.subr.bf16.mxu0 %v716
    %823 = vmatpush1.bf16.msra.mxu0 %v715
    %824 = vmatprep.subr.bf16.mxu0 %v712
    %825 = vmatpush1.bf16.msra.mxu0 %v711
    %826 = vmatprep.subr.bf16.mxu0 %v708
    %827 = vmatpush1.bf16.msra.mxu0 %v707
    %828 = vmatprep.subr.bf16.mxu0 %v704
    %829 = vmatpush1.bf16.msra.mxu0 %v703
    %830 = vmatprep.subr.bf16.mxu0 %v700
    %831 = vmatpush1.bf16.msra.mxu0 %v699
    %832 = vmatprep.subr.bf16.mxu0 %v696
    %833 = vmatpush1.bf16.msra.mxu0 %v695
    %834 = vmatprep.subr.bf16.mxu0 %v692
    %835 = vmatpush1.bf16.msra.mxu0 %v691
    %836 = vmatprep.subr.bf16.mxu0 %v688
    %837 = vmatpush1.bf16.msra.mxu0 %v687
    %838 = vmatprep.subr.bf16.mxu0 0
    %839 = vmatpush2.bf16.msra.mxu0 0
    %840 = vmatprep.subr.bf16.mxu0 0
    %841 = vmatpush2.bf16.msra.mxu0 0
    %842 = vmatprep.subr.bf16.mxu0 0
    %843 = vmatpush2.bf16.msra.mxu0 0
    %844 = vmatprep.subr.bf16.mxu0 0
    %845 = vmatpush2.bf16.msra.mxu0 0
    %846 = vmatprep.subr.bf16.mxu0 0
    %847 = vmatpush2.bf16.msra.mxu0 0
    %848 = vmatprep.subr.bf16.mxu0 0
    %849 = vmatpush2.bf16.msra.mxu0 0
    %850 = vmatprep.subr.bf16.mxu0 0
    %851 = vmatpush2.bf16.msra.mxu0 0
    %852 = vmatprep.subr.bf16.mxu0 0
    %853 = vmatpush2.bf16.msra.mxu0 0
    %854 = vmatprep.mubr.bf16.mxu0 0
    %855 = vmatmul.mubr.bf16.gmra.mxu0 %v189
    %v856 = vpop.f32.mrf.mxu0
    %v857 = vadd.f32 %v580, %v856
    %v858 = vpop.f32.mrf.mxu0
    %v859 = vadd.f32 %v584, %v858
    %v860 = vpop.f32.mrf.mxu0
    %v861 = vadd.f32 %v580, %v860
    %v862 = vpop.f32.mrf.mxu0
    %v863 = vadd.f32 %v584, %v862
    %864 = vmatprep.mubr.bf16.mxu0 0
    %865 = vmatmul.mubr.bf16.gmra.mxu0 %v190
    %v866 = vpop.f32.mrf.mxu0
    %v867 = vadd.f32 %v580, %v866
    %v868 = vpop.f32.mrf.mxu0
    %v869 = vadd.f32 %v584, %v868
    %v870 = vpop.f32.mrf.mxu0
    %v871 = vadd.f32 %v580, %v870
    %v872 = vpop.f32.mrf.mxu0
    %v873 = vadd.f32 %v584, %v872
    %874 = vmatprep.mubr.bf16.mxu0 0
    %875 = vmatmul.mubr.bf16.gmra.mxu0 %v191
    %v876 = vpop.f32.mrf.mxu0
    %v877 = vadd.f32 %v580, %v876
    %v878 = vpop.f32.mrf.mxu0
    %v879 = vadd.f32 %v584, %v878
    %v880 = vpop.f32.mrf.mxu0
    %v881 = vadd.f32 %v580, %v880
    %v882 = vpop.f32.mrf.mxu0
    %v883 = vadd.f32 %v584, %v882
    %884 = vmatprep.mubr.bf16.mxu0 0
    %885 = vmatmul.mubr.bf16.gmra.mxu0 %v192
    %v886 = vpop.f32.mrf.mxu0
    %v887 = vadd.f32 %v580, %v886
    %v888 = vpop.f32.mrf.mxu0
    %v889 = vadd.f32 %v584, %v888
    %v890 = vpop.f32.mrf.mxu0
    %v891 = vadd.f32 %v580, %v890
    %v892 = vpop.f32.mrf.mxu0
    %v893 = vadd.f32 %v584, %v892
    %894 = vdwg.mxu0
    %895 = vst [vmem:[#allocation3] sm:$0xff] %v784
    %896 = vst [vmem:[#allocation3 + $0x8] sm:$0xff] %v786
    %897 = vst [vmem:[#allocation3 + $0x10] sm:$0xff] %v857
    %898 = vst [vmem:[#allocation3 + $0x18] sm:$0xff] %v859
    %899 = vst [vmem:[#allocation3 + $0x20] sm:$0xff] %v788
    %900 = vst [vmem:[#allocation3 + $0x28] sm:$0xff] %v790
    %901 = vst [vmem:[#allocation3 + $0x30] sm:$0xff] %v861
    %902 = vst [vmem:[#allocation3 + $0x38] sm:$0xff] %v863
    %903 = vst [vmem:[#allocation3 + $0x40] sm:$0xff] %v794
    %904 = vst [vmem:[#allocation3 + $0x48] sm:$0xff] %v796
    %905 = vst [vmem:[#allocation3 + $0x50] sm:$0xff] %v867
    %906 = vst [vmem:[#allocation3 + $0x58] sm:$0xff] %v869
    %907 = vst [vmem:[#allocation3 + $0x60] sm:$0xff] %v798
    %908 = vst [vmem:[#allocation3 + $0x68] sm:$0xff] %v800
    %909 = vst [vmem:[#allocation3 + $0x70] sm:$0xff] %v871
    %910 = vst [vmem:[#allocation3 + $0x78] sm:$0xff] %v873
    %911 = vst [vmem:[#allocation3 + $0x80] sm:$0xff] %v804
    %912 = vst [vmem:[#allocation3 + $0x88] sm:$0xff] %v806
    %913 = vst [vmem:[#allocation3 + $0x90] sm:$0xff] %v877
    %914 = vst [vmem:[#allocation3 + $0x98] sm:$0xff] %v879
    %915 = vst [vmem:[#allocation3 + $0xa0] sm:$0xff] %v808
    %916 = vst [vmem:[#allocation3 + $0xa8] sm:$0xff] %v810
    %917 = vst [vmem:[#allocation3 + $0xb0] sm:$0xff] %v881
    %918 = vst [vmem:[#allocation3 + $0xb8] sm:$0xff] %v883
    %919 = vst [vmem:[#allocation3 + $0xc0] sm:$0xff] %v814
    %920 = vst [vmem:[#allocation3 + $0xc8] sm:$0xff] %v816
    %921 = vst [vmem:[#allocation3 + $0xd0] sm:$0xff] %v887
    %922 = vst [vmem:[#allocation3 + $0xd8] sm:$0xff] %v889
    %923 = vst [vmem:[#allocation3 + $0xe0] sm:$0xff] %v818
    %924 = vst [vmem:[#allocation3 + $0xe8] sm:$0xff] %v820
    %925 = vst [vmem:[#allocation3 + $0xf0] sm:$0xff] %v891
    %926 = vst [vmem:[#allocation3 + $0xf8] sm:$0xff] %v893
    %v927 = vld [vmem:[#allocation14] sm:$0xff]
    %v928 = vld [vmem:[#allocation14 + $0x8] sm:$0xff]
    %v929 = vld [vmem:[#allocation14 + $0x10] sm:$0xff]
    %v930 = vld [vmem:[#allocation14 + $0x18] sm:$0xff]
    %v931 = vld [vmem:[#allocation14 + $0x20] sm:$0xff]
    %v932 = vld [vmem:[#allocation14 + $0x28] sm:$0xff]
    %v933 = vld [vmem:[#allocation14 + $0x30] sm:$0xff]
    %v934 = vld [vmem:[#allocation14 + $0x38] sm:$0xff]
    %v935 = vld [vmem:[#allocation14 + $0x40] sm:$0xff]
    %v936 = vld [vmem:[#allocation14 + $0x48] sm:$0xff]
    %v937 = vld [vmem:[#allocation14 + $0x50] sm:$0xff]
    %v938 = vld [vmem:[#allocation14 + $0x58] sm:$0xff]
    %v939 = vld [vmem:[#allocation14 + $0x60] sm:$0xff]
    %v940 = vld [vmem:[#allocation14 + $0x68] sm:$0xff]
    %v941 = vld [vmem:[#allocation14 + $0x70] sm:$0xff]
    %v942 = vld [vmem:[#allocation14 + $0x78] sm:$0xff]
    %v943 = vld [vmem:[#allocation14 + $0x80] sm:$0xff]
    %v944 = vld [vmem:[#allocation14 + $0x88] sm:$0xff]
    %v945 = vld [vmem:[#allocation14 + $0x90] sm:$0xff]
    %v946 = vld [vmem:[#allocation14 + $0x98] sm:$0xff]
    %v947 = vld [vmem:[#allocation14 + $0xa0] sm:$0xff]
    %v948 = vld [vmem:[#allocation14 + $0xa8] sm:$0xff]
    %v949 = vld [vmem:[#allocation14 + $0xb0] sm:$0xff]
    %v950 = vld [vmem:[#allocation14 + $0xb8] sm:$0xff]
    %v951 = vld [vmem:[#allocation14 + $0xc0] sm:$0xff]
    %v952 = vld [vmem:[#allocation14 + $0xc8] sm:$0xff]
    %v953 = vld [vmem:[#allocation14 + $0xd0] sm:$0xff]
    %v954 = vld [vmem:[#allocation14 + $0xd8] sm:$0xff]
    %v955 = vld [vmem:[#allocation14 + $0xe0] sm:$0xff]
    %v956 = vld [vmem:[#allocation14 + $0xe8] sm:$0xff]
    %v957 = vld [vmem:[#allocation14 + $0xf0] sm:$0xff]
    %v958 = vld [vmem:[#allocation14 + $0xf8] sm:$0xff]
    %v959 = vld [vmem:[#allocation14 + $0x100] sm:$0xff]
    %v960 = vld [vmem:[#allocation14 + $0x108] sm:$0xff]
    %v961 = vld [vmem:[#allocation14 + $0x110] sm:$0xff]
    %v962 = vld [vmem:[#allocation14 + $0x118] sm:$0xff]
    %v963 = vld [vmem:[#allocation14 + $0x120] sm:$0xff]
    %v964 = vld [vmem:[#allocation14 + $0x128] sm:$0xff]
    %v965 = vld [vmem:[#allocation14 + $0x130] sm:$0xff]
    %v966 = vld [vmem:[#allocation14 + $0x138] sm:$0xff]
    %v967 = vld [vmem:[#allocation14 + $0x140] sm:$0xff]
    %v968 = vld [vmem:[#allocation14 + $0x148] sm:$0xff]
    %v969 = vld [vmem:[#allocation14 + $0x150] sm:$0xff]
    %v970 = vld [vmem:[#allocation14 + $0x158] sm:$0xff]
    %v971 = vld [vmem:[#allocation14 + $0x160] sm:$0xff]
    %v972 = vld [vmem:[#allocation14 + $0x168] sm:$0xff]
    %v973 = vld [vmem:[#allocation14 + $0x170] sm:$0xff]
    %v974 = vld [vmem:[#allocation14 + $0x178] sm:$0xff]
    %v975 = vld [vmem:[#allocation14 + $0x180] sm:$0xff]
    %v976 = vld [vmem:[#allocation14 + $0x188] sm:$0xff]
    %v977 = vld [vmem:[#allocation14 + $0x190] sm:$0xff]
    %v978 = vld [vmem:[#allocation14 + $0x198] sm:$0xff]
    %v979 = vld [vmem:[#allocation14 + $0x1a0] sm:$0xff]
    %v980 = vld [vmem:[#allocation14 + $0x1a8] sm:$0xff]
    %v981 = vld [vmem:[#allocation14 + $0x1b0] sm:$0xff]
    %v982 = vld [vmem:[#allocation14 + $0x1b8] sm:$0xff]
    %v983 = vld [vmem:[#allocation14 + $0x1c0] sm:$0xff]
    %v984 = vld [vmem:[#allocation14 + $0x1c8] sm:$0xff]
    %v985 = vld [vmem:[#allocation14 + $0x1d0] sm:$0xff]
    %v986 = vld [vmem:[#allocation14 + $0x1d8] sm:$0xff]
    %v987 = vld [vmem:[#allocation14 + $0x1e0] sm:$0xff]
    %v988 = vld [vmem:[#allocation14 + $0x1e8] sm:$0xff]
    %v989 = vld [vmem:[#allocation14 + $0x1f0] sm:$0xff]
    %v990 = vld [vmem:[#allocation14 + $0x1f8] sm:$0xff]
    %v991 = vld [vmem:[#allocation2] sm:$0xff]
    %v992 = vld [vmem:[#allocation2 + $0x8] sm:$0xff]
    %v993 = vld [vmem:[#allocation2 + $0x10] sm:$0xff]
    %v994 = vld [vmem:[#allocation2 + $0x18] sm:$0xff]
    %v995 = vld [vmem:[#allocation3 + $0xe0] sm:$0xff]
    %v996 = vld [vmem:[#allocation3 + $0xe8] sm:$0xff]
    %v997 = vld [vmem:[#allocation3 + $0xf0] sm:$0xff]
    %v998 = vld [vmem:[#allocation3 + $0xf8] sm:$0xff]
    %v999 = vmul.f32 %v991, 0.5
    %v1000 = vtanh.pop %v999
    %v1001 = vadd.f32 %v1000, 1.0
    %v1002 = vmul.f32 %v1001, 0.5
    %v1003 = vmul.f32 %v992, 0.5
    %v1004 = vtanh.pop %v1003
    %v1005 = vadd.f32 %v1004, 1.0
    %v1006 = vmul.f32 %v1005, 0.5
    %v1007 = vtanh.pop %v993
    %v1008 = vmul.f32 %v994, 0.5
    %v1009 = vtanh.pop %v1008
    %v1010 = vadd.f32 %v1009, 1.0
    %v1011 = vmul.f32 %v1010, 0.5
    %v1012 = vmul.f32 %v1006, 0.0
    %v1013 = vmul.f32 %v1002, %v1007
    %v1014 = vadd.f32 %v1012, %v1013
    %v1015 = vtanh.pop %v1014
    %v1016 = vmul.f32 %v1011, %v1015
    %v1017 = vmul.f32 %v995, 0.5
    %v1018 = vtanh.pop %v1017
    %v1019 = vadd.f32 %v1018, 1.0
    %v1020 = vmul.f32 %v1019, 0.5
    %v1021 = vmul.f32 %v996, 0.5
    %v1022 = vtanh.pop %v1021
    %v1023 = vadd.f32 %v1022, 1.0
    %v1024 = vmul.f32 %v1023, 0.5
    %v1025 = vtanh.pop %v997
    %v1026 = vmul.f32 %v998, 0.5
    %v1027 = vtanh.pop %v1026
    %v1028 = vadd.f32 %v1027, 1.0
    %v1029 = vmul.f32 %v1028, 0.5
    %v1030 = vmul.f32 %v1024, 0.0
    %v1031 = vmul.f32 %v1020, %v1025
    %v1032 = vadd.f32 %v1030, %v1031
    %v1033 = vtanh.pop %v1032
    %v1034 = vmul.f32 %v1029, %v1033
    %1035 = vst [vmem:[#allocation4] sm:$0xff] %v1016
    %1036 = vst [vmem:[#allocation4 + $0x78] sm:$0xff] %v1034
    %v1037 = vpack.c.bf16 %v1034, %v1016
    %v1102 = vunpack.c.l.b16 %v927
    %v1103 = vunpack.c.h.b16 %v927
    %v1104 = vunpack.c.l.b16 %v928
    %v1105 = vunpack.c.h.b16 %v928
    %v1106 = vunpack.c.l.b16 %v929
    %v1107 = vunpack.c.h.b16 %v929
    %v1108 = vunpack.c.l.b16 %v930
    %v1109 = vunpack.c.h.b16 %v930
    %v1110 = vunpack.c.l.b16 %v931
    %v1111 = vunpack.c.h.b16 %v931
    %v1112 = vunpack.c.l.b16 %v932
    %v1113 = vunpack.c.h.b16 %v932
    %v1114 = vunpack.c.l.b16 %v933
    %v1115 = vunpack.c.h.b16 %v933
    %v1116 = vunpack.c.l.b16 %v934
    %v1117 = vunpack.c.h.b16 %v934
    %v1118 = vunpack.c.l.b16 %v935
    %v1119 = vunpack.c.h.b16 %v935
    %v1120 = vunpack.c.l.b16 %v936
    %v1121 = vunpack.c.h.b16 %v936
    %v1122 = vunpack.c.l.b16 %v937
    %v1123 = vunpack.c.h.b16 %v937
    %v1124 = vunpack.c.l.b16 %v938
    %v1125 = vunpack.c.h.b16 %v938
    %v1126 = vunpack.c.l.b16 %v939
    %v1127 = vunpack.c.h.b16 %v939
    %v1128 = vunpack.c.l.b16 %v940
    %v1129 = vunpack.c.h.b16 %v940
    %v1130 = vunpack.c.l.b16 %v941
    %v1131 = vunpack.c.h.b16 %v941
    %v1132 = vunpack.c.l.b16 %v942
    %v1133 = vunpack.c.h.b16 %v942
    %v1134 = vunpack.c.l.b16 %v943
    %v1135 = vunpack.c.h.b16 %v943
    %v1136 = vunpack.c.l.b16 %v944
    %v1137 = vunpack.c.h.b16 %v944
    %v1138 = vunpack.c.l.b16 %v945
    %v1139 = vunpack.c.h.b16 %v945
    %v1140 = vunpack.c.l.b16 %v946
    %v1141 = vunpack.c.h.b16 %v946
    %v1142 = vunpack.c.l.b16 %v947
    %v1143 = vunpack.c.h.b16 %v947
    %v1144 = vunpack.c.l.b16 %v948
    %v1145 = vunpack.c.h.b16 %v948
    %v1146 = vunpack.c.l.b16 %v949
    %v1147 = vunpack.c.h.b16 %v949
    %v1148 = vunpack.c.l.b16 %v950
    %v1149 = vunpack.c.h.b16 %v950
    %v1150 = vunpack.c.l.b16 %v951
    %v1151 = vunpack.c.h.b16 %v951
    %v1152 = vunpack.c.l.b16 %v952
    %v1153 = vunpack.c.h.b16 %v952
    %v1154 = vunpack.c.l.b16 %v953
    %v1155 = vunpack.c.h.b16 %v953
    %v1156 = vunpack.c.l.b16 %v954
    %v1157 = vunpack.c.h.b16 %v954
    %v1158 = vunpack.c.l.b16 %v955
    %v1159 = vunpack.c.h.b16 %v955
    %v1160 = vunpack.c.l.b16 %v956
    %v1161 = vunpack.c.h.b16 %v956
    %v1162 = vunpack.c.l.b16 %v957
    %v1163 = vunpack.c.h.b16 %v957
    %v1164 = vunpack.c.l.b16 %v958
    %v1165 = vunpack.c.h.b16 %v958
    %v1166 = vunpack.c.l.b16 %v959
    %v1167 = vunpack.c.h.b16 %v959
    %v1168 = vunpack.c.l.b16 %v960
    %v1169 = vunpack.c.h.b16 %v960
    %v1170 = vunpack.c.l.b16 %v961
    %v1171 = vunpack.c.h.b16 %v961
    %v1172 = vunpack.c.l.b16 %v962
    %v1173 = vunpack.c.h.b16 %v962
    %v1174 = vunpack.c.l.b16 %v963
    %v1175 = vunpack.c.h.b16 %v963
    %v1176 = vunpack.c.l.b16 %v964
    %v1177 = vunpack.c.h.b16 %v964
    %v1178 = vunpack.c.l.b16 %v965
    %v1179 = vunpack.c.h.b16 %v965
    %v1180 = vunpack.c.l.b16 %v966
    %v1181 = vunpack.c.h.b16 %v966
    %v1182 = vunpack.c.l.b16 %v967
    %v1183 = vunpack.c.h.b16 %v967
    %v1184 = vunpack.c.l.b16 %v968
    %v1185 = vunpack.c.h.b16 %v968
    %v1186 = vunpack.c.l.b16 %v969
    %v1187 = vunpack.c.h.b16 %v969
    %v1188 = vunpack.c.l.b16 %v970
    %v1189 = vunpack.c.h.b16 %v970
    %v1190 = vunpack.c.l.b16 %v971
    %v1191 = vunpack.c.h.b16 %v971
    %v1192 = vunpack.c.l.b16 %v972
    %v1193 = vunpack.c.h.b16 %v972
    %v1194 = vunpack.c.l.b16 %v973
    %v1195 = vunpack.c.h.b16 %v973
    %v1196 = vunpack.c.l.b16 %v974
    %v1197 = vunpack.c.h.b16 %v974
    %v1198 = vunpack.c.l.b16 %v975
    %v1199 = vunpack.c.h.b16 %v975
    %v1200 = vunpack.c.l.b16 %v976
    %v1201 = vunpack.c.h.b16 %v976
    %v1202 = vunpack.c.l.b16 %v977
    %v1203 = vunpack.c.h.b16 %v977
    %v1204 = vunpack.c.l.b16 %v978
    %v1205 = vunpack.c.h.b16 %v978
    %v1206 = vunpack.c.l.b16 %v979
    %v1207 = vunpack.c.h.b16 %v979
    %v1208 = vunpack.c.l.b16 %v980
    %v1209 = vunpack.c.h.b16 %v980
    %v1210 = vunpack.c.l.b16 %v981
    %v1211 = vunpack.c.h.b16 %v981
    %v1212 = vunpack.c.l.b16 %v982
    %v1213 = vunpack.c.h.b16 %v982
    %v1214 = vunpack.c.l.b16 %v983
    %v1215 = vunpack.c.h.b16 %v983
    %v1216 = vunpack.c.l.b16 %v984
    %v1217 = vunpack.c.h.b16 %v984
    %v1218 = vunpack.c.l.b16 %v985
    %v1219 = vunpack.c.h.b16 %v985
    %v1220 = vunpack.c.l.b16 %v986
    %v1221 = vunpack.c.h.b16 %v986
    %v1222 = vunpack.c.l.b16 %v987
    %v1223 = vunpack.c.h.b16 %v987
    %v1224 = vunpack.c.l.b16 %v988
    %v1225 = vunpack.c.h.b16 %v988
    %v1226 = vunpack.c.l.b16 %v989
    %v1227 = vunpack.c.h.b16 %v989
    %v1228 = vunpack.c.l.b16 %v990
    %v1229 = vunpack.c.h.b16 %v990
    %v1230 = vpack.c.b16 %v1110, %v1102
    %v1231 = vpack.c.b16 %v1111, %v1103
    %v1232 = vpack.c.b16 %v1112, %v1104
    %v1233 = vpack.c.b16 %v1113, %v1105
    %v1234 = vpack.c.b16 %v1114, %v1106
    %v1235 = vpack.c.b16 %v1115, %v1107
    %v1236 = vpack.c.b16 %v1116, %v1108
    %v1237 = vpack.c.b16 %v1117, %v1109
    %v1238 = vpack.c.b16 %v1126, %v1118
    %v1239 = vpack.c.b16 %v1127, %v1119
    %v1240 = vpack.c.b16 %v1128, %v1120
    %v1241 = vpack.c.b16 %v1129, %v1121
    %v1242 = vpack.c.b16 %v1130, %v1122
    %v1243 = vpack.c.b16 %v1131, %v1123
    %v1244 = vpack.c.b16 %v1132, %v1124
    %v1245 = vpack.c.b16 %v1133, %v1125
    %v1246 = vpack.c.b16 %v1142, %v1134
    %v1247 = vpack.c.b16 %v1143, %v1135
    %v1248 = vpack.c.b16 %v1144, %v1136
    %v1249 = vpack.c.b16 %v1145, %v1137
    %v1250 = vpack.c.b16 %v1146, %v1138
    %v1251 = vpack.c.b16 %v1147, %v1139
    %v1252 = vpack.c.b16 %v1148, %v1140
    %v1253 = vpack.c.b16 %v1149, %v1141
    %v1254 = vpack.c.b16 %v1158, %v1150
    %v1255 = vpack.c.b16 %v1159, %v1151
    %v1256 = vpack.c.b16 %v1160, %v1152
    %v1257 = vpack.c.b16 %v1161, %v1153
    %v1258 = vpack.c.b16 %v1162, %v1154
    %v1259 = vpack.c.b16 %v1163, %v1155
    %v1260 = vpack.c.b16 %v1164, %v1156
    %v1261 = vpack.c.b16 %v1165, %v1157
    %v1262 = vpack.c.b16 %v1174, %v1166
    %v1263 = vpack.c.b16 %v1175, %v1167
    %v1264 = vpack.c.b16 %v1176, %v1168
    %v1265 = vpack.c.b16 %v1177, %v1169
    %v1266 = vpack.c.b16 %v1178, %v1170
    %v1267 = vpack.c.b16 %v1179, %v1171
    %v1268 = vpack.c.b16 %v1180, %v1172
    %v1269 = vpack.c.b16 %v1181, %v1173
    %v1270 = vpack.c.b16 %v1190, %v1182
    %v1271 = vpack.c.b16 %v1191, %v1183
    %v1272 = vpack.c.b16 %v1192, %v1184
    %v1273 = vpack.c.b16 %v1193, %v1185
    %v1274 = vpack.c.b16 %v1194, %v1186
    %v1275 = vpack.c.b16 %v1195, %v1187
    %v1276 = vpack.c.b16 %v1196, %v1188
    %v1277 = vpack.c.b16 %v1197, %v1189
    %v1278 = vpack.c.b16 %v1206, %v1198
    %v1279 = vpack.c.b16 %v1207, %v1199
    %v1280 = vpack.c.b16 %v1208, %v1200
    %v1281 = vpack.c.b16 %v1209, %v1201
    %v1282 = vpack.c.b16 %v1210, %v1202
    %v1283 = vpack.c.b16 %v1211, %v1203
    %v1284 = vpack.c.b16 %v1212, %v1204
    %v1285 = vpack.c.b16 %v1213, %v1205
    %v1286 = vpack.c.b16 %v1222, %v1214
    %v1287 = vpack.c.b16 %v1223, %v1215
    %v1288 = vpack.c.b16 %v1224, %v1216
    %v1289 = vpack.c.b16 %v1225, %v1217
    %v1290 = vpack.c.b16 %v1226, %v1218
    %v1291 = vpack.c.b16 %v1227, %v1219
    %v1292 = vpack.c.b16 %v1228, %v1220
    %v1293 = vpack.c.b16 %v1229, %v1221
    %1358 = vmatprep.subr.bf16.mxu0 %v1287
    %1359 = vmatpush1.bf16.msra.mxu0 %v1286
    %1360 = vmatprep.subr.bf16.mxu0 %v1279
    %1361 = vmatpush1.bf16.msra.mxu0 %v1278
    %1362 = vmatprep.subr.bf16.mxu0 %v1271
    %1363 = vmatpush1.bf16.msra.mxu0 %v1270
    %1364 = vmatprep.subr.bf16.mxu0 %v1263
    %1365 = vmatpush1.bf16.msra.mxu0 %v1262
    %1366 = vmatprep.subr.bf16.mxu0 %v1255
    %1367 = vmatpush1.bf16.msra.mxu0 %v1254
    %1368 = vmatprep.subr.bf16.mxu0 %v1247
    %1369 = vmatpush1.bf16.msra.mxu0 %v1246
    %1370 = vmatprep.subr.bf16.mxu0 %v1239
    %1371 = vmatpush1.bf16.msra.mxu0 %v1238
    %1372 = vmatprep.subr.bf16.mxu0 %v1231
    %1373 = vmatpush1.bf16.msra.mxu0 %v1230
    %1374 = vmatprep.subr.bf16.mxu0 0
    %1375 = vmatpush2.bf16.msra.mxu0 0
    %1376 = vmatprep.subr.bf16.mxu0 0
    %1377 = vmatpush2.bf16.msra.mxu0 0
    %1378 = vmatprep.subr.bf16.mxu0 0
    %1379 = vmatpush2.bf16.msra.mxu0 0
    %1380 = vmatprep.subr.bf16.mxu0 0
    %1381 = vmatpush2.bf16.msra.mxu0 0
    %1382 = vmatprep.subr.bf16.mxu0 0
    %1383 = vmatpush2.bf16.msra.mxu0 0
    %1384 = vmatprep.subr.bf16.mxu0 0
    %1385 = vmatpush2.bf16.msra.mxu0 0
    %1386 = vmatprep.subr.bf16.mxu0 0
    %1387 = vmatpush2.bf16.msra.mxu0 0
    %1388 = vmatprep.subr.bf16.mxu0 0
    %1389 = vmatpush2.bf16.msra.mxu0 0
    %1390 = vmatprep.mubr.bf16.mxu0 0
    %1391 = vmatmul.mubr.bf16.gmra.mxu0 %v1037
    %v1392 = vpop.f32.mrf.mxu0
    %v1393 = vadd.f32 0.0, %v1392
    %v1394 = vpop.f32.mrf.mxu0
    %v1395 = vadd.f32 0.0, %v1394
    %v1396 = vpop.f32.mrf.mxu0
    %v1397 = vpop.f32.mrf.mxu0
    %1398 = vdwg.mxu0
    %1399 = vmatprep.subr.bf16.mxu0 %v1289
    %1400 = vmatpush1.bf16.msra.mxu0 %v1288
    %1401 = vmatprep.subr.bf16.mxu0 %v1281
    %1402 = vmatpush1.bf16.msra.mxu0 %v1280
    %1403 = vmatprep.subr.bf16.mxu0 %v1273
    %1404 = vmatpush1.bf16.msra.mxu0 %v1272
    %1405 = vmatprep.subr.bf16.mxu0 %v1265
    %1406 = vmatpush1.bf16.msra.mxu0 %v1264
    %1407 = vmatprep.subr.bf16.mxu0 %v1257
    %1408 = vmatpush1.bf16.msra.mxu0 %v1256
    %1409 = vmatprep.subr.bf16.mxu0 %v1249
    %1410 = vmatpush1.bf16.msra.mxu0 %v1248
    %1411 = vmatprep.subr.bf16.mxu0 %v1241
    %1412 = vmatpush1.bf16.msra.mxu0 %v1240
    %1413 = vmatprep.subr.bf16.mxu0 %v1233
    %1414 = vmatpush1.bf16.msra.mxu0 %v1232
    %1415 = vmatprep.subr.bf16.mxu0 0
    %1416 = vmatpush2.bf16.msra.mxu0 0
    %1417 = vmatprep.subr.bf16.mxu0 0
    %1418 = vmatpush2.bf16.msra.mxu0 0
    %1419 = vmatprep.subr.bf16.mxu0 0
    %1420 = vmatpush2.bf16.msra.mxu0 0
    %1421 = vmatprep.subr.bf16.mxu0 0
    %1422 = vmatpush2.bf16.msra.mxu0 0
    %1423 = vmatprep.subr.bf16.mxu0 0
    %1424 = vmatpush2.bf16.msra.mxu0 0
    %1425 = vmatprep.subr.bf16.mxu0 0
    %1426 = vmatpush2.bf16.msra.mxu0 0
    %1427 = vmatprep.subr.bf16.mxu0 0
    %1428 = vmatpush2.bf16.msra.mxu0 0
    %1429 = vmatprep.subr.bf16.mxu0 0
    %1430 = vmatpush2.bf16.msra.mxu0 0
    %1431 = vmatprep.mubr.bf16.mxu0 0
    %1432 = vmatmul.mubr.bf16.gmra.mxu0 %v1037
    %v1433 = vpop.f32.mrf.mxu0
    %v1434 = vadd.f32 0.0, %v1433
    %v1435 = vpop.f32.mrf.mxu0
    %v1436 = vadd.f32 0.0, %v1435
    %v1437 = vpop.f32.mrf.mxu0
    %v1438 = vpop.f32.mrf.mxu0
    %1439 = vdwg.mxu0
    %1440 = vmatprep.subr.bf16.mxu0 %v1291
    %1441 = vmatpush1.bf16.msra.mxu0 %v1290
    %1442 = vmatprep.subr.bf16.mxu0 %v1283
    %1443 = vmatpush1.bf16.msra.mxu0 %v1282
    %1444 = vmatprep.subr.bf16.mxu0 %v1275
    %1445 = vmatpush1.bf16.msra.mxu0 %v1274
    %1446 = vmatprep.subr.bf16.mxu0 %v1267
    %1447 = vmatpush1.bf16.msra.mxu0 %v1266
    %1448 = vmatprep.subr.bf16.mxu0 %v1259
    %1449 = vmatpush1.bf16.msra.mxu0 %v1258
    %1450 = vmatprep.subr.bf16.mxu0 %v1251
    %1451 = vmatpush1.bf16.msra.mxu0 %v1250
    %1452 = vmatprep.subr.bf16.mxu0 %v1243
    %1453 = vmatpush1.bf16.msra.mxu0 %v1242
    %1454 = vmatprep.subr.bf16.mxu0 %v1235
    %1455 = vmatpush1.bf16.msra.mxu0 %v1234
    %1456 = vmatprep.subr.bf16.mxu0 0
    %1457 = vmatpush2.bf16.msra.mxu0 0
    %1458 = vmatprep.subr.bf16.mxu0 0
    %1459 = vmatpush2.bf16.msra.mxu0 0
    %1460 = vmatprep.subr.bf16.mxu0 0
    %1461 = vmatpush2.bf16.msra.mxu0 0
    %1462 = vmatprep.subr.bf16.mxu0 0
    %1463 = vmatpush2.bf16.msra.mxu0 0
    %1464 = vmatprep.subr.bf16.mxu0 0
    %1465 = vmatpush2.bf16.msra.mxu0 0
    %1466 = vmatprep.subr.bf16.mxu0 0
    %1467 = vmatpush2.bf16.msra.mxu0 0
    %1468 = vmatprep.subr.bf16.mxu0 0
    %1469 = vmatpush2.bf16.msra.mxu0 0
    %1470 = vmatprep.subr.bf16.mxu0 0
    %1471 = vmatpush2.bf16.msra.mxu0 0
    %1472 = vmatprep.mubr.bf16.mxu0 0
    %1473 = vmatmul.mubr.bf16.gmra.mxu0 %v1037
    %v1474 = vpop.f32.mrf.mxu0
    %v1475 = vpop.f32.mrf.mxu0
    %v1476 = vpop.f32.mrf.mxu0
    %v1477 = vadd.f32 0.0, %v1476
    %v1478 = vpop.f32.mrf.mxu0
    %v1479 = vadd.f32 0.0, %v1478
    %1480 = vdwg.mxu0
    %1481 = vmatprep.subr.bf16.mxu0 %v1293
    %1482 = vmatpush1.bf16.msra.mxu0 %v1292
    %1483 = vmatprep.subr.bf16.mxu0 %v1285
    %1484 = vmatpush1.bf16.msra.mxu0 %v1284
    %1485 = vmatprep.subr.bf16.mxu0 %v1277
    %1486 = vmatpush1.bf16.msra.mxu0 %v1276
    %1487 = vmatprep.subr.bf16.mxu0 %v1269
    %1488 = vmatpush1.bf16.msra.mxu0 %v1268
    %1489 = vmatprep.subr.bf16.mxu0 %v1261
    %1490 = vmatpush1.bf16.msra.mxu0 %v1260
    %1491 = vmatprep.subr.bf16.mxu0 %v1253
    %1492 = vmatpush1.bf16.msra.mxu0 %v1252
    %1493 = vmatprep.subr.bf16.mxu0 %v1245
    %1494 = vmatpush1.bf16.msra.mxu0 %v1244
    %1495 = vmatprep.subr.bf16.mxu0 %v1237
    %1496 = vmatpush1.bf16.msra.mxu0 %v1236
    %1497 = vmatprep.subr.bf16.mxu0 0
    %1498 = vmatpush2.bf16.msra.mxu0 0
    %1499 = vmatprep.subr.bf16.mxu0 0
    %1500 = vmatpush2.bf16.msra.mxu0 0
    %1501 = vmatprep.subr.bf16.mxu0 0
    %1502 = vmatpush2.bf16.msra.mxu0 0
    %1503 = vmatprep.subr.bf16.mxu0 0
    %1504 = vmatpush2.bf16.msra.mxu0 0
    %1505 = vmatprep.subr.bf16.mxu0 0
    %1506 = vmatpush2.bf16.msra.mxu0 0
    %1507 = vmatprep.subr.bf16.mxu0 0
    %1508 = vmatpush2.bf16.msra.mxu0 0
    %1509 = vmatprep.subr.bf16.mxu0 0
    %1510 = vmatpush2.bf16.msra.mxu0 0
    %1511 = vmatprep.subr.bf16.mxu0 0
    %1512 = vmatpush2.bf16.msra.mxu0 0
    %1513 = vmatprep.mubr.bf16.mxu0 0
    %1514 = vmatmul.mubr.bf16.gmra.mxu0 %v1037
    %v1515 = vpop.f32.mrf.mxu0
    %v1516 = vpop.f32.mrf.mxu0
    %v1517 = vpop.f32.mrf.mxu0
    %v1518 = vadd.f32 0.0, %v1517
    %v1519 = vpop.f32.mrf.mxu0
    %v1520 = vadd.f32 0.0, %v1519
    %1521 = vdwg.mxu0
    %v1522 = vld [vmem:[#allocation2 + $0x20] sm:$0xff]
    %v1523 = vld [vmem:[#allocation2 + $0x28] sm:$0xff]
    %v1524 = vld [vmem:[#allocation2 + $0x30] sm:$0xff]
    %v1525 = vld [vmem:[#allocation2 + $0x38] sm:$0xff]
    %v1526 = vadd.f32 %v1522, %v1393
    %v1527 = vadd.f32 %v1523, %v1395
    %v1528 = vadd.f32 %v1524, %v1434
    %v1529 = vadd.f32 %v1525, %v1436
    %v1530 = vld [vmem:[#allocation3 + $0xc0] sm:$0xff]
    %v1531 = vld [vmem:[#allocation3 + $0xc8] sm:$0xff]
    %v1532 = vld [vmem:[#allocation3 + $0xd0] sm:$0xff]
    %v1533 = vld [vmem:[#allocation3 + $0xd8] sm:$0xff]
    %v1534 = vadd.f32 %v1530, %v1477
    %v1535 = vadd.f32 %v1531, %v1479
    %v1536 = vadd.f32 %v1532, %v1518
    %v1537 = vadd.f32 %v1533, %v1520
    %v1538 = vmul.f32 %v1526, 0.5
    %v1539 = vtanh.pop %v1538
    %v1540 = vadd.f32 %v1539, 1.0
    %v1541 = vmul.f32 %v1540, 0.5
    %v1542 = vmul.f32 %v1527, 0.5
    %v1543 = vtanh.pop %v1542
    %v1544 = vadd.f32 %v1543, 1.0
    %v1545 = vmul.f32 %v1544, 0.5
    %v1546 = vtanh.pop %v1528
    %v1547 = vmul.f32 %v1529, 0.5
    %v1548 = vtanh.pop %v1547
    %v1549 = vadd.f32 %v1548, 1.0
    %v1550 = vmul.f32 %v1549, 0.5
    %v1551 = vmul.f32 %v1545, %v1014
    %v1552 = vmul.f32 %v1541, %v1546
    %v1553 = vadd.f32 %v1551, %v1552
    %v1554 = vtanh.pop %v1553
    %v1555 = vmul.f32 %v1550, %v1554
    %v1556 = vmul.f32 %v1534, 0.5
    %v1557 = vtanh.pop %v1556
    %v1558 = vadd.f32 %v1557, 1.0
    %v1559 = vmul.f32 %v1558, 0.5
    %v1560 = vmul.f32 %v1535, 0.5
    %v1561 = vtanh.pop %v1560
    %v1562 = vadd.f32 %v1561, 1.0
    %v1563 = vmul.f32 %v1562, 0.5
    %v1564 = vtanh.pop %v1536
    %v1565 = vmul.f32 %v1537, 0.5
    %v1566 = vtanh.pop %v1565
    %v1567 = vadd.f32 %v1566, 1.0
    %v1568 = vmul.f32 %v1567, 0.5
    %v1569 = vmul.f32 %v1563, %v1032
    %v1570 = vmul.f32 %v1559, %v1564
    %v1571 = vadd.f32 %v1569, %v1570
    %v1572 = vtanh.pop %v1571
    %v1573 = vmul.f32 %v1568, %v1572
    %1574 = vst [vmem:[#allocation4 + $0x10] sm:$0xff] %v1555
    %1575 = vst [vmem:[#allocation4 + $0x68] sm:$0xff] %v1573
    %v1576 = vpack.c.bf16 %v1573, %v1555
    %1577 = vmatprep.subr.bf16.mxu0 %v1287
    %1578 = vmatpush1.bf16.msra.mxu0 %v1286
    %1579 = vmatprep.subr.bf16.mxu0 %v1279
    %1580 = vmatpush1.bf16.msra.mxu0 %v1278
    %1581 = vmatprep.subr.bf16.mxu0 %v1271
    %1582 = vmatpush1.bf16.msra.mxu0 %v1270
    %1583 = vmatprep.subr.bf16.mxu0 %v1263
    %1584 = vmatpush1.bf16.msra.mxu0 %v1262
    %1585 = vmatprep.subr.bf16.mxu0 %v1255
    %1586 = vmatpush1.bf16.msra.mxu0 %v1254
    %1587 = vmatprep.subr.bf16.mxu0 %v1247
    %1588 = vmatpush1.bf16.msra.mxu0 %v1246
    %1589 = vmatprep.subr.bf16.mxu0 %v1239
    %1590 = vmatpush1.bf16.msra.mxu0 %v1238
    %1591 = vmatprep.subr.bf16.mxu0 %v1231
    %1592 = vmatpush1.bf16.msra.mxu0 %v1230
    %1593 = vmatprep.subr.bf16.mxu0 0
    %1594 = vmatpush2.bf16.msra.mxu0 0
    %1595 = vmatprep.subr.bf16.mxu0 0
    %1596 = vmatpush2.bf16.msra.mxu0 0
    %1597 = vmatprep.subr.bf16.mxu0 0
    %1598 = vmatpush2.bf16.msra.mxu0 0
    %1599 = vmatprep.subr.bf16.mxu0 0
    %1600 = vmatpush2.bf16.msra.mxu0 0
    %1601 = vmatprep.subr.bf16.mxu0 0
    %1602 = vmatpush2.bf16.msra.mxu0 0
    %1603 = vmatprep.subr.bf16.mxu0 0
    %1604 = vmatpush2.bf16.msra.mxu0 0
    %1605 = vmatprep.subr.bf16.mxu0 0
    %1606 = vmatpush2.bf16.msra.mxu0 0
    %1607 = vmatprep.subr.bf16.mxu0 0
    %1608 = vmatpush2.bf16.msra.mxu0 0
    %1609 = vmatprep.mubr.bf16.mxu0 0
    %1610 = vmatmul.mubr.bf16.gmra.mxu0 %v1576
    %v1611 = vpop.f32.mrf.mxu0
    %v1612 = vadd.f32 0.0, %v1611
    %v1613 = vpop.f32.mrf.mxu0
    %v1614 = vadd.f32 0.0, %v1613
    %v1615 = vpop.f32.mrf.mxu0
    %v1616 = vpop.f32.mrf.mxu0
    %1617 = vdwg.mxu0
    %1618 = vmatprep.subr.bf16.mxu0 %v1289
    %1619 = vmatpush1.bf16.msra.mxu0 %v1288
    %1620 = vmatprep.subr.bf16.mxu0 %v1281
    %1621 = vmatpush1.bf16.msra.mxu0 %v1280
    %1622 = vmatprep.subr.bf16.mxu0 %v1273
    %1623 = vmatpush1.bf16.msra.mxu0 %v1272
    %1624 = vmatprep.subr.bf16.mxu0 %v1265
    %1625 = vmatpush1.bf16.msra.mxu0 %v1264
    %1626 = vmatprep.subr.bf16.mxu0 %v1257
    %1627 = vmatpush1.bf16.msra.mxu0 %v1256
    %1628 = vmatprep.subr.bf16.mxu0 %v1249
    %1629 = vmatpush1.bf16.msra.mxu0 %v1248
    %1630 = vmatprep.subr.bf16.mxu0 %v1241
    %1631 = vmatpush1.bf16.msra.mxu0 %v1240
    %1632 = vmatprep.subr.bf16.mxu0 %v1233
    %1633 = vmatpush1.bf16.msra.mxu0 %v1232
    %1634 = vmatprep.subr.bf16.mxu0 0
    %1635 = vmatpush2.bf16.msra.mxu0 0
    %1636 = vmatprep.subr.bf16.mxu0 0
    %1637 = vmatpush2.bf16.msra.mxu0 0
    %1638 = vmatprep.subr.bf16.mxu0 0
    %1639 = vmatpush2.bf16.msra.mxu0 0
    %1640 = vmatprep.subr.bf16.mxu0 0
    %1641 = vmatpush2.bf16.msra.mxu0 0
    %1642 = vmatprep.subr.bf16.mxu0 0
    %1643 = vmatpush2.bf16.msra.mxu0 0
    %1644 = vmatprep.subr.bf16.mxu0 0
    %1645 = vmatpush2.bf16.msra.mxu0 0
    %1646 = vmatprep.subr.bf16.mxu0 0
    %1647 = vmatpush2.bf16.msra.mxu0 0
    %1648 = vmatprep.subr.bf16.mxu0 0
    %1649 = vmatpush2.bf16.msra.mxu0 0
    %1650 = vmatprep.mubr.bf16.mxu0 0
    %1651 = vmatmul.mubr.bf16.gmra.mxu0 %v1576
    %v1652 = vpop.f32.mrf.mxu0
    %v1653 = vadd.f32 0.0, %v1652
    %v1654 = vpop.f32.mrf.mxu0
    %v1655 = vadd.f32 0.0, %v1654
    %v1656 = vpop.f32.mrf.mxu0
    %v1657 = vpop.f32.mrf.mxu0
    %1658 = vdwg.mxu0
    %1659 = vmatprep.subr.bf16.mxu0 %v1291
    %1660 = vmatpush1.bf16.msra.mxu0 %v1290
    %1661 = vmatprep.subr.bf16.mxu0 %v1283
    %1662 = vmatpush1.bf16.msra.mxu0 %v1282
    %1663 = vmatprep.subr.bf16.mxu0 %v1275
    %1664 = vmatpush1.bf16.msra.mxu0 %v1274
    %1665 = vmatprep.subr.bf16.mxu0 %v1267
    %1666 = vmatpush1.bf16.msra.mxu0 %v1266
    %1667 = vmatprep.subr.bf16.mxu0 %v1259
    %1668 = vmatpush1.bf16.msra.mxu0 %v1258
    %1669 = vmatprep.subr.bf16.mxu0 %v1251
    %1670 = vmatpush1.bf16.msra.mxu0 %v1250
    %1671 = vmatprep.subr.bf16.mxu0 %v1243
    %1672 = vmatpush1.bf16.msra.mxu0 %v1242
    %1673 = vmatprep.subr.bf16.mxu0 %v1235
    %1674 = vmatpush1.bf16.msra.mxu0 %v1234
    %1675 = vmatprep.subr.bf16.mxu0 0
    %1676 = vmatpush2.bf16.msra.mxu0 0
    %1677 = vmatprep.subr.bf16.mxu0 0
    %1678 = vmatpush2.bf16.msra.mxu0 0
    %1679 = vmatprep.subr.bf16.mxu0 0
    %1680 = vmatpush2.bf16.msra.mxu0 0
    %1681 = vmatprep.subr.bf16.mxu0 0
    %1682 = vmatpush2.bf16.msra.mxu0 0
    %1683 = vmatprep.subr.bf16.mxu0 0
    %1684 = vmatpush2.bf16.msra.mxu0 0
    %1685 = vmatprep.subr.bf16.mxu0 0
    %1686 = vmatpush2.bf16.msra.mxu0 0
    %1687 = vmatprep.subr.bf16.mxu0 0
    %1688 = vmatpush2.bf16.msra.mxu0 0
    %1689 = vmatprep.subr.bf16.mxu0 0
    %1690 = vmatpush2.bf16.msra.mxu0 0
    %1691 = vmatprep.mubr.bf16.mxu0 0
    %1692 = vmatmul.mubr.bf16.gmra.mxu0 %v1576
    %v1693 = vpop.f32.mrf.mxu0
    %v1694 = vpop.f32.mrf.mxu0
    %v1695 = vpop.f32.mrf.mxu0
    %v1696 = vadd.f32 0.0, %v1695
    %v1697 = vpop.f32.mrf.mxu0
    %v1698 = vadd.f32 0.0, %v1697
    %1699 = vdwg.mxu0
    %1700 = vmatprep.subr.bf16.mxu0 %v1293
    %1701 = vmatpush1.bf16.msra.mxu0 %v1292
    %1702 = vmatprep.subr.bf16.mxu0 %v1285
    %1703 = vmatpush1.bf16.msra.mxu0 %v1284
    %1704 = vmatprep.subr.bf16.mxu0 %v1277
    %1705 = vmatpush1.bf16.msra.mxu0 %v1276
    %1706 = vmatprep.subr.bf16.mxu0 %v1269
    %1707 = vmatpush1.bf16.msra.mxu0 %v1268
    %1708 = vmatprep.subr.bf16.mxu0 %v1261
    %1709 = vmatpush1.bf16.msra.mxu0 %v1260
    %1710 = vmatprep.subr.bf16.mxu0 %v1253
    %1711 = vmatpush1.bf16.msra.mxu0 %v1252
    %1712 = vmatprep.subr.bf16.mxu0 %v1245
    %1713 = vmatpush1.bf16.msra.mxu0 %v1244
    %1714 = vmatprep.subr.bf16.mxu0 %v1237
    %1715 = vmatpush1.bf16.msra.mxu0 %v1236
    %1716 = vmatprep.subr.bf16.mxu0 0
    %1717 = vmatpush2.bf16.msra.mxu0 0
    %1718 = vmatprep.subr.bf16.mxu0 0
    %1719 = vmatpush2.bf16.msra.mxu0 0
    %1720 = vmatprep.subr.bf16.mxu0 0
    %1721 = vmatpush2.bf16.msra.mxu0 0
    %1722 = vmatprep.subr.bf16.mxu0 0
    %1723 = vmatpush2.bf16.msra.mxu0 0
    %1724 = vmatprep.subr.bf16.mxu0 0
    %1725 = vmatpush2.bf16.msra.mxu0 0
    %1726 = vmatprep.subr.bf16.mxu0 0
    %1727 = vmatpush2.bf16.msra.mxu0 0
    %1728 = vmatprep.subr.bf16.mxu0 0
    %1729 = vmatpush2.bf16.msra.mxu0 0
    %1730 = vmatprep.subr.bf16.mxu0 0
    %1731 = vmatpush2.bf16.msra.mxu0 0
    %1732 = vmatprep.mubr.bf16.mxu0 0
    %1733 = vmatmul.mubr.bf16.gmra.mxu0 %v1576
    %v1734 = vpop.f32.mrf.mxu0
    %v1735 = vpop.f32.mrf.mxu0
    %v1736 = vpop.f32.mrf.mxu0
    %v1737 = vadd.f32 0.0, %v1736
    %v1738 = vpop.f32.mrf.mxu0
    %v1739 = vadd.f32 0.0, %v1738
    %1740 = vdwg.mxu0
    %v1741 = vld [vmem:[#allocation2 + $0x40] sm:$0xff]
    %v1742 = vld [vmem:[#allocation2 + $0x48] sm:$0xff]
    %v1743 = vld [vmem:[#allocation2 + $0x50] sm:$0xff]
    %v1744 = vld [vmem:[#allocation2 + $0x58] sm:$0xff]
    %v1745 = vadd.f32 %v1741, %v1612
    %v1746 = vadd.f32 %v1742, %v1614
    %v1747 = vadd.f32 %v1743, %v1653
    %v1748 = vadd.f32 %v1744, %v1655
    %v1749 = vld [vmem:[#allocation3 + $0xa0] sm:$0xff]
    %v1750 = vld [vmem:[#allocation3 + $0xa8] sm:$0xff]
    %v1751 = vld [vmem:[#allocation3 + $0xb0] sm:$0xff]
    %v1752 = vld [vmem:[#allocation3 + $0xb8] sm:$0xff]
    %v1753 = vadd.f32 %v1749, %v1696
    %v1754 = vadd.f32 %v1750, %v1698
    %v1755 = vadd.f32 %v1751, %v1737
    %v1756 = vadd.f32 %v1752, %v1739
    %v1757 = vmul.f32 %v1745, 0.5
    %v1758 = vtanh.pop %v1757
    %v1759 = vadd.f32 %v1758, 1.0
    %v1760 = vmul.f32 %v1759, 0.5
    %v1761 = vmul.f32 %v1746, 0.5
    %v1762 = vtanh.pop %v1761
    %v1763 = vadd.f32 %v1762, 1.0
    %v1764 = vmul.f32 %v1763, 0.5
    %v1765 = vtanh.pop %v1747
    %v1766 = vmul.f32 %v1748, 0.5
    %v1767 = vtanh.pop %v1766
    %v1768 = vadd.f32 %v1767, 1.0
    %v1769 = vmul.f32 %v1768, 0.5
    %v1770 = vmul.f32 %v1764, %v1553
    %v1771 = vmul.f32 %v1760, %v1765
    %v1772 = vadd.f32 %v1770, %v1771
    %v1773 = vtanh.pop %v1772
    %v1774 = vmul.f32 %v1769, %v1773
    %v1775 = vmul.f32 %v1753, 0.5
    %v1776 = vtanh.pop %v1775
    %v1777 = vadd.f32 %v1776, 1.0
    %v1778 = vmul.f32 %v1777, 0.5
    %v1779 = vmul.f32 %v1754, 0.5
    %v1780 = vtanh.pop %v1779
    %v1781 = vadd.f32 %v1780, 1.0
    %v1782 = vmul.f32 %v1781, 0.5
    %v1783 = vtanh.pop %v1755
    %v1784 = vmul.f32 %v1756, 0.5
    %v1785 = vtanh.pop %v1784
    %v1786 = vadd.f32 %v1785, 1.0
    %v1787 = vmul.f32 %v1786, 0.5
    %v1788 = vmul.f32 %v1782, %v1571
    %v1789 = vmul.f32 %v1778, %v1783
    %v1790 = vadd.f32 %v1788, %v1789
    %v1791 = vtanh.pop %v1790
    %v1792 = vmul.f32 %v1787, %v1791
    %1793 = vst [vmem:[#allocation4 + $0x20] sm:$0xff] %v1774
    %1794 = vst [vmem:[#allocation4 + $0x58] sm:$0xff] %v1792
    %v1795 = vpack.c.bf16 %v1792, %v1774
    %1796 = vmatprep.subr.bf16.mxu0 %v1287
    %1797 = vmatpush1.bf16.msra.mxu0 %v1286
    %1798 = vmatprep.subr.bf16.mxu0 %v1279
    %1799 = vmatpush1.bf16.msra.mxu0 %v1278
    %1800 = vmatprep.subr.bf16.mxu0 %v1271
    %1801 = vmatpush1.bf16.msra.mxu0 %v1270
    %1802 = vmatprep.subr.bf16.mxu0 %v1263
    %1803 = vmatpush1.bf16.msra.mxu0 %v1262
    %1804 = vmatprep.subr.bf16.mxu0 %v1255
    %1805 = vmatpush1.bf16.msra.mxu0 %v1254
    %1806 = vmatprep.subr.bf16.mxu0 %v1247
    %1807 = vmatpush1.bf16.msra.mxu0 %v1246
    %1808 = vmatprep.subr.bf16.mxu0 %v1239
    %1809 = vmatpush1.bf16.msra.mxu0 %v1238
    %1810 = vmatprep.subr.bf16.mxu0 %v1231
    %1811 = vmatpush1.bf16.msra.mxu0 %v1230
    %1812 = vmatprep.subr.bf16.mxu0 0
    %1813 = vmatpush2.bf16.msra.mxu0 0
    %1814 = vmatprep.subr.bf16.mxu0 0
    %1815 = vmatpush2.bf16.msra.mxu0 0
    %1816 = vmatprep.subr.bf16.mxu0 0
    %1817 = vmatpush2.bf16.msra.mxu0 0
    %1818 = vmatprep.subr.bf16.mxu0 0
    %1819 = vmatpush2.bf16.msra.mxu0 0
    %1820 = vmatprep.subr.bf16.mxu0 0
    %1821 = vmatpush2.bf16.msra.mxu0 0
    %1822 = vmatprep.subr.bf16.mxu0 0
    %1823 = vmatpush2.bf16.msra.mxu0 0
    %1824 = vmatprep.subr.bf16.mxu0 0
    %1825 = vmatpush2.bf16.msra.mxu0 0
    %1826 = vmatprep.subr.bf16.mxu0 0
    %1827 = vmatpush2.bf16.msra.mxu0 0
    %1828 = vmatprep.mubr.bf16.mxu0 0
    %1829 = vmatmul.mubr.bf16.gmra.mxu0 %v1795
    %v1830 = vpop.f32.mrf.mxu0
    %v1831 = vadd.f32 0.0, %v1830
    %v1832 = vpop.f32.mrf.mxu0
    %v1833 = vadd.f32 0.0, %v1832
    %v1834 = vpop.f32.mrf.mxu0
    %v1835 = vpop.f32.mrf.mxu0
    %1836 = vdwg.mxu0
    %1837 = vmatprep.subr.bf16.mxu0 %v1289
    %1838 = vmatpush1.bf16.msra.mxu0 %v1288
    %1839 = vmatprep.subr.bf16.mxu0 %v1281
    %1840 = vmatpush1.bf16.msra.mxu0 %v1280
    %1841 = vmatprep.subr.bf16.mxu0 %v1273
    %1842 = vmatpush1.bf16.msra.mxu0 %v1272
    %1843 = vmatprep.subr.bf16.mxu0 %v1265
    %1844 = vmatpush1.bf16.msra.mxu0 %v1264
    %1845 = vmatprep.subr.bf16.mxu0 %v1257
    %1846 = vmatpush1.bf16.msra.mxu0 %v1256
    %1847 = vmatprep.subr.bf16.mxu0 %v1249
    %1848 = vmatpush1.bf16.msra.mxu0 %v1248
    %1849 = vmatprep.subr.bf16.mxu0 %v1241
    %1850 = vmatpush1.bf16.msra.mxu0 %v1240
    %1851 = vmatprep.subr.bf16.mxu0 %v1233
    %1852 = vmatpush1.bf16.msra.mxu0 %v1232
    %1853 = vmatprep.subr.bf16.mxu0 0
    %1854 = vmatpush2.bf16.msra.mxu0 0
    %1855 = vmatprep.subr.bf16.mxu0 0
    %1856 = vmatpush2.bf16.msra.mxu0 0
    %1857 = vmatprep.subr.bf16.mxu0 0
    %1858 = vmatpush2.bf16.msra.mxu0 0
    %1859 = vmatprep.subr.bf16.mxu0 0
    %1860 = vmatpush2.bf16.msra.mxu0 0
    %1861 = vmatprep.subr.bf16.mxu0 0
    %1862 = vmatpush2.bf16.msra.mxu0 0
    %1863 = vmatprep.subr.bf16.mxu0 0
    %1864 = vmatpush2.bf16.msra.mxu0 0
    %1865 = vmatprep.subr.bf16.mxu0 0
    %1866 = vmatpush2.bf16.msra.mxu0 0
    %1867 = vmatprep.subr.bf16.mxu0 0
    %1868 = vmatpush2.bf16.msra.mxu0 0
    %1869 = vmatprep.mubr.bf16.mxu0 0
    %1870 = vmatmul.mubr.bf16.gmra.mxu0 %v1795
    %v1871 = vpop.f32.mrf.mxu0
    %v1872 = vadd.f32 0.0, %v1871
    %v1873 = vpop.f32.mrf.mxu0
    %v1874 = vadd.f32 0.0, %v1873
    %v1875 = vpop.f32.mrf.mxu0
    %v1876 = vpop.f32.mrf.mxu0
    %1877 = vdwg.mxu0
    %1878 = vmatprep.subr.bf16.mxu0 %v1291
    %1879 = vmatpush1.bf16.msra.mxu0 %v1290
    %1880 = vmatprep.subr.bf16.mxu0 %v1283
    %1881 = vmatpush1.bf16.msra.mxu0 %v1282
    %1882 = vmatprep.subr.bf16.mxu0 %v1275
    %1883 = vmatpush1.bf16.msra.mxu0 %v1274
    %1884 = vmatprep.subr.bf16.mxu0 %v1267
    %1885 = vmatpush1.bf16.msra.mxu0 %v1266
    %1886 = vmatprep.subr.bf16.mxu0 %v1259
    %1887 = vmatpush1.bf16.msra.mxu0 %v1258
    %1888 = vmatprep.subr.bf16.mxu0 %v1251
    %1889 = vmatpush1.bf16.msra.mxu0 %v1250
    %1890 = vmatprep.subr.bf16.mxu0 %v1243
    %1891 = vmatpush1.bf16.msra.mxu0 %v1242
    %1892 = vmatprep.subr.bf16.mxu0 %v1235
    %1893 = vmatpush1.bf16.msra.mxu0 %v1234
    %1894 = vmatprep.subr.bf16.mxu0 0
    %1895 = vmatpush2.bf16.msra.mxu0 0
    %1896 = vmatprep.subr.bf16.mxu0 0
    %1897 = vmatpush2.bf16.msra.mxu0 0
    %1898 = vmatprep.subr.bf16.mxu0 0
    %1899 = vmatpush2.bf16.msra.mxu0 0
    %1900 = vmatprep.subr.bf16.mxu0 0
    %1901 = vmatpush2.bf16.msra.mxu0 0
    %1902 = vmatprep.subr.bf16.mxu0 0
    %1903 = vmatpush2.bf16.msra.mxu0 0
    %1904 = vmatprep.subr.bf16.mxu0 0
    %1905 = vmatpush2.bf16.msra.mxu0 0
    %1906 = vmatprep.subr.bf16.mxu0 0
    %1907 = vmatpush2.bf16.msra.mxu0 0
    %1908 = vmatprep.subr.bf16.mxu0 0
    %1909 = vmatpush2.bf16.msra.mxu0 0
    %1910 = vmatprep.mubr.bf16.mxu0 0
    %1911 = vmatmul.mubr.bf16.gmra.mxu0 %v1795
    %v1912 = vpop.f32.mrf.mxu0
    %v1913 = vpop.f32.mrf.mxu0
    %v1914 = vpop.f32.mrf.mxu0
    %v1915 = vadd.f32 0.0, %v1914
    %v1916 = vpop.f32.mrf.mxu0
    %v1917 = vadd.f32 0.0, %v1916
    %1918 = vdwg.mxu0
    %1919 = vmatprep.subr.bf16.mxu0 %v1293
    %1920 = vmatpush1.bf16.msra.mxu0 %v1292
    %1921 = vmatprep.subr.bf16.mxu0 %v1285
    %1922 = vmatpush1.bf16.msra.mxu0 %v1284
    %1923 = vmatprep.subr.bf16.mxu0 %v1277
    %1924 = vmatpush1.bf16.msra.mxu0 %v1276
    %1925 = vmatprep.subr.bf16.mxu0 %v1269
    %1926 = vmatpush1.bf16.msra.mxu0 %v1268
    %1927 = vmatprep.subr.bf16.mxu0 %v1261
    %1928 = vmatpush1.bf16.msra.mxu0 %v1260
    %1929 = vmatprep.subr.bf16.mxu0 %v1253
    %1930 = vmatpush1.bf16.msra.mxu0 %v1252
    %1931 = vmatprep.subr.bf16.mxu0 %v1245
    %1932 = vmatpush1.bf16.msra.mxu0 %v1244
    %1933 = vmatprep.subr.bf16.mxu0 %v1237
    %1934 = vmatpush1.bf16.msra.mxu0 %v1236
    %1935 = vmatprep.subr.bf16.mxu0 0
    %1936 = vmatpush2.bf16.msra.mxu0 0
    %1937 = vmatprep.subr.bf16.mxu0 0
    %1938 = vmatpush2.bf16.msra.mxu0 0
    %1939 = vmatprep.subr.bf16.mxu0 0
    %1940 = vmatpush2.bf16.msra.mxu0 0
    %1941 = vmatprep.subr.bf16.mxu0 0
    %1942 = vmatpush2.bf16.msra.mxu0 0
    %1943 = vmatprep.subr.bf16.mxu0 0
    %1944 = vmatpush2.bf16.msra.mxu0 0
    %1945 = vmatprep.subr.bf16.mxu0 0
    %1946 = vmatpush2.bf16.msra.mxu0 0
    %1947 = vmatprep.subr.bf16.mxu0 0
    %1948 = vmatpush2.bf16.msra.mxu0 0
    %1949 = vmatprep.subr.bf16.mxu0 0
    %1950 = vmatpush2.bf16.msra.mxu0 0
    %1951 = vmatprep.mubr.bf16.mxu0 0
    %1952 = vmatmul.mubr.bf16.gmra.mxu0 %v1795
    %v1953 = vpop.f32.mrf.mxu0
    %v1954 = vpop.f32.mrf.mxu0
    %v1955 = vpop.f32.mrf.mxu0
    %v1956 = vadd.f32 0.0, %v1955
    %v1957 = vpop.f32.mrf.mxu0
    %v1958 = vadd.f32 0.0, %v1957
    %1959 = vdwg.mxu0
    %v1960 = vld [vmem:[#allocation2 + $0x60] sm:$0xff]
    %v1961 = vld [vmem:[#allocation2 + $0x68] sm:$0xff]
    %v1962 = vld [vmem:[#allocation2 + $0x70] sm:$0xff]
    %v1963 = vld [vmem:[#allocation2 + $0x78] sm:$0xff]
    %v1964 = vadd.f32 %v1960, %v1831
    %v1965 = vadd.f32 %v1961, %v1833
    %v1966 = vadd.f32 %v1962, %v1872
    %v1967 = vadd.f32 %v1963, %v1874
    %v1968 = vld [vmem:[#allocation3 + $0x80] sm:$0xff]
    %v1969 = vld [vmem:[#allocation3 + $0x88] sm:$0xff]
    %v1970 = vld [vmem:[#allocation3 + $0x90] sm:$0xff]
    %v1971 = vld [vmem:[#allocation3 + $0x98] sm:$0xff]
    %v1972 = vadd.f32 %v1968, %v1915
    %v1973 = vadd.f32 %v1969, %v1917
    %v1974 = vadd.f32 %v1970, %v1956
    %v1975 = vadd.f32 %v1971, %v1958
    %v1976 = vmul.f32 %v1964, 0.5
    %v1977 = vtanh.pop %v1976
    %v1978 = vadd.f32 %v1977, 1.0
    %v1979 = vmul.f32 %v1978, 0.5
    %v1980 = vmul.f32 %v1965, 0.5
    %v1981 = vtanh.pop %v1980
    %v1982 = vadd.f32 %v1981, 1.0
    %v1983 = vmul.f32 %v1982, 0.5
    %v1984 = vtanh.pop %v1966
    %v1985 = vmul.f32 %v1967, 0.5
    %v1986 = vtanh.pop %v1985
    %v1987 = vadd.f32 %v1986, 1.0
    %v1988 = vmul.f32 %v1987, 0.5
    %v1989 = vmul.f32 %v1983, %v1772
    %v1990 = vmul.f32 %v1979, %v1984
    %v1991 = vadd.f32 %v1989, %v1990
    %v1992 = vtanh.pop %v1991
    %v1993 = vmul.f32 %v1988, %v1992
    %v1994 = vmul.f32 %v1972, 0.5
    %v1995 = vtanh.pop %v1994
    %v1996 = vadd.f32 %v1995, 1.0
    %v1997 = vmul.f32 %v1996, 0.5
    %v1998 = vmul.f32 %v1973, 0.5
    %v1999 = vtanh.pop %v1998
    %v2000 = vadd.f32 %v1999, 1.0
    %v2001 = vmul.f32 %v2000, 0.5
    %v2002 = vtanh.pop %v1974
    %v2003 = vmul.f32 %v1975, 0.5
    %v2004 = vtanh.pop %v2003
    %v2005 = vadd.f32 %v2004, 1.0
    %v2006 = vmul.f32 %v2005, 0.5
    %v2007 = vmul.f32 %v2001, %v1790
    %v2008 = vmul.f32 %v1997, %v2002
    %v2009 = vadd.f32 %v2007, %v2008
    %v2010 = vtanh.pop %v2009
    %v2011 = vmul.f32 %v2006, %v2010
    %2012 = vst [vmem:[#allocation4 + $0x30] sm:$0xff] %v1993
    %2013 = vst [vmem:[#allocation4 + $0x48] sm:$0xff] %v2011
    %v2014 = vpack.c.bf16 %v2011, %v1993
    %2015 = vmatprep.subr.bf16.mxu0 %v1287
    %2016 = vmatpush1.bf16.msra.mxu0 %v1286
    %2017 = vmatprep.subr.bf16.mxu0 %v1279
    %2018 = vmatpush1.bf16.msra.mxu0 %v1278
    %2019 = vmatprep.subr.bf16.mxu0 %v1271
    %2020 = vmatpush1.bf16.msra.mxu0 %v1270
    %2021 = vmatprep.subr.bf16.mxu0 %v1263
    %2022 = vmatpush1.bf16.msra.mxu0 %v1262
    %2023 = vmatprep.subr.bf16.mxu0 %v1255
    %2024 = vmatpush1.bf16.msra.mxu0 %v1254
    %2025 = vmatprep.subr.bf16.mxu0 %v1247
    %2026 = vmatpush1.bf16.msra.mxu0 %v1246
    %2027 = vmatprep.subr.bf16.mxu0 %v1239
    %2028 = vmatpush1.bf16.msra.mxu0 %v1238
    %2029 = vmatprep.subr.bf16.mxu0 %v1231
    %2030 = vmatpush1.bf16.msra.mxu0 %v1230
    %2031 = vmatprep.subr.bf16.mxu0 0
    %2032 = vmatpush2.bf16.msra.mxu0 0
    %2033 = vmatprep.subr.bf16.mxu0 0
    %2034 = vmatpush2.bf16.msra.mxu0 0
    %2035 = vmatprep.subr.bf16.mxu0 0
    %2036 = vmatpush2.bf16.msra.mxu0 0
    %2037 = vmatprep.subr.bf16.mxu0 0
    %2038 = vmatpush2.bf16.msra.mxu0 0
    %2039 = vmatprep.subr.bf16.mxu0 0
    %2040 = vmatpush2.bf16.msra.mxu0 0
    %2041 = vmatprep.subr.bf16.mxu0 0
    %2042 = vmatpush2.bf16.msra.mxu0 0
    %2043 = vmatprep.subr.bf16.mxu0 0
    %2044 = vmatpush2.bf16.msra.mxu0 0
    %2045 = vmatprep.subr.bf16.mxu0 0
    %2046 = vmatpush2.bf16.msra.mxu0 0
    %2047 = vmatprep.mubr.bf16.mxu0 0
    %2048 = vmatmul.mubr.bf16.gmra.mxu0 %v2014
    %v2049 = vpop.f32.mrf.mxu0
    %v2050 = vadd.f32 0.0, %v2049
    %v2051 = vpop.f32.mrf.mxu0
    %v2052 = vadd.f32 0.0, %v2051
    %v2053 = vpop.f32.mrf.mxu0
    %v2054 = vpop.f32.mrf.mxu0
    %2055 = vdwg.mxu0
    %2056 = vmatprep.subr.bf16.mxu0 %v1289
    %2057 = vmatpush1.bf16.msra.mxu0 %v1288
    %2058 = vmatprep.subr.bf16.mxu0 %v1281
    %2059 = vmatpush1.bf16.msra.mxu0 %v1280
    %2060 = vmatprep.subr.bf16.mxu0 %v1273
    %2061 = vmatpush1.bf16.msra.mxu0 %v1272
    %2062 = vmatprep.subr.bf16.mxu0 %v1265
    %2063 = vmatpush1.bf16.msra.mxu0 %v1264
    %2064 = vmatprep.subr.bf16.mxu0 %v1257
    %2065 = vmatpush1.bf16.msra.mxu0 %v1256
    %2066 = vmatprep.subr.bf16.mxu0 %v1249
    %2067 = vmatpush1.bf16.msra.mxu0 %v1248
    %2068 = vmatprep.subr.bf16.mxu0 %v1241
    %2069 = vmatpush1.bf16.msra.mxu0 %v1240
    %2070 = vmatprep.subr.bf16.mxu0 %v1233
    %2071 = vmatpush1.bf16.msra.mxu0 %v1232
    %2072 = vmatprep.subr.bf16.mxu0 0
    %2073 = vmatpush2.bf16.msra.mxu0 0
    %2074 = vmatprep.subr.bf16.mxu0 0
    %2075 = vmatpush2.bf16.msra.mxu0 0
    %2076 = vmatprep.subr.bf16.mxu0 0
    %2077 = vmatpush2.bf16.msra.mxu0 0
    %2078 = vmatprep.subr.bf16.mxu0 0
    %2079 = vmatpush2.bf16.msra.mxu0 0
    %2080 = vmatprep.subr.bf16.mxu0 0
    %2081 = vmatpush2.bf16.msra.mxu0 0
    %2082 = vmatprep.subr.bf16.mxu0 0
    %2083 = vmatpush2.bf16.msra.mxu0 0
    %2084 = vmatprep.subr.bf16.mxu0 0
    %2085 = vmatpush2.bf16.msra.mxu0 0
    %2086 = vmatprep.subr.bf16.mxu0 0
    %2087 = vmatpush2.bf16.msra.mxu0 0
    %2088 = vmatprep.mubr.bf16.mxu0 0
    %2089 = vmatmul.mubr.bf16.gmra.mxu0 %v2014
    %v2090 = vpop.f32.mrf.mxu0
    %v2091 = vadd.f32 0.0, %v2090
    %v2092 = vpop.f32.mrf.mxu0
    %v2093 = vadd.f32 0.0, %v2092
    %v2094 = vpop.f32.mrf.mxu0
    %v2095 = vpop.f32.mrf.mxu0
    %2096 = vdwg.mxu0
    %2097 = vmatprep.subr.bf16.mxu0 %v1291
    %2098 = vmatpush1.bf16.msra.mxu0 %v1290
    %2099 = vmatprep.subr.bf16.mxu0 %v1283
    %2100 = vmatpush1.bf16.msra.mxu0 %v1282
    %2101 = vmatprep.subr.bf16.mxu0 %v1275
    %2102 = vmatpush1.bf16.msra.mxu0 %v1274
    %2103 = vmatprep.subr.bf16.mxu0 %v1267
    %2104 = vmatpush1.bf16.msra.mxu0 %v1266
    %2105 = vmatprep.subr.bf16.mxu0 %v1259
    %2106 = vmatpush1.bf16.msra.mxu0 %v1258
    %2107 = vmatprep.subr.bf16.mxu0 %v1251
    %2108 = vmatpush1.bf16.msra.mxu0 %v1250
    %2109 = vmatprep.subr.bf16.mxu0 %v1243
    %2110 = vmatpush1.bf16.msra.mxu0 %v1242
    %2111 = vmatprep.subr.bf16.mxu0 %v1235
    %2112 = vmatpush1.bf16.msra.mxu0 %v1234
    %2113 = vmatprep.subr.bf16.mxu0 0
    %2114 = vmatpush2.bf16.msra.mxu0 0
    %2115 = vmatprep.subr.bf16.mxu0 0
    %2116 = vmatpush2.bf16.msra.mxu0 0
    %2117 = vmatprep.subr.bf16.mxu0 0
    %2118 = vmatpush2.bf16.msra.mxu0 0
    %2119 = vmatprep.subr.bf16.mxu0 0
    %2120 = vmatpush2.bf16.msra.mxu0 0
    %2121 = vmatprep.subr.bf16.mxu0 0
    %2122 = vmatpush2.bf16.msra.mxu0 0
    %2123 = vmatprep.subr.bf16.mxu0 0
    %2124 = vmatpush2.bf16.msra.mxu0 0
    %2125 = vmatprep.subr.bf16.mxu0 0
    %2126 = vmatpush2.bf16.msra.mxu0 0
    %2127 = vmatprep.subr.bf16.mxu0 0
    %2128 = vmatpush2.bf16.msra.mxu0 0
    %2129 = vmatprep.mubr.bf16.mxu0 0
    %2130 = vmatmul.mubr.bf16.gmra.mxu0 %v2014
    %v2131 = vpop.f32.mrf.mxu0
    %v2132 = vpop.f32.mrf.mxu0
    %v2133 = vpop.f32.mrf.mxu0
    %v2134 = vadd.f32 0.0, %v2133
    %v2135 = vpop.f32.mrf.mxu0
    %v2136 = vadd.f32 0.0, %v2135
    %2137 = vdwg.mxu0
    %2138 = vmatprep.subr.bf16.mxu0 %v1293
    %2139 = vmatpush1.bf16.msra.mxu0 %v1292
    %2140 = vmatprep.subr.bf16.mxu0 %v1285
    %2141 = vmatpush1.bf16.msra.mxu0 %v1284
    %2142 = vmatprep.subr.bf16.mxu0 %v1277
    %2143 = vmatpush1.bf16.msra.mxu0 %v1276
    %2144 = vmatprep.subr.bf16.mxu0 %v1269
    %2145 = vmatpush1.bf16.msra.mxu0 %v1268
    %2146 = vmatprep.subr.bf16.mxu0 %v1261
    %2147 = vmatpush1.bf16.msra.mxu0 %v1260
    %2148 = vmatprep.subr.bf16.mxu0 %v1253
    %2149 = vmatpush1.bf16.msra.mxu0 %v1252
    %2150 = vmatprep.subr.bf16.mxu0 %v1245
    %2151 = vmatpush1.bf16.msra.mxu0 %v1244
    %2152 = vmatprep.subr.bf16.mxu0 %v1237
    %2153 = vmatpush1.bf16.msra.mxu0 %v1236
    %2154 = vmatprep.subr.bf16.mxu0 0
    %2155 = vmatpush2.bf16.msra.mxu0 0
    %2156 = vmatprep.subr.bf16.mxu0 0
    %2157 = vmatpush2.bf16.msra.mxu0 0
    %2158 = vmatprep.subr.bf16.mxu0 0
    %2159 = vmatpush2.bf16.msra.mxu0 0
    %2160 = vmatprep.subr.bf16.mxu0 0
    %2161 = vmatpush2.bf16.msra.mxu0 0
    %2162 = vmatprep.subr.bf16.mxu0 0
    %2163 = vmatpush2.bf16.msra.mxu0 0
    %2164 = vmatprep.subr.bf16.mxu0 0
    %2165 = vmatpush2.bf16.msra.mxu0 0
    %2166 = vmatprep.subr.bf16.mxu0 0
    %2167 = vmatpush2.bf16.msra.mxu0 0
    %2168 = vmatprep.subr.bf16.mxu0 0
    %2169 = vmatpush2.bf16.msra.mxu0 0
    %2170 = vmatprep.mubr.bf16.mxu0 0
    %2171 = vmatmul.mubr.bf16.gmra.mxu0 %v2014
    %v2172 = vpop.f32.mrf.mxu0
    %v2173 = vpop.f32.mrf.mxu0
    %v2174 = vpop.f32.mrf.mxu0
    %v2175 = vadd.f32 0.0, %v2174
    %v2176 = vpop.f32.mrf.mxu0
    %v2177 = vadd.f32 0.0, %v2176
    %2178 = vdwg.mxu0
    %v2179 = vld [vmem:[#allocation2 + $0x80] sm:$0xff]
    %v2180 = vld [vmem:[#allocation2 + $0x88] sm:$0xff]
    %v2181 = vld [vmem:[#allocation2 + $0x90] sm:$0xff]
    %v2182 = vld [vmem:[#allocation2 + $0x98] sm:$0xff]
    %v2183 = vadd.f32 %v2179, %v2050
    %v2184 = vadd.f32 %v2180, %v2052
    %v2185 = vadd.f32 %v2181, %v2091
    %v2186 = vadd.f32 %v2182, %v2093
    %v2187 = vld [vmem:[#allocation3 + $0x60] sm:$0xff]
    %v2188 = vld [vmem:[#allocation3 + $0x68] sm:$0xff]
    %v2189 = vld [vmem:[#allocation3 + $0x70] sm:$0xff]
    %v2190 = vld [vmem:[#allocation3 + $0x78] sm:$0xff]
    %v2191 = vadd.f32 %v2187, %v2134
    %v2192 = vadd.f32 %v2188, %v2136
    %v2193 = vadd.f32 %v2189, %v2175
    %v2194 = vadd.f32 %v2190, %v2177
    %v2195 = vmul.f32 %v2183, 0.5
    %v2196 = vtanh.pop %v2195
    %v2197 = vadd.f32 %v2196, 1.0
    %v2198 = vmul.f32 %v2197, 0.5
    %v2199 = vmul.f32 %v2184, 0.5
    %v2200 = vtanh.pop %v2199
    %v2201 = vadd.f32 %v2200, 1.0
    %v2202 = vmul.f32 %v2201, 0.5
    %v2203 = vtanh.pop %v2185
    %v2204 = vmul.f32 %v2186, 0.5
    %v2205 = vtanh.pop %v2204
    %v2206 = vadd.f32 %v2205, 1.0
    %v2207 = vmul.f32 %v2206, 0.5
    %v2208 = vmul.f32 %v2202, %v1991
    %v2209 = vmul.f32 %v2198, %v2203
    %v2210 = vadd.f32 %v2208, %v2209
    %v2211 = vtanh.pop %v2210
    %v2212 = vmul.f32 %v2207, %v2211
    %v2213 = vmul.f32 %v2191, 0.5
    %v2214 = vtanh.pop %v2213
    %v2215 = vadd.f32 %v2214, 1.0
    %v2216 = vmul.f32 %v2215, 0.5
    %v2217 = vmul.f32 %v2192, 0.5
    %v2218 = vtanh.pop %v2217
    %v2219 = vadd.f32 %v2218, 1.0
    %v2220 = vmul.f32 %v2219, 0.5
    %v2221 = vtanh.pop %v2193
    %v2222 = vmul.f32 %v2194, 0.5
    %v2223 = vtanh.pop %v2222
    %v2224 = vadd.f32 %v2223, 1.0
    %v2225 = vmul.f32 %v2224, 0.5
    %v2226 = vmul.f32 %v2220, %v2009
    %v2227 = vmul.f32 %v2216, %v2221
    %v2228 = vadd.f32 %v2226, %v2227
    %v2229 = vtanh.pop %v2228
    %v2230 = vmul.f32 %v2225, %v2229
    %2231 = vst [vmem:[#allocation4 + $0x40] sm:$0xff] %v2212
    %2232 = vst [vmem:[#allocation4 + $0x38] sm:$0xff] %v2230
    %v2233 = vpack.c.bf16 %v2230, %v2212
    %2234 = vmatprep.subr.bf16.mxu0 %v1287
    %2235 = vmatpush1.bf16.msra.mxu0 %v1286
    %2236 = vmatprep.subr.bf16.mxu0 %v1279
    %2237 = vmatpush1.bf16.msra.mxu0 %v1278
    %2238 = vmatprep.subr.bf16.mxu0 %v1271
    %2239 = vmatpush1.bf16.msra.mxu0 %v1270
    %2240 = vmatprep.subr.bf16.mxu0 %v1263
    %2241 = vmatpush1.bf16.msra.mxu0 %v1262
    %2242 = vmatprep.subr.bf16.mxu0 %v1255
    %2243 = vmatpush1.bf16.msra.mxu0 %v1254
    %2244 = vmatprep.subr.bf16.mxu0 %v1247
    %2245 = vmatpush1.bf16.msra.mxu0 %v1246
    %2246 = vmatprep.subr.bf16.mxu0 %v1239
    %2247 = vmatpush1.bf16.msra.mxu0 %v1238
    %2248 = vmatprep.subr.bf16.mxu0 %v1231
    %2249 = vmatpush1.bf16.msra.mxu0 %v1230
    %2250 = vmatprep.subr.bf16.mxu0 0
    %2251 = vmatpush2.bf16.msra.mxu0 0
    %2252 = vmatprep.subr.bf16.mxu0 0
    %2253 = vmatpush2.bf16.msra.mxu0 0
    %2254 = vmatprep.subr.bf16.mxu0 0
    %2255 = vmatpush2.bf16.msra.mxu0 0
    %2256 = vmatprep.subr.bf16.mxu0 0
    %2257 = vmatpush2.bf16.msra.mxu0 0
    %2258 = vmatprep.subr.bf16.mxu0 0
    %2259 = vmatpush2.bf16.msra.mxu0 0
    %2260 = vmatprep.subr.bf16.mxu0 0
    %2261 = vmatpush2.bf16.msra.mxu0 0
    %2262 = vmatprep.subr.bf16.mxu0 0
    %2263 = vmatpush2.bf16.msra.mxu0 0
    %2264 = vmatprep.subr.bf16.mxu0 0
    %2265 = vmatpush2.bf16.msra.mxu0 0
    %2266 = vmatprep.mubr.bf16.mxu0 0
    %2267 = vmatmul.mubr.bf16.gmra.mxu0 %v2233
    %v2268 = vpop.f32.mrf.mxu0
    %v2269 = vadd.f32 0.0, %v2268
    %v2270 = vpop.f32.mrf.mxu0
    %v2271 = vadd.f32 0.0, %v2270
    %v2272 = vpop.f32.mrf.mxu0
    %v2273 = vpop.f32.mrf.mxu0
    %2274 = vdwg.mxu0
    %2275 = vmatprep.subr.bf16.mxu0 %v1289
    %2276 = vmatpush1.bf16.msra.mxu0 %v1288
    %2277 = vmatprep.subr.bf16.mxu0 %v1281
    %2278 = vmatpush1.bf16.msra.mxu0 %v1280
    %2279 = vmatprep.subr.bf16.mxu0 %v1273
    %2280 = vmatpush1.bf16.msra.mxu0 %v1272
    %2281 = vmatprep.subr.bf16.mxu0 %v1265
    %2282 = vmatpush1.bf16.msra.mxu0 %v1264
    %2283 = vmatprep.subr.bf16.mxu0 %v1257
    %2284 = vmatpush1.bf16.msra.mxu0 %v1256
    %2285 = vmatprep.subr.bf16.mxu0 %v1249
    %2286 = vmatpush1.bf16.msra.mxu0 %v1248
    %2287 = vmatprep.subr.bf16.mxu0 %v1241
    %2288 = vmatpush1.bf16.msra.mxu0 %v1240
    %2289 = vmatprep.subr.bf16.mxu0 %v1233
    %2290 = vmatpush1.bf16.msra.mxu0 %v1232
    %2291 = vmatprep.subr.bf16.mxu0 0
    %2292 = vmatpush2.bf16.msra.mxu0 0
    %2293 = vmatprep.subr.bf16.mxu0 0
    %2294 = vmatpush2.bf16.msra.mxu0 0
    %2295 = vmatprep.subr.bf16.mxu0 0
    %2296 = vmatpush2.bf16.msra.mxu0 0
    %2297 = vmatprep.subr.bf16.mxu0 0
    %2298 = vmatpush2.bf16.msra.mxu0 0
    %2299 = vmatprep.subr.bf16.mxu0 0
    %2300 = vmatpush2.bf16.msra.mxu0 0
    %2301 = vmatprep.subr.bf16.mxu0 0
    %2302 = vmatpush2.bf16.msra.mxu0 0
    %2303 = vmatprep.subr.bf16.mxu0 0
    %2304 = vmatpush2.bf16.msra.mxu0 0
    %2305 = vmatprep.subr.bf16.mxu0 0
    %2306 = vmatpush2.bf16.msra.mxu0 0
    %2307 = vmatprep.mubr.bf16.mxu0 0
    %2308 = vmatmul.mubr.bf16.gmra.mxu0 %v2233
    %v2309 = vpop.f32.mrf.mxu0
    %v2310 = vadd.f32 0.0, %v2309
    %v2311 = vpop.f32.mrf.mxu0
    %v2312 = vadd.f32 0.0, %v2311
    %v2313 = vpop.f32.mrf.mxu0
    %v2314 = vpop.f32.mrf.mxu0
    %2315 = vdwg.mxu0
    %2316 = vmatprep.subr.bf16.mxu0 %v1291
    %2317 = vmatpush1.bf16.msra.mxu0 %v1290
    %2318 = vmatprep.subr.bf16.mxu0 %v1283
    %2319 = vmatpush1.bf16.msra.mxu0 %v1282
    %2320 = vmatprep.subr.bf16.mxu0 %v1275
    %2321 = vmatpush1.bf16.msra.mxu0 %v1274
    %2322 = vmatprep.subr.bf16.mxu0 %v1267
    %2323 = vmatpush1.bf16.msra.mxu0 %v1266
    %2324 = vmatprep.subr.bf16.mxu0 %v1259
    %2325 = vmatpush1.bf16.msra.mxu0 %v1258
    %2326 = vmatprep.subr.bf16.mxu0 %v1251
    %2327 = vmatpush1.bf16.msra.mxu0 %v1250
    %2328 = vmatprep.subr.bf16.mxu0 %v1243
    %2329 = vmatpush1.bf16.msra.mxu0 %v1242
    %2330 = vmatprep.subr.bf16.mxu0 %v1235
    %2331 = vmatpush1.bf16.msra.mxu0 %v1234
    %2332 = vmatprep.subr.bf16.mxu0 0
    %2333 = vmatpush2.bf16.msra.mxu0 0
    %2334 = vmatprep.subr.bf16.mxu0 0
    %2335 = vmatpush2.bf16.msra.mxu0 0
    %2336 = vmatprep.subr.bf16.mxu0 0
    %2337 = vmatpush2.bf16.msra.mxu0 0
    %2338 = vmatprep.subr.bf16.mxu0 0
    %2339 = vmatpush2.bf16.msra.mxu0 0
    %2340 = vmatprep.subr.bf16.mxu0 0
    %2341 = vmatpush2.bf16.msra.mxu0 0
    %2342 = vmatprep.subr.bf16.mxu0 0
    %2343 = vmatpush2.bf16.msra.mxu0 0
    %2344 = vmatprep.subr.bf16.mxu0 0
    %2345 = vmatpush2.bf16.msra.mxu0 0
    %2346 = vmatprep.subr.bf16.mxu0 0
    %2347 = vmatpush2.bf16.msra.mxu0 0
    %2348 = vmatprep.mubr.bf16.mxu0 0
    %2349 = vmatmul.mubr.bf16.gmra.mxu0 %v2233
    %v2350 = vpop.f32.mrf.mxu0
    %v2351 = vpop.f32.mrf.mxu0
    %v2352 = vpop.f32.mrf.mxu0
    %v2353 = vadd.f32 0.0, %v2352
    %v2354 = vpop.f32.mrf.mxu0
    %v2355 = vadd.f32 0.0, %v2354
    %2356 = vdwg.mxu0
    %2357 = vmatprep.subr.bf16.mxu0 %v1293
    %2358 = vmatpush1.bf16.msra.mxu0 %v1292
    %2359 = vmatprep.subr.bf16.mxu0 %v1285
    %2360 = vmatpush1.bf16.msra.mxu0 %v1284
    %2361 = vmatprep.subr.bf16.mxu0 %v1277
    %2362 = vmatpush1.bf16.msra.mxu0 %v1276
    %2363 = vmatprep.subr.bf16.mxu0 %v1269
    %2364 = vmatpush1.bf16.msra.mxu0 %v1268
    %2365 = vmatprep.subr.bf16.mxu0 %v1261
    %2366 = vmatpush1.bf16.msra.mxu0 %v1260
    %2367 = vmatprep.subr.bf16.mxu0 %v1253
    %2368 = vmatpush1.bf16.msra.mxu0 %v1252
    %2369 = vmatprep.subr.bf16.mxu0 %v1245
    %2370 = vmatpush1.bf16.msra.mxu0 %v1244
    %2371 = vmatprep.subr.bf16.mxu0 %v1237
    %2372 = vmatpush1.bf16.msra.mxu0 %v1236
    %2373 = vmatprep.subr.bf16.mxu0 0
    %2374 = vmatpush2.bf16.msra.mxu0 0
    %2375 = vmatprep.subr.bf16.mxu0 0
    %2376 = vmatpush2.bf16.msra.mxu0 0
    %2377 = vmatprep.subr.bf16.mxu0 0
    %2378 = vmatpush2.bf16.msra.mxu0 0
    %2379 = vmatprep.subr.bf16.mxu0 0
    %2380 = vmatpush2.bf16.msra.mxu0 0
    %2381 = vmatprep.subr.bf16.mxu0 0
    %2382 = vmatpush2.bf16.msra.mxu0 0
    %2383 = vmatprep.subr.bf16.mxu0 0
    %2384 = vmatpush2.bf16.msra.mxu0 0
    %2385 = vmatprep.subr.bf16.mxu0 0
    %2386 = vmatpush2.bf16.msra.mxu0 0
    %2387 = vmatprep.subr.bf16.mxu0 0
    %2388 = vmatpush2.bf16.msra.mxu0 0
    %2389 = vmatprep.mubr.bf16.mxu0 0
    %2390 = vmatmul.mubr.bf16.gmra.mxu0 %v2233
    %v2391 = vpop.f32.mrf.mxu0
    %v2392 = vpop.f32.mrf.mxu0
    %v2393 = vpop.f32.mrf.mxu0
    %v2394 = vadd.f32 0.0, %v2393
    %v2395 = vpop.f32.mrf.mxu0
    %v2396 = vadd.f32 0.0, %v2395
    %2397 = vdwg.mxu0
    %v2398 = vld [vmem:[#allocation2 + $0xa0] sm:$0xff]
    %v2399 = vld [vmem:[#allocation2 + $0xa8] sm:$0xff]
    %v2400 = vld [vmem:[#allocation2 + $0xb0] sm:$0xff]
    %v2401 = vld [vmem:[#allocation2 + $0xb8] sm:$0xff]
    %v2402 = vadd.f32 %v2398, %v2269
    %v2403 = vadd.f32 %v2399, %v2271
    %v2404 = vadd.f32 %v2400, %v2310
    %v2405 = vadd.f32 %v2401, %v2312
    %v2406 = vld [vmem:[#allocation3 + $0x40] sm:$0xff]
    %v2407 = vld [vmem:[#allocation3 + $0x48] sm:$0xff]
    %v2408 = vld [vmem:[#allocation3 + $0x50] sm:$0xff]
    %v2409 = vld [vmem:[#allocation3 + $0x58] sm:$0xff]
    %v2410 = vadd.f32 %v2406, %v2353
    %v2411 = vadd.f32 %v2407, %v2355
    %v2412 = vadd.f32 %v2408, %v2394
    %v2413 = vadd.f32 %v2409, %v2396
    %v2414 = vmul.f32 %v2402, 0.5
    %v2415 = vtanh.pop %v2414
    %v2416 = vadd.f32 %v2415, 1.0
    %v2417 = vmul.f32 %v2416, 0.5
    %v2418 = vmul.f32 %v2403, 0.5
    %v2419 = vtanh.pop %v2418
    %v2420 = vadd.f32 %v2419, 1.0
    %v2421 = vmul.f32 %v2420, 0.5
    %v2422 = vtanh.pop %v2404
    %v2423 = vmul.f32 %v2405, 0.5
    %v2424 = vtanh.pop %v2423
    %v2425 = vadd.f32 %v2424, 1.0
    %v2426 = vmul.f32 %v2425, 0.5
    %v2427 = vmul.f32 %v2421, %v2210
    %v2428 = vmul.f32 %v2417, %v2422
    %v2429 = vadd.f32 %v2427, %v2428
    %v2430 = vtanh.pop %v2429
    %v2431 = vmul.f32 %v2426, %v2430
    %v2432 = vmul.f32 %v2410, 0.5
    %v2433 = vtanh.pop %v2432
    %v2434 = vadd.f32 %v2433, 1.0
    %v2435 = vmul.f32 %v2434, 0.5
    %v2436 = vmul.f32 %v2411, 0.5
    %v2437 = vtanh.pop %v2436
    %v2438 = vadd.f32 %v2437, 1.0
    %v2439 = vmul.f32 %v2438, 0.5
    %v2440 = vtanh.pop %v2412
    %v2441 = vmul.f32 %v2413, 0.5
    %v2442 = vtanh.pop %v2441
    %v2443 = vadd.f32 %v2442, 1.0
    %v2444 = vmul.f32 %v2443, 0.5
    %v2445 = vmul.f32 %v2439, %v2228
    %v2446 = vmul.f32 %v2435, %v2440
    %v2447 = vadd.f32 %v2445, %v2446
    %v2448 = vtanh.pop %v2447
    %v2449 = vmul.f32 %v2444, %v2448
    %2450 = vst [vmem:[#allocation4 + $0x50] sm:$0xff] %v2431
    %2451 = vst [vmem:[#allocation4 + $0x28] sm:$0xff] %v2449
    %v2452 = vpack.c.bf16 %v2449, %v2431
    %2453 = vmatprep.subr.bf16.mxu0 %v1287
    %2454 = vmatpush1.bf16.msra.mxu0 %v1286
    %2455 = vmatprep.subr.bf16.mxu0 %v1279
    %2456 = vmatpush1.bf16.msra.mxu0 %v1278
    %2457 = vmatprep.subr.bf16.mxu0 %v1271
    %2458 = vmatpush1.bf16.msra.mxu0 %v1270
    %2459 = vmatprep.subr.bf16.mxu0 %v1263
    %2460 = vmatpush1.bf16.msra.mxu0 %v1262
    %2461 = vmatprep.subr.bf16.mxu0 %v1255
    %2462 = vmatpush1.bf16.msra.mxu0 %v1254
    %2463 = vmatprep.subr.bf16.mxu0 %v1247
    %2464 = vmatpush1.bf16.msra.mxu0 %v1246
    %2465 = vmatprep.subr.bf16.mxu0 %v1239
    %2466 = vmatpush1.bf16.msra.mxu0 %v1238
    %2467 = vmatprep.subr.bf16.mxu0 %v1231
    %2468 = vmatpush1.bf16.msra.mxu0 %v1230
    %2469 = vmatprep.subr.bf16.mxu0 0
    %2470 = vmatpush2.bf16.msra.mxu0 0
    %2471 = vmatprep.subr.bf16.mxu0 0
    %2472 = vmatpush2.bf16.msra.mxu0 0
    %2473 = vmatprep.subr.bf16.mxu0 0
    %2474 = vmatpush2.bf16.msra.mxu0 0
    %2475 = vmatprep.subr.bf16.mxu0 0
    %2476 = vmatpush2.bf16.msra.mxu0 0
    %2477 = vmatprep.subr.bf16.mxu0 0
    %2478 = vmatpush2.bf16.msra.mxu0 0
    %2479 = vmatprep.subr.bf16.mxu0 0
    %2480 = vmatpush2.bf16.msra.mxu0 0
    %2481 = vmatprep.subr.bf16.mxu0 0
    %2482 = vmatpush2.bf16.msra.mxu0 0
    %2483 = vmatprep.subr.bf16.mxu0 0
    %2484 = vmatpush2.bf16.msra.mxu0 0
    %2485 = vmatprep.mubr.bf16.mxu0 0
    %2486 = vmatmul.mubr.bf16.gmra.mxu0 %v2452
    %v2487 = vpop.f32.mrf.mxu0
    %v2488 = vadd.f32 0.0, %v2487
    %v2489 = vpop.f32.mrf.mxu0
    %v2490 = vadd.f32 0.0, %v2489
    %v2491 = vpop.f32.mrf.mxu0
    %v2492 = vpop.f32.mrf.mxu0
    %2493 = vdwg.mxu0
    %2494 = vmatprep.subr.bf16.mxu0 %v1289
    %2495 = vmatpush1.bf16.msra.mxu0 %v1288
    %2496 = vmatprep.subr.bf16.mxu0 %v1281
    %2497 = vmatpush1.bf16.msra.mxu0 %v1280
    %2498 = vmatprep.subr.bf16.mxu0 %v1273
    %2499 = vmatpush1.bf16.msra.mxu0 %v1272
    %2500 = vmatprep.subr.bf16.mxu0 %v1265
    %2501 = vmatpush1.bf16.msra.mxu0 %v1264
    %2502 = vmatprep.subr.bf16.mxu0 %v1257
    %2503 = vmatpush1.bf16.msra.mxu0 %v1256
    %2504 = vmatprep.subr.bf16.mxu0 %v1249
    %2505 = vmatpush1.bf16.msra.mxu0 %v1248
    %2506 = vmatprep.subr.bf16.mxu0 %v1241
    %2507 = vmatpush1.bf16.msra.mxu0 %v1240
    %2508 = vmatprep.subr.bf16.mxu0 %v1233
    %2509 = vmatpush1.bf16.msra.mxu0 %v1232
    %2510 = vmatprep.subr.bf16.mxu0 0
    %2511 = vmatpush2.bf16.msra.mxu0 0
    %2512 = vmatprep.subr.bf16.mxu0 0
    %2513 = vmatpush2.bf16.msra.mxu0 0
    %2514 = vmatprep.subr.bf16.mxu0 0
    %2515 = vmatpush2.bf16.msra.mxu0 0
    %2516 = vmatprep.subr.bf16.mxu0 0
    %2517 = vmatpush2.bf16.msra.mxu0 0
    %2518 = vmatprep.subr.bf16.mxu0 0
    %2519 = vmatpush2.bf16.msra.mxu0 0
    %2520 = vmatprep.subr.bf16.mxu0 0
    %2521 = vmatpush2.bf16.msra.mxu0 0
    %2522 = vmatprep.subr.bf16.mxu0 0
    %2523 = vmatpush2.bf16.msra.mxu0 0
    %2524 = vmatprep.subr.bf16.mxu0 0
    %2525 = vmatpush2.bf16.msra.mxu0 0
    %2526 = vmatprep.mubr.bf16.mxu0 0
    %2527 = vmatmul.mubr.bf16.gmra.mxu0 %v2452
    %v2528 = vpop.f32.mrf.mxu0
    %v2529 = vadd.f32 0.0, %v2528
    %v2530 = vpop.f32.mrf.mxu0
    %v2531 = vadd.f32 0.0, %v2530
    %v2532 = vpop.f32.mrf.mxu0
    %v2533 = vpop.f32.mrf.mxu0
    %2534 = vdwg.mxu0
    %2535 = vmatprep.subr.bf16.mxu0 %v1291
    %2536 = vmatpush1.bf16.msra.mxu0 %v1290
    %2537 = vmatprep.subr.bf16.mxu0 %v1283
    %2538 = vmatpush1.bf16.msra.mxu0 %v1282
    %2539 = vmatprep.subr.bf16.mxu0 %v1275
    %2540 = vmatpush1.bf16.msra.mxu0 %v1274
    %2541 = vmatprep.subr.bf16.mxu0 %v1267
    %2542 = vmatpush1.bf16.msra.mxu0 %v1266
    %2543 = vmatprep.subr.bf16.mxu0 %v1259
    %2544 = vmatpush1.bf16.msra.mxu0 %v1258
    %2545 = vmatprep.subr.bf16.mxu0 %v1251
    %2546 = vmatpush1.bf16.msra.mxu0 %v1250
    %2547 = vmatprep.subr.bf16.mxu0 %v1243
    %2548 = vmatpush1.bf16.msra.mxu0 %v1242
    %2549 = vmatprep.subr.bf16.mxu0 %v1235
    %2550 = vmatpush1.bf16.msra.mxu0 %v1234
    %2551 = vmatprep.subr.bf16.mxu0 0
    %2552 = vmatpush2.bf16.msra.mxu0 0
    %2553 = vmatprep.subr.bf16.mxu0 0
    %2554 = vmatpush2.bf16.msra.mxu0 0
    %2555 = vmatprep.subr.bf16.mxu0 0
    %2556 = vmatpush2.bf16.msra.mxu0 0
    %2557 = vmatprep.subr.bf16.mxu0 0
    %2558 = vmatpush2.bf16.msra.mxu0 0
    %2559 = vmatprep.subr.bf16.mxu0 0
    %2560 = vmatpush2.bf16.msra.mxu0 0
    %2561 = vmatprep.subr.bf16.mxu0 0
    %2562 = vmatpush2.bf16.msra.mxu0 0
    %2563 = vmatprep.subr.bf16.mxu0 0
    %2564 = vmatpush2.bf16.msra.mxu0 0
    %2565 = vmatprep.subr.bf16.mxu0 0
    %2566 = vmatpush2.bf16.msra.mxu0 0
    %2567 = vmatprep.mubr.bf16.mxu0 0
    %2568 = vmatmul.mubr.bf16.gmra.mxu0 %v2452
    %v2569 = vpop.f32.mrf.mxu0
    %v2570 = vpop.f32.mrf.mxu0
    %v2571 = vpop.f32.mrf.mxu0
    %v2572 = vadd.f32 0.0, %v2571
    %v2573 = vpop.f32.mrf.mxu0
    %v2574 = vadd.f32 0.0, %v2573
    %2575 = vdwg.mxu0
    %2576 = vmatprep.subr.bf16.mxu0 %v1293
    %2577 = vmatpush1.bf16.msra.mxu0 %v1292
    %2578 = vmatprep.subr.bf16.mxu0 %v1285
    %2579 = vmatpush1.bf16.msra.mxu0 %v1284
    %2580 = vmatprep.subr.bf16.mxu0 %v1277
    %2581 = vmatpush1.bf16.msra.mxu0 %v1276
    %2582 = vmatprep.subr.bf16.mxu0 %v1269
    %2583 = vmatpush1.bf16.msra.mxu0 %v1268
    %2584 = vmatprep.subr.bf16.mxu0 %v1261
    %2585 = vmatpush1.bf16.msra.mxu0 %v1260
    %2586 = vmatprep.subr.bf16.mxu0 %v1253
    %2587 = vmatpush1.bf16.msra.mxu0 %v1252
    %2588 = vmatprep.subr.bf16.mxu0 %v1245
    %2589 = vmatpush1.bf16.msra.mxu0 %v1244
    %2590 = vmatprep.subr.bf16.mxu0 %v1237
    %2591 = vmatpush1.bf16.msra.mxu0 %v1236
    %2592 = vmatprep.subr.bf16.mxu0 0
    %2593 = vmatpush2.bf16.msra.mxu0 0
    %2594 = vmatprep.subr.bf16.mxu0 0
    %2595 = vmatpush2.bf16.msra.mxu0 0
    %2596 = vmatprep.subr.bf16.mxu0 0
    %2597 = vmatpush2.bf16.msra.mxu0 0
    %2598 = vmatprep.subr.bf16.mxu0 0
    %2599 = vmatpush2.bf16.msra.mxu0 0
    %2600 = vmatprep.subr.bf16.mxu0 0
    %2601 = vmatpush2.bf16.msra.mxu0 0
    %2602 = vmatprep.subr.bf16.mxu0 0
    %2603 = vmatpush2.bf16.msra.mxu0 0
    %2604 = vmatprep.subr.bf16.mxu0 0
    %2605 = vmatpush2.bf16.msra.mxu0 0
    %2606 = vmatprep.subr.bf16.mxu0 0
    %2607 = vmatpush2.bf16.msra.mxu0 0
    %2608 = vmatprep.mubr.bf16.mxu0 0
    %2609 = vmatmul.mubr.bf16.gmra.mxu0 %v2452
    %v2610 = vpop.f32.mrf.mxu0
    %v2611 = vpop.f32.mrf.mxu0
    %v2612 = vpop.f32.mrf.mxu0
    %v2613 = vadd.f32 0.0, %v2612
    %v2614 = vpop.f32.mrf.mxu0
    %v2615 = vadd.f32 0.0, %v2614
    %2616 = vdwg.mxu0
    %v2617 = vld [vmem:[#allocation2 + $0xc0] sm:$0xff]
    %v2618 = vld [vmem:[#allocation2 + $0xc8] sm:$0xff]
    %v2619 = vld [vmem:[#allocation2 + $0xd0] sm:$0xff]
    %v2620 = vld [vmem:[#allocation2 + $0xd8] sm:$0xff]
    %v2621 = vadd.f32 %v2617, %v2488
    %v2622 = vadd.f32 %v2618, %v2490
    %v2623 = vadd.f32 %v2619, %v2529
    %v2624 = vadd.f32 %v2620, %v2531
    %v2625 = vld [vmem:[#allocation3 + $0x20] sm:$0xff]
    %v2626 = vld [vmem:[#allocation3 + $0x28] sm:$0xff]
    %v2627 = vld [vmem:[#allocation3 + $0x30] sm:$0xff]
    %v2628 = vld [vmem:[#allocation3 + $0x38] sm:$0xff]
    %v2629 = vadd.f32 %v2625, %v2572
    %v2630 = vadd.f32 %v2626, %v2574
    %v2631 = vadd.f32 %v2627, %v2613
    %v2632 = vadd.f32 %v2628, %v2615
    %v2633 = vmul.f32 %v2621, 0.5
    %v2634 = vtanh.pop %v2633
    %v2635 = vadd.f32 %v2634, 1.0
    %v2636 = vmul.f32 %v2635, 0.5
    %v2637 = vmul.f32 %v2622, 0.5
    %v2638 = vtanh.pop %v2637
    %v2639 = vadd.f32 %v2638, 1.0
    %v2640 = vmul.f32 %v2639, 0.5
    %v2641 = vtanh.pop %v2623
    %v2642 = vmul.f32 %v2624, 0.5
    %v2643 = vtanh.pop %v2642
    %v2644 = vadd.f32 %v2643, 1.0
    %v2645 = vmul.f32 %v2644, 0.5
    %v2646 = vmul.f32 %v2640, %v2429
    %v2647 = vmul.f32 %v2636, %v2641
    %v2648 = vadd.f32 %v2646, %v2647
    %v2649 = vtanh.pop %v2648
    %v2650 = vmul.f32 %v2645, %v2649
    %v2651 = vmul.f32 %v2629, 0.5
    %v2652 = vtanh.pop %v2651
    %v2653 = vadd.f32 %v2652, 1.0
    %v2654 = vmul.f32 %v2653, 0.5
    %v2655 = vmul.f32 %v2630, 0.5
    %v2656 = vtanh.pop %v2655
    %v2657 = vadd.f32 %v2656, 1.0
    %v2658 = vmul.f32 %v2657, 0.5
    %v2659 = vtanh.pop %v2631
    %v2660 = vmul.f32 %v2632, 0.5
    %v2661 = vtanh.pop %v2660
    %v2662 = vadd.f32 %v2661, 1.0
    %v2663 = vmul.f32 %v2662, 0.5
    %v2664 = vmul.f32 %v2658, %v2447
    %v2665 = vmul.f32 %v2654, %v2659
    %v2666 = vadd.f32 %v2664, %v2665
    %v2667 = vtanh.pop %v2666
    %v2668 = vmul.f32 %v2663, %v2667
    %2669 = vst [vmem:[#allocation4 + $0x60] sm:$0xff] %v2650
    %2670 = vst [vmem:[#allocation4 + $0x18] sm:$0xff] %v2668
    %v2671 = vpack.c.bf16 %v2668, %v2650
    %2672 = vmatprep.subr.bf16.mxu0 %v1287
    %2673 = vmatpush1.bf16.msra.mxu0 %v1286
    %2674 = vmatprep.subr.bf16.mxu0 %v1279
    %2675 = vmatpush1.bf16.msra.mxu0 %v1278
    %2676 = vmatprep.subr.bf16.mxu0 %v1271
    %2677 = vmatpush1.bf16.msra.mxu0 %v1270
    %2678 = vmatprep.subr.bf16.mxu0 %v1263
    %2679 = vmatpush1.bf16.msra.mxu0 %v1262
    %2680 = vmatprep.subr.bf16.mxu0 %v1255
    %2681 = vmatpush1.bf16.msra.mxu0 %v1254
    %2682 = vmatprep.subr.bf16.mxu0 %v1247
    %2683 = vmatpush1.bf16.msra.mxu0 %v1246
    %2684 = vmatprep.subr.bf16.mxu0 %v1239
    %2685 = vmatpush1.bf16.msra.mxu0 %v1238
    %2686 = vmatprep.subr.bf16.mxu0 %v1231
    %2687 = vmatpush1.bf16.msra.mxu0 %v1230
    %2688 = vmatprep.subr.bf16.mxu0 0
    %2689 = vmatpush2.bf16.msra.mxu0 0
    %2690 = vmatprep.subr.bf16.mxu0 0
    %2691 = vmatpush2.bf16.msra.mxu0 0
    %2692 = vmatprep.subr.bf16.mxu0 0
    %2693 = vmatpush2.bf16.msra.mxu0 0
    %2694 = vmatprep.subr.bf16.mxu0 0
    %2695 = vmatpush2.bf16.msra.mxu0 0
    %2696 = vmatprep.subr.bf16.mxu0 0
    %2697 = vmatpush2.bf16.msra.mxu0 0
    %2698 = vmatprep.subr.bf16.mxu0 0
    %2699 = vmatpush2.bf16.msra.mxu0 0
    %2700 = vmatprep.subr.bf16.mxu0 0
    %2701 = vmatpush2.bf16.msra.mxu0 0
    %2702 = vmatprep.subr.bf16.mxu0 0
    %2703 = vmatpush2.bf16.msra.mxu0 0
    %2704 = vmatprep.mubr.bf16.mxu0 0
    %2705 = vmatmul.mubr.bf16.gmra.mxu0 %v2671
    %v2706 = vpop.f32.mrf.mxu0
    %v2707 = vadd.f32 0.0, %v2706
    %v2708 = vpop.f32.mrf.mxu0
    %v2709 = vadd.f32 0.0, %v2708
    %v2710 = vpop.f32.mrf.mxu0
    %v2711 = vpop.f32.mrf.mxu0
    %2712 = vdwg.mxu0
    %2713 = vmatprep.subr.bf16.mxu0 %v1289
    %2714 = vmatpush1.bf16.msra.mxu0 %v1288
    %2715 = vmatprep.subr.bf16.mxu0 %v1281
    %2716 = vmatpush1.bf16.msra.mxu0 %v1280
    %2717 = vmatprep.subr.bf16.mxu0 %v1273
    %2718 = vmatpush1.bf16.msra.mxu0 %v1272
    %2719 = vmatprep.subr.bf16.mxu0 %v1265
    %2720 = vmatpush1.bf16.msra.mxu0 %v1264
    %2721 = vmatprep.subr.bf16.mxu0 %v1257
    %2722 = vmatpush1.bf16.msra.mxu0 %v1256
    %2723 = vmatprep.subr.bf16.mxu0 %v1249
    %2724 = vmatpush1.bf16.msra.mxu0 %v1248
    %2725 = vmatprep.subr.bf16.mxu0 %v1241
    %2726 = vmatpush1.bf16.msra.mxu0 %v1240
    %2727 = vmatprep.subr.bf16.mxu0 %v1233
    %2728 = vmatpush1.bf16.msra.mxu0 %v1232
    %2729 = vmatprep.subr.bf16.mxu0 0
    %2730 = vmatpush2.bf16.msra.mxu0 0
    %2731 = vmatprep.subr.bf16.mxu0 0
    %2732 = vmatpush2.bf16.msra.mxu0 0
    %2733 = vmatprep.subr.bf16.mxu0 0
    %2734 = vmatpush2.bf16.msra.mxu0 0
    %2735 = vmatprep.subr.bf16.mxu0 0
    %2736 = vmatpush2.bf16.msra.mxu0 0
    %2737 = vmatprep.subr.bf16.mxu0 0
    %2738 = vmatpush2.bf16.msra.mxu0 0
    %2739 = vmatprep.subr.bf16.mxu0 0
    %2740 = vmatpush2.bf16.msra.mxu0 0
    %2741 = vmatprep.subr.bf16.mxu0 0
    %2742 = vmatpush2.bf16.msra.mxu0 0
    %2743 = vmatprep.subr.bf16.mxu0 0
    %2744 = vmatpush2.bf16.msra.mxu0 0
    %2745 = vmatprep.mubr.bf16.mxu0 0
    %2746 = vmatmul.mubr.bf16.gmra.mxu0 %v2671
    %v2747 = vpop.f32.mrf.mxu0
    %v2748 = vadd.f32 0.0, %v2747
    %v2749 = vpop.f32.mrf.mxu0
    %v2750 = vadd.f32 0.0, %v2749
    %v2751 = vpop.f32.mrf.mxu0
    %v2752 = vpop.f32.mrf.mxu0
    %2753 = vdwg.mxu0
    %2754 = vmatprep.subr.bf16.mxu0 %v1291
    %2755 = vmatpush1.bf16.msra.mxu0 %v1290
    %2756 = vmatprep.subr.bf16.mxu0 %v1283
    %2757 = vmatpush1.bf16.msra.mxu0 %v1282
    %2758 = vmatprep.subr.bf16.mxu0 %v1275
    %2759 = vmatpush1.bf16.msra.mxu0 %v1274
    %2760 = vmatprep.subr.bf16.mxu0 %v1267
    %2761 = vmatpush1.bf16.msra.mxu0 %v1266
    %2762 = vmatprep.subr.bf16.mxu0 %v1259
    %2763 = vmatpush1.bf16.msra.mxu0 %v1258
    %2764 = vmatprep.subr.bf16.mxu0 %v1251
    %2765 = vmatpush1.bf16.msra.mxu0 %v1250
    %2766 = vmatprep.subr.bf16.mxu0 %v1243
    %2767 = vmatpush1.bf16.msra.mxu0 %v1242
    %2768 = vmatprep.subr.bf16.mxu0 %v1235
    %2769 = vmatpush1.bf16.msra.mxu0 %v1234
    %2770 = vmatprep.subr.bf16.mxu0 0
    %2771 = vmatpush2.bf16.msra.mxu0 0
    %2772 = vmatprep.subr.bf16.mxu0 0
    %2773 = vmatpush2.bf16.msra.mxu0 0
    %2774 = vmatprep.subr.bf16.mxu0 0
    %2775 = vmatpush2.bf16.msra.mxu0 0
    %2776 = vmatprep.subr.bf16.mxu0 0
    %2777 = vmatpush2.bf16.msra.mxu0 0
    %2778 = vmatprep.subr.bf16.mxu0 0
    %2779 = vmatpush2.bf16.msra.mxu0 0
    %2780 = vmatprep.subr.bf16.mxu0 0
    %2781 = vmatpush2.bf16.msra.mxu0 0
    %2782 = vmatprep.subr.bf16.mxu0 0
    %2783 = vmatpush2.bf16.msra.mxu0 0
    %2784 = vmatprep.subr.bf16.mxu0 0
    %2785 = vmatpush2.bf16.msra.mxu0 0
    %2786 = vmatprep.mubr.bf16.mxu0 0
    %2787 = vmatmul.mubr.bf16.gmra.mxu0 %v2671
    %v2788 = vpop.f32.mrf.mxu0
    %v2789 = vpop.f32.mrf.mxu0
    %v2790 = vpop.f32.mrf.mxu0
    %v2791 = vadd.f32 0.0, %v2790
    %v2792 = vpop.f32.mrf.mxu0
    %v2793 = vadd.f32 0.0, %v2792
    %2794 = vdwg.mxu0
    %2795 = vmatprep.subr.bf16.mxu0 %v1293
    %2796 = vmatpush1.bf16.msra.mxu0 %v1292
    %2797 = vmatprep.subr.bf16.mxu0 %v1285
    %2798 = vmatpush1.bf16.msra.mxu0 %v1284
    %2799 = vmatprep.subr.bf16.mxu0 %v1277
    %2800 = vmatpush1.bf16.msra.mxu0 %v1276
    %2801 = vmatprep.subr.bf16.mxu0 %v1269
    %2802 = vmatpush1.bf16.msra.mxu0 %v1268
    %2803 = vmatprep.subr.bf16.mxu0 %v1261
    %2804 = vmatpush1.bf16.msra.mxu0 %v1260
    %2805 = vmatprep.subr.bf16.mxu0 %v1253
    %2806 = vmatpush1.bf16.msra.mxu0 %v1252
    %2807 = vmatprep.subr.bf16.mxu0 %v1245
    %2808 = vmatpush1.bf16.msra.mxu0 %v1244
    %2809 = vmatprep.subr.bf16.mxu0 %v1237
    %2810 = vmatpush1.bf16.msra.mxu0 %v1236
    %2811 = vmatprep.subr.bf16.mxu0 0
    %2812 = vmatpush2.bf16.msra.mxu0 0
    %2813 = vmatprep.subr.bf16.mxu0 0
    %2814 = vmatpush2.bf16.msra.mxu0 0
    %2815 = vmatprep.subr.bf16.mxu0 0
    %2816 = vmatpush2.bf16.msra.mxu0 0
    %2817 = vmatprep.subr.bf16.mxu0 0
    %2818 = vmatpush2.bf16.msra.mxu0 0
    %2819 = vmatprep.subr.bf16.mxu0 0
    %2820 = vmatpush2.bf16.msra.mxu0 0
    %2821 = vmatprep.subr.bf16.mxu0 0
    %2822 = vmatpush2.bf16.msra.mxu0 0
    %2823 = vmatprep.subr.bf16.mxu0 0
    %2824 = vmatpush2.bf16.msra.mxu0 0
    %2825 = vmatprep.subr.bf16.mxu0 0
    %2826 = vmatpush2.bf16.msra.mxu0 0
    %2827 = vmatprep.mubr.bf16.mxu0 0
    %2828 = vmatmul.mubr.bf16.gmra.mxu0 %v2671
    %v2829 = vpop.f32.mrf.mxu0
    %v2830 = vpop.f32.mrf.mxu0
    %v2831 = vpop.f32.mrf.mxu0
    %v2832 = vadd.f32 0.0, %v2831
    %v2833 = vpop.f32.mrf.mxu0
    %v2834 = vadd.f32 0.0, %v2833
    %2835 = vdwg.mxu0
    %v2836 = vld [vmem:[#allocation2 + $0xe0] sm:$0xff]
    %v2837 = vld [vmem:[#allocation2 + $0xe8] sm:$0xff]
    %v2838 = vld [vmem:[#allocation2 + $0xf0] sm:$0xff]
    %v2839 = vld [vmem:[#allocation2 + $0xf8] sm:$0xff]
    %v2840 = vadd.f32 %v2836, %v2707
    %v2841 = vadd.f32 %v2837, %v2709
    %v2842 = vadd.f32 %v2838, %v2748
    %v2843 = vadd.f32 %v2839, %v2750
    %v2844 = vld [vmem:[#allocation3] sm:$0xff]
    %v2845 = vld [vmem:[#allocation3 + $0x8] sm:$0xff]
    %v2846 = vld [vmem:[#allocation3 + $0x10] sm:$0xff]
    %v2847 = vld [vmem:[#allocation3 + $0x18] sm:$0xff]
    %v2848 = vadd.f32 %v2844, %v2791
    %v2849 = vadd.f32 %v2845, %v2793
    %v2850 = vadd.f32 %v2846, %v2832
    %v2851 = vadd.f32 %v2847, %v2834
    %v2852 = vmul.f32 %v2840, 0.5
    %v2853 = vtanh.pop %v2852
    %v2854 = vadd.f32 %v2853, 1.0
    %v2855 = vmul.f32 %v2854, 0.5
    %v2856 = vmul.f32 %v2841, 0.5
    %v2857 = vtanh.pop %v2856
    %v2858 = vadd.f32 %v2857, 1.0
    %v2859 = vmul.f32 %v2858, 0.5
    %v2860 = vtanh.pop %v2842
    %v2861 = vmul.f32 %v2843, 0.5
    %v2862 = vtanh.pop %v2861
    %v2863 = vadd.f32 %v2862, 1.0
    %v2864 = vmul.f32 %v2863, 0.5
    %v2865 = vmul.f32 %v2859, %v2648
    %v2866 = vmul.f32 %v2855, %v2860
    %v2867 = vadd.f32 %v2865, %v2866
    %v2868 = vtanh.pop %v2867
    %v2869 = vmul.f32 %v2864, %v2868
    %v2870 = vmul.f32 %v2848, 0.5
    %v2871 = vtanh.pop %v2870
    %v2872 = vadd.f32 %v2871, 1.0
    %v2873 = vmul.f32 %v2872, 0.5
    %v2874 = vmul.f32 %v2849, 0.5
    %v2875 = vtanh.pop %v2874
    %v2876 = vadd.f32 %v2875, 1.0
    %v2877 = vmul.f32 %v2876, 0.5
    %v2878 = vtanh.pop %v2850
    %v2879 = vmul.f32 %v2851, 0.5
    %v2880 = vtanh.pop %v2879
    %v2881 = vadd.f32 %v2880, 1.0
    %v2882 = vmul.f32 %v2881, 0.5
    %v2883 = vmul.f32 %v2877, %v2666
    %v2884 = vmul.f32 %v2873, %v2878
    %v2885 = vadd.f32 %v2883, %v2884
    %v2886 = vtanh.pop %v2885
    %v2887 = vmul.f32 %v2882, %v2886
    %2888 = vst [vmem:[#allocation4 + $0x70] sm:$0xff] %v2869
    %2889 = vst [vmem:[#allocation4 + $0x8] sm:$0xff] %v2887
    %2890 = vst [vmem:[#allocation5] sm:$0xff] %v2867
    %2891 = vst [vmem:[#allocation5 + $0x8] sm:$0xff] %v2885
    %v2892 = vld [vmem:[#allocation5] ss:$2 sm:$0xff]
    %s2893 = scalar_lea.vmem [#allocation5], 1
    %v2894 = vld [vmem:[%s2893] ss:$2 sm:$0xff]
    %v2895 = vld [vmem:[#allocation4] sm:$0xff]
    %v2896 = vld [vmem:[#allocation4 + $0x8] sm:$0xff]
    %v2897 = vld [vmem:[#allocation4 + $0x10] sm:$0xff]
    %v2898 = vld [vmem:[#allocation4 + $0x18] sm:$0xff]
    %v2899 = vld [vmem:[#allocation4 + $0x20] sm:$0xff]
    %v2900 = vld [vmem:[#allocation4 + $0x28] sm:$0xff]
    %v2901 = vld [vmem:[#allocation4 + $0x30] sm:$0xff]
    %v2902 = vld [vmem:[#allocation4 + $0x38] sm:$0xff]
    %v2903 = vld [vmem:[#allocation4 + $0x40] sm:$0xff]
    %v2904 = vld [vmem:[#allocation4 + $0x48] sm:$0xff]
    %v2905 = vld [vmem:[#allocation4 + $0x50] sm:$0xff]
    %v2906 = vld [vmem:[#allocation4 + $0x58] sm:$0xff]
    %v2907 = vld [vmem:[#allocation4 + $0x60] sm:$0xff]
    %v2908 = vld [vmem:[#allocation4 + $0x68] sm:$0xff]
    %v2909 = vld [vmem:[#allocation4 + $0x70] sm:$0xff]
    %v2910 = vld [vmem:[#allocation4 + $0x78] sm:$0xff]
    %v2911 = vmul.f32 %v2895, %v2892
    %v2912 = vmul.f32 %v2896, %v2894
    %v2913 = vadd.f32 %v2911, %v2912
    %2914 = vadd.xlane.f32.xlu0 %v2913
    %v2915 = vpop.xlane.xlu0 %2914
    %v2916 = vmul.f32 %v2897, %v2892
    %v2917 = vmul.f32 %v2898, %v2894
    %v2918 = vadd.f32 %v2916, %v2917
    %2919 = vadd.xlane.f32.xlu0 %v2918
    %v2920 = vpop.xlane.xlu0 %2919
    %v2921 = vmul.f32 %v2899, %v2892
    %v2922 = vmul.f32 %v2900, %v2894
    %v2923 = vadd.f32 %v2921, %v2922
    %2924 = vadd.xlane.f32.xlu0 %v2923
    %v2925 = vpop.xlane.xlu0 %2924
    %v2926 = vmul.f32 %v2901, %v2892
    %v2927 = vmul.f32 %v2902, %v2894
    %v2928 = vadd.f32 %v2926, %v2927
    %2929 = vadd.xlane.f32.xlu0 %v2928
    %v2930 = vpop.xlane.xlu0 %2929
    %v2931 = vmul.f32 %v2903, %v2892
    %v2932 = vmul.f32 %v2904, %v2894
    %v2933 = vadd.f32 %v2931, %v2932
    %2934 = vadd.xlane.f32.xlu0 %v2933
    %v2935 = vpop.xlane.xlu0 %2934
    %v2936 = vmul.f32 %v2905, %v2892
    %v2937 = vmul.f32 %v2906, %v2894
    %v2938 = vadd.f32 %v2936, %v2937
    %2939 = vadd.xlane.f32.xlu0 %v2938
    %v2940 = vpop.xlane.xlu0 %2939
    %v2941 = vmul.f32 %v2907, %v2892
    %v2942 = vmul.f32 %v2908, %v2894
    %v2943 = vadd.f32 %v2941, %v2942
    %2944 = vadd.xlane.f32.xlu0 %v2943
    %v2945 = vpop.xlane.xlu0 %2944
    %v2946 = vmul.f32 %v2909, %v2892
    %v2947 = vmul.f32 %v2910, %v2894
    %v2948 = vadd.f32 %v2946, %v2947
    %2949 = vadd.xlane.f32.xlu0 %v2948
    %v2950 = vpop.xlane.xlu0 %2949
    %v2951 = vmax.f32 %v2915, %v2920
    %v2952 = vmax.f32 %v2951, %v2925
    %v2953 = vmax.f32 %v2952, %v2930
    %v2954 = vmax.f32 %v2953, %v2935
    %v2955 = vmax.f32 %v2954, %v2940
    %v2956 = vmax.f32 %v2955, %v2945
    %v2957 = vmax.f32 %v2956, %v2950
    %v2958 = vsub.f32 %v2915, %v2957
    %v2959 = vmul.f32 %v2958, 1.442695
    %v2960 = vpow.pop %v2959
    %v2961 = vsub.f32 %v2920, %v2957
    %v2962 = vmul.f32 %v2961, 1.442695
    %v2963 = vpow.pop %v2962
    %v2964 = vsub.f32 %v2925, %v2957
    %v2965 = vmul.f32 %v2964, 1.442695
    %v2966 = vpow.pop %v2965
    %v2967 = vsub.f32 %v2930, %v2957
    %v2968 = vmul.f32 %v2967, 1.442695
    %v2969 = vpow.pop %v2968
    %v2970 = vsub.f32 %v2935, %v2957
    %v2971 = vmul.f32 %v2970, 1.442695
    %v2972 = vpow.pop %v2971
    %v2973 = vsub.f32 %v2940, %v2957
    %v2974 = vmul.f32 %v2973, 1.442695
    %v2975 = vpow.pop %v2974
    %v2976 = vsub.f32 %v2945, %v2957
    %v2977 = vmul.f32 %v2976, 1.442695
    %v2978 = vpow.pop %v2977
    %v2979 = vsub.f32 %v2950, %v2957
    %v2980 = vmul.f32 %v2979, 1.442695
    %v2981 = vpow.pop %v2980
    %v2982 = vadd.f32 %v2960, %v2963
    %v2983 = vadd.f32 %v2982, %v2966
    %v2984 = vadd.f32 %v2983, %v2969
    %v2985 = vadd.f32 %v2984, %v2972
    %v2986 = vadd.f32 %v2985, %v2975
    %v2987 = vadd.f32 %v2986, %v2978
    %v2988 = vadd.f32 %v2987, %v2981
    %v2989 = vrcp.pop %v2988
    %v2990 = vmul.f32 %v2960, %v2895
    %v2991 = vmul.f32 %v2960, %v2896
    %v2992 = vmul.f32 %v2963, %v2897
    %v2993 = vmul.f32 %v2963, %v2898
    %v2994 = vadd.f32 %v2990, %v2992
    %v2995 = vadd.f32 %v2991, %v2993
    %v2996 = vmul.f32 %v2966, %v2899
    %v2997 = vmul.f32 %v2966, %v2900
    %v2998 = vadd.f32 %v2994, %v2996
    %v2999 = vadd.f32 %v2995, %v2997
    %v3000 = vmul.f32 %v2969, %v2901
    %v3001 = vmul.f32 %v2969, %v2902
    %v3002 = vadd.f32 %v2998, %v3000
    %v3003 = vadd.f32 %v2999, %v3001
    %v3004 = vmul.f32 %v2972, %v2903
    %v3005 = vmul.f32 %v2972, %v2904
    %v3006 = vadd.f32 %v3002, %v3004
    %v3007 = vadd.f32 %v3003, %v3005
    %v3008 = vmul.f32 %v2975, %v2905
    %v3009 = vmul.f32 %v2975, %v2906
    %v3010 = vadd.f32 %v3006, %v3008
    %v3011 = vadd.f32 %v3007, %v3009
    %v3012 = vmul.f32 %v2978, %v2907
    %v3013 = vmul.f32 %v2978, %v2908
    %v3014 = vadd.f32 %v3010, %v3012
    %v3015 = vadd.f32 %v3011, %v3013
    %v3016 = vmul.f32 %v2981, %v2909
    %v3017 = vmul.f32 %v2981, %v2910
    %v3018 = vadd.f32 %v3014, %v3016
    %v3019 = vadd.f32 %v3015, %v3017
    %v3020 = vmul.f32 %v3018, %v2989
    %v3021 = vmul.f32 %v3019, %v2989
    %v3022 = vpack.c.bf16 %v3020, %v3020
    %v3023 = vpack.c.bf16 %v3021, %v3021
    %v3024 = vld [vmem:[#allocation15] sm:$0xf]
    %v3025 = vld [vmem:[#allocation15 + $0x4] sm:$0xf]
    %v3026 = vld [vmem:[#allocation15 + $0x8] sm:$0xf]
    %v3027 = vld [vmem:[#allocation15 + $0xc] sm:$0xf]
    %v3028 = vld [vmem:[#allocation15 + $0x10] sm:$0xf]
    %v3029 = vld [vmem:[#allocation15 + $0x14] sm:$0xf]
    %v3030 = vld [vmem:[#allocation15 + $0x18] sm:$0xf]
    %v3031 = vld [vmem:[#allocation15 + $0x1c] sm:$0xf]
    %v3032 = vld [vmem:[#allocation15 + $0x20] sm:$0xf]
    %v3033 = vld [vmem:[#allocation15 + $0x24] sm:$0xf]
    %v3034 = vld [vmem:[#allocation15 + $0x28] sm:$0xf]
    %v3035 = vld [vmem:[#allocation15 + $0x2c] sm:$0xf]
    %v3036 = vld [vmem:[#allocation15 + $0x30] sm:$0xf]
    %v3037 = vld [vmem:[#allocation15 + $0x34] sm:$0xf]
    %v3038 = vld [vmem:[#allocation15 + $0x38] sm:$0xf]
    %v3039 = vld [vmem:[#allocation15 + $0x3c] sm:$0xf]
    %v3040 = vld [vmem:[#allocation15 + $0x40] sm:$0xf]
    %v3041 = vld [vmem:[#allocation15 + $0x44] sm:$0xf]
    %v3042 = vld [vmem:[#allocation15 + $0x48] sm:$0xf]
    %v3043 = vld [vmem:[#allocation15 + $0x4c] sm:$0xf]
    %v3044 = vld [vmem:[#allocation15 + $0x50] sm:$0xf]
    %v3045 = vld [vmem:[#allocation15 + $0x54] sm:$0xf]
    %v3046 = vld [vmem:[#allocation15 + $0x58] sm:$0xf]
    %v3047 = vld [vmem:[#allocation15 + $0x5c] sm:$0xf]
    %v3048 = vld [vmem:[#allocation15 + $0x60] sm:$0xf]
    %v3049 = vld [vmem:[#allocation15 + $0x64] sm:$0xf]
    %v3050 = vld [vmem:[#allocation15 + $0x68] sm:$0xf]
    %v3051 = vld [vmem:[#allocation15 + $0x6c] sm:$0xf]
    %v3052 = vld [vmem:[#allocation15 + $0x70] sm:$0xf]
    %v3053 = vld [vmem:[#allocation15 + $0x74] sm:$0xf]
    %v3054 = vld [vmem:[#allocation15 + $0x78] sm:$0xf]
    %v3055 = vld [vmem:[#allocation15 + $0x7c] sm:$0xf]
    %v3056 = vld [vmem:[%s7] sm:$0x1]
    %v3058 = vlaneseq
    %v3059 = vshrl.u32 %v3058, 7
    %v3060 = vsub.s32 0, %v3059
    %v3061 = vrot.slane %v3056, %v3060
    %v3095 = vunpack.c.l.b16 %v3024
    %v3096 = vunpack.c.l.b16 %v3025
    %v3097 = vunpack.c.l.b16 %v3026
    %v3098 = vunpack.c.l.b16 %v3027
    %v3099 = vunpack.c.l.b16 %v3028
    %v3100 = vunpack.c.l.b16 %v3029
    %v3101 = vunpack.c.l.b16 %v3030
    %v3102 = vunpack.c.l.b16 %v3031
    %v3103 = vunpack.c.l.b16 %v3032
    %v3104 = vunpack.c.l.b16 %v3033
    %v3105 = vunpack.c.l.b16 %v3034
    %v3106 = vunpack.c.l.b16 %v3035
    %v3107 = vunpack.c.l.b16 %v3036
    %v3108 = vunpack.c.l.b16 %v3037
    %v3109 = vunpack.c.l.b16 %v3038
    %v3110 = vunpack.c.l.b16 %v3039
    %v3111 = vunpack.c.l.b16 %v3040
    %v3112 = vunpack.c.l.b16 %v3041
    %v3113 = vunpack.c.l.b16 %v3042
    %v3114 = vunpack.c.l.b16 %v3043
    %v3115 = vunpack.c.l.b16 %v3044
    %v3116 = vunpack.c.l.b16 %v3045
    %v3117 = vunpack.c.l.b16 %v3046
    %v3118 = vunpack.c.l.b16 %v3047
    %v3119 = vunpack.c.l.b16 %v3048
    %v3120 = vunpack.c.l.b16 %v3049
    %v3121 = vunpack.c.l.b16 %v3050
    %v3122 = vunpack.c.l.b16 %v3051
    %v3123 = vunpack.c.l.b16 %v3052
    %v3124 = vunpack.c.l.b16 %v3053
    %v3125 = vunpack.c.l.b16 %v3054
    %v3126 = vunpack.c.l.b16 %v3055
    %v3127 = vpack.c.b16 %v3096, %v3095
    %v3128 = vpack.c.b16 %v3098, %v3097
    %v3129 = vpack.c.b16 %v3100, %v3099
    %v3130 = vpack.c.b16 %v3102, %v3101
    %v3131 = vpack.c.b16 %v3104, %v3103
    %v3132 = vpack.c.b16 %v3106, %v3105
    %v3133 = vpack.c.b16 %v3108, %v3107
    %v3134 = vpack.c.b16 %v3110, %v3109
    %v3135 = vpack.c.b16 %v3112, %v3111
    %v3136 = vpack.c.b16 %v3114, %v3113
    %v3137 = vpack.c.b16 %v3116, %v3115
    %v3138 = vpack.c.b16 %v3118, %v3117
    %v3139 = vpack.c.b16 %v3120, %v3119
    %v3140 = vpack.c.b16 %v3122, %v3121
    %v3141 = vpack.c.b16 %v3124, %v3123
    %v3142 = vpack.c.b16 %v3126, %v3125
    %3159 = vmatprep.subr.bf16.mxu0 0
    %3160 = vmatpush1.bf16.msra.mxu0 %v3134
    %3161 = vmatprep.subr.bf16.mxu0 0
    %3162 = vmatpush1.bf16.msra.mxu0 %v3133
    %3163 = vmatprep.subr.bf16.mxu0 0
    %3164 = vmatpush1.bf16.msra.mxu0 %v3132
    %3165 = vmatprep.subr.bf16.mxu0 0
    %3166 = vmatpush1.bf16.msra.mxu0 %v3131
    %3167 = vmatprep.subr.bf16.mxu0 0
    %3168 = vmatpush1.bf16.msra.mxu0 %v3130
    %3169 = vmatprep.subr.bf16.mxu0 0
    %3170 = vmatpush1.bf16.msra.mxu0 %v3129
    %3171 = vmatprep.subr.bf16.mxu0 0
    %3172 = vmatpush1.bf16.msra.mxu0 %v3128
    %3173 = vmatprep.subr.bf16.mxu0 0
    %3174 = vmatpush1.bf16.msra.mxu0 %v3127
    %3175 = vmatprep.subr.bf16.mxu0 0
    %3176 = vmatpush2.bf16.msra.mxu0 %v3142
    %3177 = vmatprep.subr.bf16.mxu0 0
    %3178 = vmatpush2.bf16.msra.mxu0 %v3141
    %3179 = vmatprep.subr.bf16.mxu0 0
    %3180 = vmatpush2.bf16.msra.mxu0 %v3140
    %3181 = vmatprep.subr.bf16.mxu0 0
    %3182 = vmatpush2.bf16.msra.mxu0 %v3139
    %3183 = vmatprep.subr.bf16.mxu0 0
    %3184 = vmatpush2.bf16.msra.mxu0 %v3138
    %3185 = vmatprep.subr.bf16.mxu0 0
    %3186 = vmatpush2.bf16.msra.mxu0 %v3137
    %3187 = vmatprep.subr.bf16.mxu0 0
    %3188 = vmatpush2.bf16.msra.mxu0 %v3136
    %3189 = vmatprep.subr.bf16.mxu0 0
    %3190 = vmatpush2.bf16.msra.mxu0 %v3135
    %3191 = vmatprep.mubr.bf16.mxu0 %v3023
    %3192 = vmatmul.mubr.bf16.gmra.mxu0 %v3022
    %v3193 = vpop.f32.mrf.mxu0
    %v3194 = vadd.f32 %v3061, %v3193
    %v3195 = vpop.f32.mrf.mxu0
    %v3196 = vpop.f32.mrf.mxu0
    %v3197 = vpop.f32.mrf.mxu0
    %3198 = vdwg.mxu0
    %3199 = vst [vmem:[#allocation17] sm:$0xff] %v3194
    // Predicated region
    $region58: #{tpu_custom_call.1} parent=1 // pred_check
      _
    $region59: #{tpu_custom_call.1} parent=1 // pred_check_branch
      %3201 = sbr.rel (0) target = $region61
    $region60: #{tpu_custom_call.1} parent=1 // pred_region
      %s3203 = ssub.s32 128, 128
      %3204 = vsyncadd [#allocation8], %s3203
      %s3206 = sshll.u32 [#allocation17], 4
      %s3207 = int_to_ptr.vmem [resolvable:$true] %s3206
      %3209 = dma.vmem_to_hbm [thread:$0]  %s3207, 128, %s8, [#allocation8]
    $region61: #{tpu_custom_call.1} parent=1 // pred_fallthru
      _
    // Predicated region
    $region62: #{tpu_custom_call.1} parent=1 // pred_check
      _
    $region63: #{tpu_custom_call.1} parent=1 // pred_check_branch
      %3211 = sbr.rel (0) target = $region65
    $region64: #{tpu_custom_call.1} parent=1 // pred_region
      %3212 = dma.done [#allocation8], 128
    $region65: #{tpu_custom_call.1} parent=1 // pred_fallthru
      _
    %3213 = vsyncpa [#allocation7], 1
    %3214 = vsyncpa [#allocation10], 1
    %3215 = vsyncpa [#allocation13], 1
    %3216 = vsyncpa [#allocation16], 1
    %3217 = vsyncpa [#allocation8], 1

</llo_original>
